<compile_context>
chip_gen: v7x
topology: tpu7x:2x2x1
jax: 0.10.0
libtpu: 0.0.40
codegen_flags: <defaults>
</compile_context>

<pallas_src>
import functools
import math

import jax
import jax.numpy as jnp
from jax import lax
from jax.experimental import pallas as pl
from jax.experimental.pallas import tpu as pltpu

EPS = 1e-6
NEG_INF = -1.0e9


# ---------------------------------- in-kernel math ----------------------------------

def _layer_norm_k(x, alpha, gamma):
    # matches Normalizator: mean & std over last dim, torch.std default ddof=1.
    # Exact divide: denominator is an (S, 1) column — a handful of VPU ops fully
    # hidden under the matmuls (approx reciprocal removed per review).
    d = x.shape[-1]
    mean = jnp.mean(x, axis=-1, keepdims=True)
    var = jnp.sum((x - mean) ** 2, axis=-1, keepdims=True) / (d - 1)
    std = jnp.sqrt(var)
    return alpha * (x - mean) / (std + EPS) + gamma


def _softmax_k(s):
    m = jnp.max(s, axis=-1, keepdims=True)
    e = jnp.exp(s - m)
    return e / jnp.sum(e, axis=-1, keepdims=True)


def _mha_k(x_q, x_kv, wq_ref, bq_ref, wk_ref, bk_ref, wv_ref, bv_ref,
           wo_ref, bo_ref, num_heads, mask_bias):
    """Multi-head attention with head-leading per-head weight stacks.

    All per-head accesses are leading-dim ref indexing (no lane-axis slicing /
    relayouts). Scores contract the dk axis of q_h and k_h directly via
    lax.dot_general (no materialized transpose). The output projection is
    accumulated per head (concat-free) — justified here because dk=8 is not a
    128-multiple; at production dk write pv_h lane-aligned into an (S, D)
    scratch and do ONE full-K w_o matmul instead.
    """
    sq, d_model = x_q.shape
    dk = d_model // num_heads
    scale = 1.0 / math.sqrt(dk)
    out = jnp.zeros((sq, d_model), jnp.float32)
    # TODO(synk): at production head counts switch to lax.fori_loop(..., unroll=True)
    # (static Python unrolling does not bound live ranges).
    for h in range(num_heads):                               # static unroll (4 heads)
        q_h = jnp.dot(x_q, wq_ref[h], preferred_element_type=jnp.float32) + bq_ref[h]
        k_h = jnp.dot(x_kv, wk_ref[h], preferred_element_type=jnp.float32) + bk_ref[h]
        v_h = jnp.dot(x_kv, wv_ref[h], preferred_element_type=jnp.float32) + bv_ref[h]
        s = lax.dot_general(q_h, k_h, (((1,), (1,)), ((), ())),
                            preferred_element_type=jnp.float32) * scale
        if mask_bias is not None:
            # additive -1e9 bias == masked_fill(mask==0, -1e9) while |s| << 1e9.
            s = s + mask_bias
        p = _softmax_k(s)
        pv = jnp.dot(p, v_h, preferred_element_type=jnp.float32)
        out = out + jnp.dot(pv, wo_ref[h], preferred_element_type=jnp.float32)
    return out + bo_ref[...]


# ---------------------------------- Pallas kernel ----------------------------------

def decoder_block_kernel(norm_ref, tgt_ref, enc_ref, bias_ref,
                         wq1_ref, bq1_ref, wk1_ref, bk1_ref, wv1_ref, bv1_ref,
                         wo1_ref, bo1_ref,
                         wq2_ref, bq2_ref, wk2_ref, bk2_ref, wv2_ref, bv2_ref,
                         wo2_ref, bo2_ref,
                         w1_ref, b1_ref, w2_ref, b2_ref,
                         out_ref, *, num_heads):
    x = tgt_ref[...]
    enc = enc_ref[...]
    mask_bias = bias_ref[...]           # precomputed additive 0 / -1e9 bias

    # --- residual 0: pre-norm self-attention (no mask); dropout = identity ---
    xn = _layer_norm_k(x, norm_ref[0, 0], norm_ref[0, 1])
    x = x + _mha_k(xn, xn, wq1_ref, bq1_ref, wk1_ref, bk1_ref, wv1_ref, bv1_ref,
                   wo1_ref, bo1_ref, num_heads, None)

    # --- residual 1: pre-norm cross-attention; K/V come from encoder output ---
    xn = _layer_norm_k(x, norm_ref[1, 0], norm_ref[1, 1])
    x = x + _mha_k(xn, enc, wq2_ref, bq2_ref, wk2_ref, bk2_ref, wv2_ref, bv2_ref,
                   wo2_ref, bo2_ref, num_heads, mask_bias)

    # --- residual 2: pre-norm feed-forward (Linear -> ReLU -> Linear) ---
    xn = _layer_norm_k(x, norm_ref[2, 0], norm_ref[2, 1])
    h = jnp.maximum(jnp.dot(xn, w1_ref[...], preferred_element_type=jnp.float32)
                    + b1_ref[...], 0.0)
    ff = jnp.dot(h, w2_ref[...], preferred_element_type=jnp.float32) + b2_ref[...]
    out_ref[...] = (x + ff).astype(out_ref.dtype)


# ---------------------------------- host-side prep & wrapper ----------------------------------

def prepare_decoder_params(params, *, num_heads):
    """One-time host-side parameter prep (hoisted out of decoder_block per review).

    Attention projection weights are restructured into per-head stacks with the
    head index on a LEADING axis so in-kernel per-head access is leading-dim ref
    indexing instead of non-128-aligned lane slicing.
    """
    (wq1, bq1, wk1, bk1, wv1, bv1, wo1, bo1,
     wq2, bq2, wk2, bk2, wv2, bv2, wo2, bo2,
     w1, b1, w2, b2) = params
    d_model = wq1.shape[0]
    assert d_model % num_heads == 0, "d_model is not divisible by num_heads"
    dk = d_model // num_heads

    def in_proj(w, b):
        # (D, D) -> (H, D, dk); (1, D) -> (H, 1, dk); head h <- out cols [h*dk, (h+1)*dk)
        wh = jnp.transpose(w.reshape(d_model, num_heads, dk), (1, 0, 2))
        bh = jnp.transpose(b.reshape(1, num_heads, dk), (1, 0, 2))
        return wh, bh

    def out_proj(w):
        # (D, D) -> (H, dk, D); head h <- rows [h*dk, (h+1)*dk)
        return w.reshape(num_heads, dk, d_model)

    wq1h, bq1h = in_proj(wq1, bq1)
    wk1h, bk1h = in_proj(wk1, bk1)
    wv1h, bv1h = in_proj(wv1, bv1)
    wq2h, bq2h = in_proj(wq2, bq2)
    wk2h, bk2h = in_proj(wk2, bk2)
    wv2h, bv2h = in_proj(wv2, bv2)

    return (wq1h, bq1h, wk1h, bk1h, wv1h, bv1h, out_proj(wo1), bo1,
            wq2h, bq2h, wk2h, bk2h, wv2h, bv2h, out_proj(wo2), bo2,
            w1, b1, w2, b2)


def decoder_block(tgt, enc, mask_bias, norm_params, prepped_params, *, num_heads):
    """Runs the decoder block kernel.

    norm_params: (3, 2) f32 [[alpha, gamma], ...] (lives in SMEM).
    prepped_params: output of prepare_decoder_params (20 arrays).
    mask_bias: (S_tgt, S_src) f32 additive bias (0 where visible, -1e9 where masked).

    NOTE: tgt's buffer is DONATED to the output via input_output_aliases — do not
    read tgt after this call; if wrapping in jax.jit, mark tgt with donate_argnums.
    """
    kernel = functools.partial(decoder_block_kernel, num_heads=num_heads)
    n_vmem_inputs = 3 + len(prepped_params)  # tgt, enc, mask_bias, weights/biases

    # Grid-less, everything-resident: correct call at (8, 32) where runtime is
    # dominated by fixed pallas_call overhead. Production-shape plan in header TODO.
    return pl.pallas_call(
        kernel,
        out_shape=jax.ShapeDtypeStruct(tgt.shape, tgt.dtype),
        in_specs=[pl.BlockSpec(memory_space=pltpu.MemorySpace.SMEM)]
                 + [pl.BlockSpec(memory_space=pltpu.MemorySpace.VMEM)] * n_vmem_inputs,
        out_specs=pl.BlockSpec(memory_space=pltpu.MemorySpace.VMEM),
        input_output_aliases={1: 0},  # tgt (input #1) fully consumed -> reuse its buffer
    )(norm_params, tgt, enc, mask_bias, *prepped_params)


# ---------------------------------- pure-JAX reference ----------------------------------

_HIGHEST = jax.lax.Precision.HIGHEST   # fp32-accurate reference matmuls


def _layer_norm_ref(x, alpha, gamma):
    d = x.shape[-1]
    mean = jnp.mean(x, axis=-1, keepdims=True)
    var = jnp.sum((x - mean) ** 2, axis=-1, keepdims=True) / (d - 1)
    std = jnp.sqrt(var)
    return alpha * (x - mean) / (std + EPS) + gamma


def _softmax_ref(x):
    m = jnp.max(x, axis=-1, keepdims=True)
    e = jnp.exp(x - m)
    return e / jnp.sum(e, axis=-1, keepdims=True)


def _mha_ref(x_q, x_kv, wq, bq, wk, bk, wv, bv, wo, bo, num_heads, mask=None):
    q = jnp.dot(x_q, wq, precision=_HIGHEST) + bq
    k = jnp.dot(x_kv, wk, precision=_HIGHEST) + bk
    v = jnp.dot(x_kv, wv, precision=_HIGHEST) + bv
    d_model = q.shape[-1]
    dk = d_model // num_heads
    scale = 1.0 / math.sqrt(dk)
    head_outs = []
    for h in range(num_heads):
        qh = q[:, h * dk:(h + 1) * dk]
        kh = k[:, h * dk:(h + 1) * dk]
        vh = v[:, h * dk:(h + 1) * dk]
        s = jnp.dot(qh, kh.T, precision=_HIGHEST) * scale
        if mask is not None:
            s = jnp.where(mask == 0.0, NEG_INF, s)   # masked_fill semantics
        p = _softmax_ref(s)
        head_outs.append(jnp.dot(p, vh, precision=_HIGHEST))
    o = jnp.concatenate(head_outs, axis=-1)
    return jnp.dot(o, wo, precision=_HIGHEST) + bo


def decoder_block_ref(tgt, enc, mask, norm_params, params, *, num_heads):
    (wq1, bq1, wk1, bk1, wv1, bv1, wo1, bo1,
     wq2, bq2, wk2, bk2, wv2, bv2, wo2, bo2,
     w1, b1, w2, b2) = params
    x = tgt
    xn = _layer_norm_ref(x, norm_params[0, 0], norm_params[0, 1])
    x = x + _mha_ref(xn, xn, wq1, bq1, wk1, bk1, wv1, bv1, wo1, bo1, num_heads, mask=None)
    xn = _layer_norm_ref(x, norm_params[1, 0], norm_params[1, 1])
    x = x + _mha_ref(xn, enc, wq2, bq2, wk2, bk2, wv2, bv2, wo2, bo2, num_heads, mask=mask)
    xn = _layer_norm_ref(x, norm_params[2, 0], norm_params[2, 1])
    h = jnp.maximum(jnp.dot(xn, w1, precision=_HIGHEST) + b1, 0.0)
    return x + jnp.dot(h, w2, precision=_HIGHEST) + b2


# ---------------------------------- driver ----------------------------------

if __name__ == "__main__":
    S_TGT, S_SRC = 8, 8
    D_MODEL, NUM_HEADS, D_FF = 32, 4, 64

    key = jax.random.PRNGKey(0)
    keys = jax.random.split(key, 13)

    def linear_params(k, d_in, d_out):
        # deterministic init mimicking nn.Linear's U(-1/sqrt(d_in), 1/sqrt(d_in));
        # weight stored transposed as (d_in, d_out), bias as (1, d_out).
        kw, kb = jax.random.split(k)
        bound = 1.0 / math.sqrt(d_in)
        w = jax.random.uniform(kw, (d_in, d_out), jnp.float32, -bound, bound)
        b = jax.random.uniform(kb, (1, d_out), jnp.float32, -bound, bound)
        return w, b

    # self-attention linears
    wq1, bq1 = linear_params(keys[0], D_MODEL, D_MODEL)
    wk1, bk1 = linear_params(keys[1], D_MODEL, D_MODEL)
    wv1, bv1 = linear_params(keys[2], D_MODEL, D_MODEL)
    wo1, bo1 = linear_params(keys[3], D_MODEL, D_MODEL)
    # cross-attention linears
    wq2, bq2 = linear_params(keys[4], D_MODEL, D_MODEL)
    wk2, bk2 = linear_params(keys[5], D_MODEL, D_MODEL)
    wv2, bv2 = linear_params(keys[6], D_MODEL, D_MODEL)
    wo2, bo2 = linear_params(keys[7], D_MODEL, D_MODEL)
    # feed-forward linears
    w1, b1 = linear_params(keys[8], D_MODEL, D_FF)
    w2, b2 = linear_params(keys[9], D_FF, D_MODEL)

    params = (wq1, bq1, wk1, bk1, wv1, bv1, wo1, bo1,
              wq2, bq2, wk2, bk2, wv2, bv2, wo2, bo2,
              w1, b1, w2, b2)

    # Normalizator params: alpha=1, gamma=0 for each of the 3 residual connectors
    norm_params = jnp.array([[1.0, 0.0], [1.0, 0.0], [1.0, 0.0]], dtype=jnp.float32)

    # inputs (2-D, no batch dim, exactly as the PyTorch module expects)
    tgt = jax.random.normal(keys[10], (S_TGT, D_MODEL), jnp.float32)
    enc = jax.random.normal(keys[11], (S_SRC, D_MODEL), jnp.float32)
    cross_mask = jnp.tril(jnp.ones((S_TGT, S_SRC), jnp.float32))  # 0 => masked

    # one-time host-side prep (hoisted out of decoder_block): head-leading weight
    # stacks and the additive mask bias.
    prepped_params = prepare_decoder_params(params, num_heads=NUM_HEADS)
    prepped_params = jax.tree_util.tree_map(jax.block_until_ready, prepped_params)
    mask_bias = jnp.where(cross_mask == 0.0, NEG_INF, 0.0).astype(jnp.float32)

    # compute the pure-JAX reference BEFORE the kernel call (tgt is donated via
    # input_output_aliases and must not be read afterwards).
    ref = decoder_block_ref(tgt, enc, cross_mask, norm_params, params, num_heads=NUM_HEADS)
    ref = jax.block_until_ready(ref)

    out = decoder_block(tgt, enc, mask_bias, norm_params, prepped_params,
                        num_heads=NUM_HEADS)
    out = jax.block_until_ready(out)

    assert out.shape == (S_TGT, D_MODEL) and out.dtype == jnp.float32
    # exact division restored (approx reciprocal removed) and the reference uses
    # HIGHEST-precision matmuls -> tolerance tightened 10x vs the previous version
    # (small headroom kept for matmul accumulation-order differences).
    assert jnp.allclose(out, ref, rtol=2e-3, atol=2e-3), "mismatch vs pure-JAX reference"

    # TODO(synk): dropout layers are inference-mode identities (training_step/training_mode unused).
    print("KERNEL_OK")
</pallas_src>

<mosaic_0001>
module attributes {stable_mosaic.version = 11 : i64} {
  func.func @decoder_block_kernel(%arg0: memref<3x2xf32, #tpu.memory_space<smem>>, %arg1: memref<8x32xf32, #tpu.memory_space<vmem>>, %arg2: memref<8x32xf32, #tpu.memory_space<vmem>>, %arg3: memref<8x8xf32, #tpu.memory_space<vmem>>, %arg4: memref<4x32x8xf32, #tpu.memory_space<vmem>>, %arg5: memref<4x1x8xf32, #tpu.memory_space<vmem>>, %arg6: memref<4x32x8xf32, #tpu.memory_space<vmem>>, %arg7: memref<4x1x8xf32, #tpu.memory_space<vmem>>, %arg8: memref<4x32x8xf32, #tpu.memory_space<vmem>>, %arg9: memref<4x1x8xf32, #tpu.memory_space<vmem>>, %arg10: memref<4x8x32xf32, #tpu.memory_space<vmem>>, %arg11: memref<1x32xf32, #tpu.memory_space<vmem>>, %arg12: memref<4x32x8xf32, #tpu.memory_space<vmem>>, %arg13: memref<4x1x8xf32, #tpu.memory_space<vmem>>, %arg14: memref<4x32x8xf32, #tpu.memory_space<vmem>>, %arg15: memref<4x1x8xf32, #tpu.memory_space<vmem>>, %arg16: memref<4x32x8xf32, #tpu.memory_space<vmem>>, %arg17: memref<4x1x8xf32, #tpu.memory_space<vmem>>, %arg18: memref<4x8x32xf32, #tpu.memory_space<vmem>>, %arg19: memref<1x32xf32, #tpu.memory_space<vmem>>, %arg20: memref<32x64xf32, #tpu.memory_space<vmem>>, %arg21: memref<1x64xf32, #tpu.memory_space<vmem>>, %arg22: memref<64x32xf32, #tpu.memory_space<vmem>>, %arg23: memref<1x32xf32, #tpu.memory_space<vmem>>, %arg24: memref<8x32xf32, #tpu.memory_space<vmem>>) attributes {dimension_semantics = [], scalar_prefetch = 0 : i64, scratch_operands = 0 : i64, tpu.core_type = #tpu.core_type<tc>} {
    %c0 = arith.constant 0 : index
    %c0_0 = arith.constant 0 : index
    %0 = vector.load %arg1[%c0, %c0_0] : memref<8x32xf32, #tpu.memory_space<vmem>>, vector<8x32xf32>
    %c0_1 = arith.constant 0 : index
    %c0_2 = arith.constant 0 : index
    %1 = vector.load %arg2[%c0_1, %c0_2] : memref<8x32xf32, #tpu.memory_space<vmem>>, vector<8x32xf32>
    %c0_3 = arith.constant 0 : index
    %c0_4 = arith.constant 0 : index
    %2 = vector.load %arg3[%c0_3, %c0_4] : memref<8x8xf32, #tpu.memory_space<vmem>>, vector<8x8xf32>
    %c0_5 = arith.constant 0 : index
    %c0_6 = arith.constant 0 : index
    %3 = memref.load %arg0[%c0_5, %c0_6] : memref<3x2xf32, #tpu.memory_space<smem>>
    %c0_7 = arith.constant 0 : index
    %c1 = arith.constant 1 : index
    %4 = memref.load %arg0[%c0_7, %c1] : memref<3x2xf32, #tpu.memory_space<smem>>
    %cst = arith.constant dense<0.000000e+00> : vector<8xf32>
    %5 = vector.multi_reduction <add>, %0, %cst [1] : vector<8x32xf32> to vector<8xf32>
    %6 = vector.shape_cast %5 : vector<8xf32> to vector<8x1xf32>
    %cst_8 = arith.constant 3.200000e+01 : f32
    %7 = vector.broadcast %cst_8 : f32 to vector<8x1xf32>
    %8 = arith.divf %6, %7 : vector<8x1xf32>
    %9 = vector.broadcast %8 : vector<8x1xf32> to vector<8x32xf32>
    %10 = arith.subf %0, %9 : vector<8x32xf32>
    %11 = arith.mulf %10, %10 : vector<8x32xf32>
    %cst_9 = arith.constant dense<0.000000e+00> : vector<8xf32>
    %12 = vector.multi_reduction <add>, %11, %cst_9 [1] : vector<8x32xf32> to vector<8xf32>
    %13 = vector.shape_cast %12 : vector<8xf32> to vector<8x1xf32>
    %cst_10 = arith.constant 3.100000e+01 : f32
    %14 = vector.broadcast %cst_10 : f32 to vector<8x1xf32>
    %15 = arith.divf %13, %14 : vector<8x1xf32>
    %16 = math.sqrt %15 : vector<8x1xf32>
    %17 = vector.broadcast %8 : vector<8x1xf32> to vector<8x32xf32>
    %18 = arith.subf %0, %17 : vector<8x32xf32>
    %19 = vector.broadcast %3 : f32 to vector<8x32xf32>
    %20 = arith.mulf %19, %18 : vector<8x32xf32>
    %cst_11 = arith.constant 9.99999997E-7 : f32
    %21 = vector.broadcast %cst_11 : f32 to vector<8x1xf32>
    %22 = arith.addf %16, %21 : vector<8x1xf32>
    %23 = vector.broadcast %22 : vector<8x1xf32> to vector<8x32xf32>
    %24 = arith.divf %20, %23 : vector<8x32xf32>
    %25 = vector.broadcast %4 : f32 to vector<8x32xf32>
    %26 = arith.addf %24, %25 : vector<8x32xf32>
    %cst_12 = arith.constant 0.000000e+00 : f32
    %27 = vector.broadcast %cst_12 : f32 to vector<8x32xf32>
    %c0_13 = arith.constant 0 : index
    %c0_14 = arith.constant 0 : index
    %c0_15 = arith.constant 0 : index
    %28 = vector.load %arg4[%c0_13, %c0_14, %c0_15] : memref<4x32x8xf32, #tpu.memory_space<vmem>>, vector<1x32x8xf32>
    %29 = vector.shape_cast %28 : vector<1x32x8xf32> to vector<32x8xf32>
    %cst_16 = arith.constant dense<0.000000e+00> : vector<8x8xf32>
    %30 = tpu.matmul %26, %29, %cst_16 {dimension_numbers = #tpu.dot_dimension_numbers<[1], [0], [0], [1], [0, 0, 1, 1], [], []>} : vector<8x32xf32>, vector<32x8xf32>, vector<8x8xf32> -> vector<8x8xf32>
    %c0_17 = arith.constant 0 : index
    %c0_18 = arith.constant 0 : index
    %c0_19 = arith.constant 0 : index
    %31 = vector.load %arg5[%c0_17, %c0_18, %c0_19] : memref<4x1x8xf32, #tpu.memory_space<vmem>>, vector<1x1x8xf32>
    %32 = vector.shape_cast %31 : vector<1x1x8xf32> to vector<1x8xf32>
    %33 = vector.broadcast %32 : vector<1x8xf32> to vector<8x8xf32>
    %34 = arith.addf %30, %33 : vector<8x8xf32>
    %c0_20 = arith.constant 0 : index
    %c0_21 = arith.constant 0 : index
    %c0_22 = arith.constant 0 : index
    %35 = vector.load %arg6[%c0_20, %c0_21, %c0_22] : memref<4x32x8xf32, #tpu.memory_space<vmem>>, vector<1x32x8xf32>
    %36 = vector.shape_cast %35 : vector<1x32x8xf32> to vector<32x8xf32>
    %cst_23 = arith.constant dense<0.000000e+00> : vector<8x8xf32>
    %37 = tpu.matmul %26, %36, %cst_23 {dimension_numbers = #tpu.dot_dimension_numbers<[1], [0], [0], [1], [0, 0, 1, 1], [], []>} : vector<8x32xf32>, vector<32x8xf32>, vector<8x8xf32> -> vector<8x8xf32>
    %c0_24 = arith.constant 0 : index
    %c0_25 = arith.constant 0 : index
    %c0_26 = arith.constant 0 : index
    %38 = vector.load %arg7[%c0_24, %c0_25, %c0_26] : memref<4x1x8xf32, #tpu.memory_space<vmem>>, vector<1x1x8xf32>
    %39 = vector.shape_cast %38 : vector<1x1x8xf32> to vector<1x8xf32>
    %40 = vector.broadcast %39 : vector<1x8xf32> to vector<8x8xf32>
    %41 = arith.addf %37, %40 : vector<8x8xf32>
    %c0_27 = arith.constant 0 : index
    %c0_28 = arith.constant 0 : index
    %c0_29 = arith.constant 0 : index
    %42 = vector.load %arg8[%c0_27, %c0_28, %c0_29] : memref<4x32x8xf32, #tpu.memory_space<vmem>>, vector<1x32x8xf32>
    %43 = vector.shape_cast %42 : vector<1x32x8xf32> to vector<32x8xf32>
    %cst_30 = arith.constant dense<0.000000e+00> : vector<8x8xf32>
    %44 = tpu.matmul %26, %43, %cst_30 {dimension_numbers = #tpu.dot_dimension_numbers<[1], [0], [0], [1], [0, 0, 1, 1], [], []>} : vector<8x32xf32>, vector<32x8xf32>, vector<8x8xf32> -> vector<8x8xf32>
    %c0_31 = arith.constant 0 : index
    %c0_32 = arith.constant 0 : index
    %c0_33 = arith.constant 0 : index
    %45 = vector.load %arg9[%c0_31, %c0_32, %c0_33] : memref<4x1x8xf32, #tpu.memory_space<vmem>>, vector<1x1x8xf32>
    %46 = vector.shape_cast %45 : vector<1x1x8xf32> to vector<1x8xf32>
    %47 = vector.broadcast %46 : vector<1x8xf32> to vector<8x8xf32>
    %48 = arith.addf %44, %47 : vector<8x8xf32>
    %cst_34 = arith.constant dense<0.000000e+00> : vector<8x8xf32>
    %49 = tpu.matmul %34, %41, %cst_34 {dimension_numbers = #tpu.dot_dimension_numbers<[1], [1], [0], [0], [0, 0, 1, 0], [], []>} : vector<8x8xf32>, vector<8x8xf32>, vector<8x8xf32> -> vector<8x8xf32>
    %cst_35 = arith.constant 0.353553385 : f32
    %50 = vector.broadcast %cst_35 : f32 to vector<8x8xf32>
    %51 = arith.mulf %49, %50 : vector<8x8xf32>
    %cst_36 = arith.constant dense<0xFF800000> : vector<8xf32>
    %52 = vector.multi_reduction <maximumf>, %51, %cst_36 [1] : vector<8x8xf32> to vector<8xf32>
    %53 = vector.shape_cast %52 : vector<8xf32> to vector<8x1xf32>
    %54 = vector.broadcast %53 : vector<8x1xf32> to vector<8x8xf32>
    %55 = arith.subf %51, %54 : vector<8x8xf32>
    %56 = math.exp %55 : vector<8x8xf32>
    %cst_37 = arith.constant dense<0.000000e+00> : vector<8xf32>
    %57 = vector.multi_reduction <add>, %56, %cst_37 [1] : vector<8x8xf32> to vector<8xf32>
    %58 = vector.shape_cast %57 : vector<8xf32> to vector<8x1xf32>
    %59 = vector.broadcast %58 : vector<8x1xf32> to vector<8x8xf32>
    %60 = arith.divf %56, %59 : vector<8x8xf32>
    %cst_38 = arith.constant dense<0.000000e+00> : vector<8x8xf32>
    %61 = tpu.matmul %60, %48, %cst_38 {dimension_numbers = #tpu.dot_dimension_numbers<[1], [0], [0], [1], [0, 0, 1, 1], [], []>} : vector<8x8xf32>, vector<8x8xf32>, vector<8x8xf32> -> vector<8x8xf32>
    %c0_39 = arith.constant 0 : index
    %c0_40 = arith.constant 0 : index
    %c0_41 = arith.constant 0 : index
    %62 = vector.load %arg10[%c0_39, %c0_40, %c0_41] : memref<4x8x32xf32, #tpu.memory_space<vmem>>, vector<1x8x32xf32>
    %63 = vector.shape_cast %62 : vector<1x8x32xf32> to vector<8x32xf32>
    %cst_42 = arith.constant dense<0.000000e+00> : vector<8x32xf32>
    %64 = tpu.matmul %61, %63, %cst_42 {dimension_numbers = #tpu.dot_dimension_numbers<[1], [0], [0], [1], [0, 0, 1, 1], [], []>} : vector<8x8xf32>, vector<8x32xf32>, vector<8x32xf32> -> vector<8x32xf32>
    %65 = arith.addf %27, %64 : vector<8x32xf32>
    %c1_43 = arith.constant 1 : index
    %c0_44 = arith.constant 0 : index
    %c0_45 = arith.constant 0 : index
    %66 = vector.load %arg4[%c1_43, %c0_44, %c0_45] : memref<4x32x8xf32, #tpu.memory_space<vmem>>, vector<1x32x8xf32>
    %67 = vector.shape_cast %66 : vector<1x32x8xf32> to vector<32x8xf32>
    %cst_46 = arith.constant dense<0.000000e+00> : vector<8x8xf32>
    %68 = tpu.matmul %26, %67, %cst_46 {dimension_numbers = #tpu.dot_dimension_numbers<[1], [0], [0], [1], [0, 0, 1, 1], [], []>} : vector<8x32xf32>, vector<32x8xf32>, vector<8x8xf32> -> vector<8x8xf32>
    %c1_47 = arith.constant 1 : index
    %c0_48 = arith.constant 0 : index
    %c0_49 = arith.constant 0 : index
    %69 = vector.load %arg5[%c1_47, %c0_48, %c0_49] : memref<4x1x8xf32, #tpu.memory_space<vmem>>, vector<1x1x8xf32>
    %70 = vector.shape_cast %69 : vector<1x1x8xf32> to vector<1x8xf32>
    %71 = vector.broadcast %70 : vector<1x8xf32> to vector<8x8xf32>
    %72 = arith.addf %68, %71 : vector<8x8xf32>
    %c1_50 = arith.constant 1 : index
    %c0_51 = arith.constant 0 : index
    %c0_52 = arith.constant 0 : index
    %73 = vector.load %arg6[%c1_50, %c0_51, %c0_52] : memref<4x32x8xf32, #tpu.memory_space<vmem>>, vector<1x32x8xf32>
    %74 = vector.shape_cast %73 : vector<1x32x8xf32> to vector<32x8xf32>
    %cst_53 = arith.constant dense<0.000000e+00> : vector<8x8xf32>
    %75 = tpu.matmul %26, %74, %cst_53 {dimension_numbers = #tpu.dot_dimension_numbers<[1], [0], [0], [1], [0, 0, 1, 1], [], []>} : vector<8x32xf32>, vector<32x8xf32>, vector<8x8xf32> -> vector<8x8xf32>
    %c1_54 = arith.constant 1 : index
    %c0_55 = arith.constant 0 : index
    %c0_56 = arith.constant 0 : index
    %76 = vector.load %arg7[%c1_54, %c0_55, %c0_56] : memref<4x1x8xf32, #tpu.memory_space<vmem>>, vector<1x1x8xf32>
    %77 = vector.shape_cast %76 : vector<1x1x8xf32> to vector<1x8xf32>
    %78 = vector.broadcast %77 : vector<1x8xf32> to vector<8x8xf32>
    %79 = arith.addf %75, %78 : vector<8x8xf32>
    %c1_57 = arith.constant 1 : index
    %c0_58 = arith.constant 0 : index
    %c0_59 = arith.constant 0 : index
    %80 = vector.load %arg8[%c1_57, %c0_58, %c0_59] : memref<4x32x8xf32, #tpu.memory_space<vmem>>, vector<1x32x8xf32>
    %81 = vector.shape_cast %80 : vector<1x32x8xf32> to vector<32x8xf32>
    %cst_60 = arith.constant dense<0.000000e+00> : vector<8x8xf32>
    %82 = tpu.matmul %26, %81, %cst_60 {dimension_numbers = #tpu.dot_dimension_numbers<[1], [0], [0], [1], [0, 0, 1, 1], [], []>} : vector<8x32xf32>, vector<32x8xf32>, vector<8x8xf32> -> vector<8x8xf32>
    %c1_61 = arith.constant 1 : index
    %c0_62 = arith.constant 0 : index
    %c0_63 = arith.constant 0 : index
    %83 = vector.load %arg9[%c1_61, %c0_62, %c0_63] : memref<4x1x8xf32, #tpu.memory_space<vmem>>, vector<1x1x8xf32>
    %84 = vector.shape_cast %83 : vector<1x1x8xf32> to vector<1x8xf32>
    %85 = vector.broadcast %84 : vector<1x8xf32> to vector<8x8xf32>
    %86 = arith.addf %82, %85 : vector<8x8xf32>
    %cst_64 = arith.constant dense<0.000000e+00> : vector<8x8xf32>
    %87 = tpu.matmul %72, %79, %cst_64 {dimension_numbers = #tpu.dot_dimension_numbers<[1], [1], [0], [0], [0, 0, 1, 0], [], []>} : vector<8x8xf32>, vector<8x8xf32>, vector<8x8xf32> -> vector<8x8xf32>
    %cst_65 = arith.constant 0.353553385 : f32
    %88 = vector.broadcast %cst_65 : f32 to vector<8x8xf32>
    %89 = arith.mulf %87, %88 : vector<8x8xf32>
    %cst_66 = arith.constant dense<0xFF800000> : vector<8xf32>
    %90 = vector.multi_reduction <maximumf>, %89, %cst_66 [1] : vector<8x8xf32> to vector<8xf32>
    %91 = vector.shape_cast %90 : vector<8xf32> to vector<8x1xf32>
    %92 = vector.broadcast %91 : vector<8x1xf32> to vector<8x8xf32>
    %93 = arith.subf %89, %92 : vector<8x8xf32>
    %94 = math.exp %93 : vector<8x8xf32>
    %cst_67 = arith.constant dense<0.000000e+00> : vector<8xf32>
    %95 = vector.multi_reduction <add>, %94, %cst_67 [1] : vector<8x8xf32> to vector<8xf32>
    %96 = vector.shape_cast %95 : vector<8xf32> to vector<8x1xf32>
    %97 = vector.broadcast %96 : vector<8x1xf32> to vector<8x8xf32>
    %98 = arith.divf %94, %97 : vector<8x8xf32>
    %cst_68 = arith.constant dense<0.000000e+00> : vector<8x8xf32>
    %99 = tpu.matmul %98, %86, %cst_68 {dimension_numbers = #tpu.dot_dimension_numbers<[1], [0], [0], [1], [0, 0, 1, 1], [], []>} : vector<8x8xf32>, vector<8x8xf32>, vector<8x8xf32> -> vector<8x8xf32>
    %c1_69 = arith.constant 1 : index
    %c0_70 = arith.constant 0 : index
    %c0_71 = arith.constant 0 : index
    %100 = vector.load %arg10[%c1_69, %c0_70, %c0_71] : memref<4x8x32xf32, #tpu.memory_space<vmem>>, vector<1x8x32xf32>
    %101 = vector.shape_cast %100 : vector<1x8x32xf32> to vector<8x32xf32>
    %cst_72 = arith.constant dense<0.000000e+00> : vector<8x32xf32>
    %102 = tpu.matmul %99, %101, %cst_72 {dimension_numbers = #tpu.dot_dimension_numbers<[1], [0], [0], [1], [0, 0, 1, 1], [], []>} : vector<8x8xf32>, vector<8x32xf32>, vector<8x32xf32> -> vector<8x32xf32>
    %103 = arith.addf %65, %102 : vector<8x32xf32>
    %c2 = arith.constant 2 : index
    %c0_73 = arith.constant 0 : index
    %c0_74 = arith.constant 0 : index
    %104 = vector.load %arg4[%c2, %c0_73, %c0_74] : memref<4x32x8xf32, #tpu.memory_space<vmem>>, vector<1x32x8xf32>
    %105 = vector.shape_cast %104 : vector<1x32x8xf32> to vector<32x8xf32>
    %cst_75 = arith.constant dense<0.000000e+00> : vector<8x8xf32>
    %106 = tpu.matmul %26, %105, %cst_75 {dimension_numbers = #tpu.dot_dimension_numbers<[1], [0], [0], [1], [0, 0, 1, 1], [], []>} : vector<8x32xf32>, vector<32x8xf32>, vector<8x8xf32> -> vector<8x8xf32>
    %c2_76 = arith.constant 2 : index
    %c0_77 = arith.constant 0 : index
    %c0_78 = arith.constant 0 : index
    %107 = vector.load %arg5[%c2_76, %c0_77, %c0_78] : memref<4x1x8xf32, #tpu.memory_space<vmem>>, vector<1x1x8xf32>
    %108 = vector.shape_cast %107 : vector<1x1x8xf32> to vector<1x8xf32>
    %109 = vector.broadcast %108 : vector<1x8xf32> to vector<8x8xf32>
    %110 = arith.addf %106, %109 : vector<8x8xf32>
    %c2_79 = arith.constant 2 : index
    %c0_80 = arith.constant 0 : index
    %c0_81 = arith.constant 0 : index
    %111 = vector.load %arg6[%c2_79, %c0_80, %c0_81] : memref<4x32x8xf32, #tpu.memory_space<vmem>>, vector<1x32x8xf32>
    %112 = vector.shape_cast %111 : vector<1x32x8xf32> to vector<32x8xf32>
    %cst_82 = arith.constant dense<0.000000e+00> : vector<8x8xf32>
    %113 = tpu.matmul %26, %112, %cst_82 {dimension_numbers = #tpu.dot_dimension_numbers<[1], [0], [0], [1], [0, 0, 1, 1], [], []>} : vector<8x32xf32>, vector<32x8xf32>, vector<8x8xf32> -> vector<8x8xf32>
    %c2_83 = arith.constant 2 : index
    %c0_84 = arith.constant 0 : index
    %c0_85 = arith.constant 0 : index
    %114 = vector.load %arg7[%c2_83, %c0_84, %c0_85] : memref<4x1x8xf32, #tpu.memory_space<vmem>>, vector<1x1x8xf32>
    %115 = vector.shape_cast %114 : vector<1x1x8xf32> to vector<1x8xf32>
    %116 = vector.broadcast %115 : vector<1x8xf32> to vector<8x8xf32>
    %117 = arith.addf %113, %116 : vector<8x8xf32>
    %c2_86 = arith.constant 2 : index
    %c0_87 = arith.constant 0 : index
    %c0_88 = arith.constant 0 : index
    %118 = vector.load %arg8[%c2_86, %c0_87, %c0_88] : memref<4x32x8xf32, #tpu.memory_space<vmem>>, vector<1x32x8xf32>
    %119 = vector.shape_cast %118 : vector<1x32x8xf32> to vector<32x8xf32>
    %cst_89 = arith.constant dense<0.000000e+00> : vector<8x8xf32>
    %120 = tpu.matmul %26, %119, %cst_89 {dimension_numbers = #tpu.dot_dimension_numbers<[1], [0], [0], [1], [0, 0, 1, 1], [], []>} : vector<8x32xf32>, vector<32x8xf32>, vector<8x8xf32> -> vector<8x8xf32>
    %c2_90 = arith.constant 2 : index
    %c0_91 = arith.constant 0 : index
    %c0_92 = arith.constant 0 : index
    %121 = vector.load %arg9[%c2_90, %c0_91, %c0_92] : memref<4x1x8xf32, #tpu.memory_space<vmem>>, vector<1x1x8xf32>
    %122 = vector.shape_cast %121 : vector<1x1x8xf32> to vector<1x8xf32>
    %123 = vector.broadcast %122 : vector<1x8xf32> to vector<8x8xf32>
    %124 = arith.addf %120, %123 : vector<8x8xf32>
    %cst_93 = arith.constant dense<0.000000e+00> : vector<8x8xf32>
    %125 = tpu.matmul %110, %117, %cst_93 {dimension_numbers = #tpu.dot_dimension_numbers<[1], [1], [0], [0], [0, 0, 1, 0], [], []>} : vector<8x8xf32>, vector<8x8xf32>, vector<8x8xf32> -> vector<8x8xf32>
    %cst_94 = arith.constant 0.353553385 : f32
    %126 = vector.broadcast %cst_94 : f32 to vector<8x8xf32>
    %127 = arith.mulf %125, %126 : vector<8x8xf32>
    %cst_95 = arith.constant dense<0xFF800000> : vector<8xf32>
    %128 = vector.multi_reduction <maximumf>, %127, %cst_95 [1] : vector<8x8xf32> to vector<8xf32>
    %129 = vector.shape_cast %128 : vector<8xf32> to vector<8x1xf32>
    %130 = vector.broadcast %129 : vector<8x1xf32> to vector<8x8xf32>
    %131 = arith.subf %127, %130 : vector<8x8xf32>
    %132 = math.exp %131 : vector<8x8xf32>
    %cst_96 = arith.constant dense<0.000000e+00> : vector<8xf32>
    %133 = vector.multi_reduction <add>, %132, %cst_96 [1] : vector<8x8xf32> to vector<8xf32>
    %134 = vector.shape_cast %133 : vector<8xf32> to vector<8x1xf32>
    %135 = vector.broadcast %134 : vector<8x1xf32> to vector<8x8xf32>
    %136 = arith.divf %132, %135 : vector<8x8xf32>
    %cst_97 = arith.constant dense<0.000000e+00> : vector<8x8xf32>
    %137 = tpu.matmul %136, %124, %cst_97 {dimension_numbers = #tpu.dot_dimension_numbers<[1], [0], [0], [1], [0, 0, 1, 1], [], []>} : vector<8x8xf32>, vector<8x8xf32>, vector<8x8xf32> -> vector<8x8xf32>
    %c2_98 = arith.constant 2 : index
    %c0_99 = arith.constant 0 : index
    %c0_100 = arith.constant 0 : index
    %138 = vector.load %arg10[%c2_98, %c0_99, %c0_100] : memref<4x8x32xf32, #tpu.memory_space<vmem>>, vector<1x8x32xf32>
    %139 = vector.shape_cast %138 : vector<1x8x32xf32> to vector<8x32xf32>
    %cst_101 = arith.constant dense<0.000000e+00> : vector<8x32xf32>
    %140 = tpu.matmul %137, %139, %cst_101 {dimension_numbers = #tpu.dot_dimension_numbers<[1], [0], [0], [1], [0, 0, 1, 1], [], []>} : vector<8x8xf32>, vector<8x32xf32>, vector<8x32xf32> -> vector<8x32xf32>
    %141 = arith.addf %103, %140 : vector<8x32xf32>
    %c3 = arith.constant 3 : index
    %c0_102 = arith.constant 0 : index
    %c0_103 = arith.constant 0 : index
    %142 = vector.load %arg4[%c3, %c0_102, %c0_103] : memref<4x32x8xf32, #tpu.memory_space<vmem>>, vector<1x32x8xf32>
    %143 = vector.shape_cast %142 : vector<1x32x8xf32> to vector<32x8xf32>
    %cst_104 = arith.constant dense<0.000000e+00> : vector<8x8xf32>
    %144 = tpu.matmul %26, %143, %cst_104 {dimension_numbers = #tpu.dot_dimension_numbers<[1], [0], [0], [1], [0, 0, 1, 1], [], []>} : vector<8x32xf32>, vector<32x8xf32>, vector<8x8xf32> -> vector<8x8xf32>
    %c3_105 = arith.constant 3 : index
    %c0_106 = arith.constant 0 : index
    %c0_107 = arith.constant 0 : index
    %145 = vector.load %arg5[%c3_105, %c0_106, %c0_107] : memref<4x1x8xf32, #tpu.memory_space<vmem>>, vector<1x1x8xf32>
    %146 = vector.shape_cast %145 : vector<1x1x8xf32> to vector<1x8xf32>
    %147 = vector.broadcast %146 : vector<1x8xf32> to vector<8x8xf32>
    %148 = arith.addf %144, %147 : vector<8x8xf32>
    %c3_108 = arith.constant 3 : index
    %c0_109 = arith.constant 0 : index
    %c0_110 = arith.constant 0 : index
    %149 = vector.load %arg6[%c3_108, %c0_109, %c0_110] : memref<4x32x8xf32, #tpu.memory_space<vmem>>, vector<1x32x8xf32>
    %150 = vector.shape_cast %149 : vector<1x32x8xf32> to vector<32x8xf32>
    %cst_111 = arith.constant dense<0.000000e+00> : vector<8x8xf32>
    %151 = tpu.matmul %26, %150, %cst_111 {dimension_numbers = #tpu.dot_dimension_numbers<[1], [0], [0], [1], [0, 0, 1, 1], [], []>} : vector<8x32xf32>, vector<32x8xf32>, vector<8x8xf32> -> vector<8x8xf32>
    %c3_112 = arith.constant 3 : index
    %c0_113 = arith.constant 0 : index
    %c0_114 = arith.constant 0 : index
    %152 = vector.load %arg7[%c3_112, %c0_113, %c0_114] : memref<4x1x8xf32, #tpu.memory_space<vmem>>, vector<1x1x8xf32>
    %153 = vector.shape_cast %152 : vector<1x1x8xf32> to vector<1x8xf32>
    %154 = vector.broadcast %153 : vector<1x8xf32> to vector<8x8xf32>
    %155 = arith.addf %151, %154 : vector<8x8xf32>
    %c3_115 = arith.constant 3 : index
    %c0_116 = arith.constant 0 : index
    %c0_117 = arith.constant 0 : index
    %156 = vector.load %arg8[%c3_115, %c0_116, %c0_117] : memref<4x32x8xf32, #tpu.memory_space<vmem>>, vector<1x32x8xf32>
    %157 = vector.shape_cast %156 : vector<1x32x8xf32> to vector<32x8xf32>
    %cst_118 = arith.constant dense<0.000000e+00> : vector<8x8xf32>
    %158 = tpu.matmul %26, %157, %cst_118 {dimension_numbers = #tpu.dot_dimension_numbers<[1], [0], [0], [1], [0, 0, 1, 1], [], []>} : vector<8x32xf32>, vector<32x8xf32>, vector<8x8xf32> -> vector<8x8xf32>
    %c3_119 = arith.constant 3 : index
    %c0_120 = arith.constant 0 : index
    %c0_121 = arith.constant 0 : index
    %159 = vector.load %arg9[%c3_119, %c0_120, %c0_121] : memref<4x1x8xf32, #tpu.memory_space<vmem>>, vector<1x1x8xf32>
    %160 = vector.shape_cast %159 : vector<1x1x8xf32> to vector<1x8xf32>
    %161 = vector.broadcast %160 : vector<1x8xf32> to vector<8x8xf32>
    %162 = arith.addf %158, %161 : vector<8x8xf32>
    %cst_122 = arith.constant dense<0.000000e+00> : vector<8x8xf32>
    %163 = tpu.matmul %148, %155, %cst_122 {dimension_numbers = #tpu.dot_dimension_numbers<[1], [1], [0], [0], [0, 0, 1, 0], [], []>} : vector<8x8xf32>, vector<8x8xf32>, vector<8x8xf32> -> vector<8x8xf32>
    %cst_123 = arith.constant 0.353553385 : f32
    %164 = vector.broadcast %cst_123 : f32 to vector<8x8xf32>
    %165 = arith.mulf %163, %164 : vector<8x8xf32>
    %cst_124 = arith.constant dense<0xFF800000> : vector<8xf32>
    %166 = vector.multi_reduction <maximumf>, %165, %cst_124 [1] : vector<8x8xf32> to vector<8xf32>
    %167 = vector.shape_cast %166 : vector<8xf32> to vector<8x1xf32>
    %168 = vector.broadcast %167 : vector<8x1xf32> to vector<8x8xf32>
    %169 = arith.subf %165, %168 : vector<8x8xf32>
    %170 = math.exp %169 : vector<8x8xf32>
    %cst_125 = arith.constant dense<0.000000e+00> : vector<8xf32>
    %171 = vector.multi_reduction <add>, %170, %cst_125 [1] : vector<8x8xf32> to vector<8xf32>
    %172 = vector.shape_cast %171 : vector<8xf32> to vector<8x1xf32>
    %173 = vector.broadcast %172 : vector<8x1xf32> to vector<8x8xf32>
    %174 = arith.divf %170, %173 : vector<8x8xf32>
    %cst_126 = arith.constant dense<0.000000e+00> : vector<8x8xf32>
    %175 = tpu.matmul %174, %162, %cst_126 {dimension_numbers = #tpu.dot_dimension_numbers<[1], [0], [0], [1], [0, 0, 1, 1], [], []>} : vector<8x8xf32>, vector<8x8xf32>, vector<8x8xf32> -> vector<8x8xf32>
    %c3_127 = arith.constant 3 : index
    %c0_128 = arith.constant 0 : index
    %c0_129 = arith.constant 0 : index
    %176 = vector.load %arg10[%c3_127, %c0_128, %c0_129] : memref<4x8x32xf32, #tpu.memory_space<vmem>>, vector<1x8x32xf32>
    %177 = vector.shape_cast %176 : vector<1x8x32xf32> to vector<8x32xf32>
    %cst_130 = arith.constant dense<0.000000e+00> : vector<8x32xf32>
    %178 = tpu.matmul %175, %177, %cst_130 {dimension_numbers = #tpu.dot_dimension_numbers<[1], [0], [0], [1], [0, 0, 1, 1], [], []>} : vector<8x8xf32>, vector<8x32xf32>, vector<8x32xf32> -> vector<8x32xf32>
    %179 = arith.addf %141, %178 : vector<8x32xf32>
    %c0_131 = arith.constant 0 : index
    %c0_132 = arith.constant 0 : index
    %180 = vector.load %arg11[%c0_131, %c0_132] : memref<1x32xf32, #tpu.memory_space<vmem>>, vector<1x32xf32>
    %181 = vector.broadcast %180 : vector<1x32xf32> to vector<8x32xf32>
    %182 = arith.addf %179, %181 : vector<8x32xf32>
    %183 = arith.addf %0, %182 : vector<8x32xf32>
    %c1_133 = arith.constant 1 : index
    %c0_134 = arith.constant 0 : index
    %184 = memref.load %arg0[%c1_133, %c0_134] : memref<3x2xf32, #tpu.memory_space<smem>>
    %c1_135 = arith.constant 1 : index
    %c1_136 = arith.constant 1 : index
    %185 = memref.load %arg0[%c1_135, %c1_136] : memref<3x2xf32, #tpu.memory_space<smem>>
    %cst_137 = arith.constant dense<0.000000e+00> : vector<8xf32>
    %186 = vector.multi_reduction <add>, %183, %cst_137 [1] : vector<8x32xf32> to vector<8xf32>
    %187 = vector.shape_cast %186 : vector<8xf32> to vector<8x1xf32>
    %cst_138 = arith.constant 3.200000e+01 : f32
    %188 = vector.broadcast %cst_138 : f32 to vector<8x1xf32>
    %189 = arith.divf %187, %188 : vector<8x1xf32>
    %190 = vector.broadcast %189 : vector<8x1xf32> to vector<8x32xf32>
    %191 = arith.subf %183, %190 : vector<8x32xf32>
    %192 = arith.mulf %191, %191 : vector<8x32xf32>
    %cst_139 = arith.constant dense<0.000000e+00> : vector<8xf32>
    %193 = vector.multi_reduction <add>, %192, %cst_139 [1] : vector<8x32xf32> to vector<8xf32>
    %194 = vector.shape_cast %193 : vector<8xf32> to vector<8x1xf32>
    %cst_140 = arith.constant 3.100000e+01 : f32
    %195 = vector.broadcast %cst_140 : f32 to vector<8x1xf32>
    %196 = arith.divf %194, %195 : vector<8x1xf32>
    %197 = math.sqrt %196 : vector<8x1xf32>
    %198 = vector.broadcast %189 : vector<8x1xf32> to vector<8x32xf32>
    %199 = arith.subf %183, %198 : vector<8x32xf32>
    %200 = vector.broadcast %184 : f32 to vector<8x32xf32>
    %201 = arith.mulf %200, %199 : vector<8x32xf32>
    %cst_141 = arith.constant 9.99999997E-7 : f32
    %202 = vector.broadcast %cst_141 : f32 to vector<8x1xf32>
    %203 = arith.addf %197, %202 : vector<8x1xf32>
    %204 = vector.broadcast %203 : vector<8x1xf32> to vector<8x32xf32>
    %205 = arith.divf %201, %204 : vector<8x32xf32>
    %206 = vector.broadcast %185 : f32 to vector<8x32xf32>
    %207 = arith.addf %205, %206 : vector<8x32xf32>
    %cst_142 = arith.constant 0.000000e+00 : f32
    %208 = vector.broadcast %cst_142 : f32 to vector<8x32xf32>
    %c0_143 = arith.constant 0 : index
    %c0_144 = arith.constant 0 : index
    %c0_145 = arith.constant 0 : index
    %209 = vector.load %arg12[%c0_143, %c0_144, %c0_145] : memref<4x32x8xf32, #tpu.memory_space<vmem>>, vector<1x32x8xf32>
    %210 = vector.shape_cast %209 : vector<1x32x8xf32> to vector<32x8xf32>
    %cst_146 = arith.constant dense<0.000000e+00> : vector<8x8xf32>
    %211 = tpu.matmul %207, %210, %cst_146 {dimension_numbers = #tpu.dot_dimension_numbers<[1], [0], [0], [1], [0, 0, 1, 1], [], []>} : vector<8x32xf32>, vector<32x8xf32>, vector<8x8xf32> -> vector<8x8xf32>
    %c0_147 = arith.constant 0 : index
    %c0_148 = arith.constant 0 : index
    %c0_149 = arith.constant 0 : index
    %212 = vector.load %arg13[%c0_147, %c0_148, %c0_149] : memref<4x1x8xf32, #tpu.memory_space<vmem>>, vector<1x1x8xf32>
    %213 = vector.shape_cast %212 : vector<1x1x8xf32> to vector<1x8xf32>
    %214 = vector.broadcast %213 : vector<1x8xf32> to vector<8x8xf32>
    %215 = arith.addf %211, %214 : vector<8x8xf32>
    %c0_150 = arith.constant 0 : index
    %c0_151 = arith.constant 0 : index
    %c0_152 = arith.constant 0 : index
    %216 = vector.load %arg14[%c0_150, %c0_151, %c0_152] : memref<4x32x8xf32, #tpu.memory_space<vmem>>, vector<1x32x8xf32>
    %217 = vector.shape_cast %216 : vector<1x32x8xf32> to vector<32x8xf32>
    %cst_153 = arith.constant dense<0.000000e+00> : vector<8x8xf32>
    %218 = tpu.matmul %1, %217, %cst_153 {dimension_numbers = #tpu.dot_dimension_numbers<[1], [0], [0], [1], [0, 0, 1, 1], [], []>} : vector<8x32xf32>, vector<32x8xf32>, vector<8x8xf32> -> vector<8x8xf32>
    %c0_154 = arith.constant 0 : index
    %c0_155 = arith.constant 0 : index
    %c0_156 = arith.constant 0 : index
    %219 = vector.load %arg15[%c0_154, %c0_155, %c0_156] : memref<4x1x8xf32, #tpu.memory_space<vmem>>, vector<1x1x8xf32>
    %220 = vector.shape_cast %219 : vector<1x1x8xf32> to vector<1x8xf32>
    %221 = vector.broadcast %220 : vector<1x8xf32> to vector<8x8xf32>
    %222 = arith.addf %218, %221 : vector<8x8xf32>
    %c0_157 = arith.constant 0 : index
    %c0_158 = arith.constant 0 : index
    %c0_159 = arith.constant 0 : index
    %223 = vector.load %arg16[%c0_157, %c0_158, %c0_159] : memref<4x32x8xf32, #tpu.memory_space<vmem>>, vector<1x32x8xf32>
    %224 = vector.shape_cast %223 : vector<1x32x8xf32> to vector<32x8xf32>
    %cst_160 = arith.constant dense<0.000000e+00> : vector<8x8xf32>
    %225 = tpu.matmul %1, %224, %cst_160 {dimension_numbers = #tpu.dot_dimension_numbers<[1], [0], [0], [1], [0, 0, 1, 1], [], []>} : vector<8x32xf32>, vector<32x8xf32>, vector<8x8xf32> -> vector<8x8xf32>
    %c0_161 = arith.constant 0 : index
    %c0_162 = arith.constant 0 : index
    %c0_163 = arith.constant 0 : index
    %226 = vector.load %arg17[%c0_161, %c0_162, %c0_163] : memref<4x1x8xf32, #tpu.memory_space<vmem>>, vector<1x1x8xf32>
    %227 = vector.shape_cast %226 : vector<1x1x8xf32> to vector<1x8xf32>
    %228 = vector.broadcast %227 : vector<1x8xf32> to vector<8x8xf32>
    %229 = arith.addf %225, %228 : vector<8x8xf32>
    %cst_164 = arith.constant dense<0.000000e+00> : vector<8x8xf32>
    %230 = tpu.matmul %215, %222, %cst_164 {dimension_numbers = #tpu.dot_dimension_numbers<[1], [1], [0], [0], [0, 0, 1, 0], [], []>} : vector<8x8xf32>, vector<8x8xf32>, vector<8x8xf32> -> vector<8x8xf32>
    %cst_165 = arith.constant 0.353553385 : f32
    %231 = vector.broadcast %cst_165 : f32 to vector<8x8xf32>
    %232 = arith.mulf %230, %231 : vector<8x8xf32>
    %233 = arith.addf %232, %2 : vector<8x8xf32>
    %cst_166 = arith.constant dense<0xFF800000> : vector<8xf32>
    %234 = vector.multi_reduction <maximumf>, %233, %cst_166 [1] : vector<8x8xf32> to vector<8xf32>
    %235 = vector.shape_cast %234 : vector<8xf32> to vector<8x1xf32>
    %236 = vector.broadcast %235 : vector<8x1xf32> to vector<8x8xf32>
    %237 = arith.subf %233, %236 : vector<8x8xf32>
    %238 = math.exp %237 : vector<8x8xf32>
    %cst_167 = arith.constant dense<0.000000e+00> : vector<8xf32>
    %239 = vector.multi_reduction <add>, %238, %cst_167 [1] : vector<8x8xf32> to vector<8xf32>
    %240 = vector.shape_cast %239 : vector<8xf32> to vector<8x1xf32>
    %241 = vector.broadcast %240 : vector<8x1xf32> to vector<8x8xf32>
    %242 = arith.divf %238, %241 : vector<8x8xf32>
    %cst_168 = arith.constant dense<0.000000e+00> : vector<8x8xf32>
    %243 = tpu.matmul %242, %229, %cst_168 {dimension_numbers = #tpu.dot_dimension_numbers<[1], [0], [0], [1], [0, 0, 1, 1], [], []>} : vector<8x8xf32>, vector<8x8xf32>, vector<8x8xf32> -> vector<8x8xf32>
    %c0_169 = arith.constant 0 : index
    %c0_170 = arith.constant 0 : index
    %c0_171 = arith.constant 0 : index
    %244 = vector.load %arg18[%c0_169, %c0_170, %c0_171] : memref<4x8x32xf32, #tpu.memory_space<vmem>>, vector<1x8x32xf32>
    %245 = vector.shape_cast %244 : vector<1x8x32xf32> to vector<8x32xf32>
    %cst_172 = arith.constant dense<0.000000e+00> : vector<8x32xf32>
    %246 = tpu.matmul %243, %245, %cst_172 {dimension_numbers = #tpu.dot_dimension_numbers<[1], [0], [0], [1], [0, 0, 1, 1], [], []>} : vector<8x8xf32>, vector<8x32xf32>, vector<8x32xf32> -> vector<8x32xf32>
    %247 = arith.addf %208, %246 : vector<8x32xf32>
    %c1_173 = arith.constant 1 : index
    %c0_174 = arith.constant 0 : index
    %c0_175 = arith.constant 0 : index
    %248 = vector.load %arg12[%c1_173, %c0_174, %c0_175] : memref<4x32x8xf32, #tpu.memory_space<vmem>>, vector<1x32x8xf32>
    %249 = vector.shape_cast %248 : vector<1x32x8xf32> to vector<32x8xf32>
    %cst_176 = arith.constant dense<0.000000e+00> : vector<8x8xf32>
    %250 = tpu.matmul %207, %249, %cst_176 {dimension_numbers = #tpu.dot_dimension_numbers<[1], [0], [0], [1], [0, 0, 1, 1], [], []>} : vector<8x32xf32>, vector<32x8xf32>, vector<8x8xf32> -> vector<8x8xf32>
    %c1_177 = arith.constant 1 : index
    %c0_178 = arith.constant 0 : index
    %c0_179 = arith.constant 0 : index
    %251 = vector.load %arg13[%c1_177, %c0_178, %c0_179] : memref<4x1x8xf32, #tpu.memory_space<vmem>>, vector<1x1x8xf32>
    %252 = vector.shape_cast %251 : vector<1x1x8xf32> to vector<1x8xf32>
    %253 = vector.broadcast %252 : vector<1x8xf32> to vector<8x8xf32>
    %254 = arith.addf %250, %253 : vector<8x8xf32>
    %c1_180 = arith.constant 1 : index
    %c0_181 = arith.constant 0 : index
    %c0_182 = arith.constant 0 : index
    %255 = vector.load %arg14[%c1_180, %c0_181, %c0_182] : memref<4x32x8xf32, #tpu.memory_space<vmem>>, vector<1x32x8xf32>
    %256 = vector.shape_cast %255 : vector<1x32x8xf32> to vector<32x8xf32>
    %cst_183 = arith.constant dense<0.000000e+00> : vector<8x8xf32>
    %257 = tpu.matmul %1, %256, %cst_183 {dimension_numbers = #tpu.dot_dimension_numbers<[1], [0], [0], [1], [0, 0, 1, 1], [], []>} : vector<8x32xf32>, vector<32x8xf32>, vector<8x8xf32> -> vector<8x8xf32>
    %c1_184 = arith.constant 1 : index
    %c0_185 = arith.constant 0 : index
    %c0_186 = arith.constant 0 : index
    %258 = vector.load %arg15[%c1_184, %c0_185, %c0_186] : memref<4x1x8xf32, #tpu.memory_space<vmem>>, vector<1x1x8xf32>
    %259 = vector.shape_cast %258 : vector<1x1x8xf32> to vector<1x8xf32>
    %260 = vector.broadcast %259 : vector<1x8xf32> to vector<8x8xf32>
    %261 = arith.addf %257, %260 : vector<8x8xf32>
    %c1_187 = arith.constant 1 : index
    %c0_188 = arith.constant 0 : index
    %c0_189 = arith.constant 0 : index
    %262 = vector.load %arg16[%c1_187, %c0_188, %c0_189] : memref<4x32x8xf32, #tpu.memory_space<vmem>>, vector<1x32x8xf32>
    %263 = vector.shape_cast %262 : vector<1x32x8xf32> to vector<32x8xf32>
    %cst_190 = arith.constant dense<0.000000e+00> : vector<8x8xf32>
    %264 = tpu.matmul %1, %263, %cst_190 {dimension_numbers = #tpu.dot_dimension_numbers<[1], [0], [0], [1], [0, 0, 1, 1], [], []>} : vector<8x32xf32>, vector<32x8xf32>, vector<8x8xf32> -> vector<8x8xf32>
    %c1_191 = arith.constant 1 : index
    %c0_192 = arith.constant 0 : index
    %c0_193 = arith.constant 0 : index
    %265 = vector.load %arg17[%c1_191, %c0_192, %c0_193] : memref<4x1x8xf32, #tpu.memory_space<vmem>>, vector<1x1x8xf32>
    %266 = vector.shape_cast %265 : vector<1x1x8xf32> to vector<1x8xf32>
    %267 = vector.broadcast %266 : vector<1x8xf32> to vector<8x8xf32>
    %268 = arith.addf %264, %267 : vector<8x8xf32>
    %cst_194 = arith.constant dense<0.000000e+00> : vector<8x8xf32>
    %269 = tpu.matmul %254, %261, %cst_194 {dimension_numbers = #tpu.dot_dimension_numbers<[1], [1], [0], [0], [0, 0, 1, 0], [], []>} : vector<8x8xf32>, vector<8x8xf32>, vector<8x8xf32> -> vector<8x8xf32>
    %cst_195 = arith.constant 0.353553385 : f32
    %270 = vector.broadcast %cst_195 : f32 to vector<8x8xf32>
    %271 = arith.mulf %269, %270 : vector<8x8xf32>
    %272 = arith.addf %271, %2 : vector<8x8xf32>
    %cst_196 = arith.constant dense<0xFF800000> : vector<8xf32>
    %273 = vector.multi_reduction <maximumf>, %272, %cst_196 [1] : vector<8x8xf32> to vector<8xf32>
    %274 = vector.shape_cast %273 : vector<8xf32> to vector<8x1xf32>
    %275 = vector.broadcast %274 : vector<8x1xf32> to vector<8x8xf32>
    %276 = arith.subf %272, %275 : vector<8x8xf32>
    %277 = math.exp %276 : vector<8x8xf32>
    %cst_197 = arith.constant dense<0.000000e+00> : vector<8xf32>
    %278 = vector.multi_reduction <add>, %277, %cst_197 [1] : vector<8x8xf32> to vector<8xf32>
    %279 = vector.shape_cast %278 : vector<8xf32> to vector<8x1xf32>
    %280 = vector.broadcast %279 : vector<8x1xf32> to vector<8x8xf32>
    %281 = arith.divf %277, %280 : vector<8x8xf32>
    %cst_198 = arith.constant dense<0.000000e+00> : vector<8x8xf32>
    %282 = tpu.matmul %281, %268, %cst_198 {dimension_numbers = #tpu.dot_dimension_numbers<[1], [0], [0], [1], [0, 0, 1, 1], [], []>} : vector<8x8xf32>, vector<8x8xf32>, vector<8x8xf32> -> vector<8x8xf32>
    %c1_199 = arith.constant 1 : index
    %c0_200 = arith.constant 0 : index
    %c0_201 = arith.constant 0 : index
    %283 = vector.load %arg18[%c1_199, %c0_200, %c0_201] : memref<4x8x32xf32, #tpu.memory_space<vmem>>, vector<1x8x32xf32>
    %284 = vector.shape_cast %283 : vector<1x8x32xf32> to vector<8x32xf32>
    %cst_202 = arith.constant dense<0.000000e+00> : vector<8x32xf32>
    %285 = tpu.matmul %282, %284, %cst_202 {dimension_numbers = #tpu.dot_dimension_numbers<[1], [0], [0], [1], [0, 0, 1, 1], [], []>} : vector<8x8xf32>, vector<8x32xf32>, vector<8x32xf32> -> vector<8x32xf32>
    %286 = arith.addf %247, %285 : vector<8x32xf32>
    %c2_203 = arith.constant 2 : index
    %c0_204 = arith.constant 0 : index
    %c0_205 = arith.constant 0 : index
    %287 = vector.load %arg12[%c2_203, %c0_204, %c0_205] : memref<4x32x8xf32, #tpu.memory_space<vmem>>, vector<1x32x8xf32>
    %288 = vector.shape_cast %287 : vector<1x32x8xf32> to vector<32x8xf32>
    %cst_206 = arith.constant dense<0.000000e+00> : vector<8x8xf32>
    %289 = tpu.matmul %207, %288, %cst_206 {dimension_numbers = #tpu.dot_dimension_numbers<[1], [0], [0], [1], [0, 0, 1, 1], [], []>} : vector<8x32xf32>, vector<32x8xf32>, vector<8x8xf32> -> vector<8x8xf32>
    %c2_207 = arith.constant 2 : index
    %c0_208 = arith.constant 0 : index
    %c0_209 = arith.constant 0 : index
    %290 = vector.load %arg13[%c2_207, %c0_208, %c0_209] : memref<4x1x8xf32, #tpu.memory_space<vmem>>, vector<1x1x8xf32>
    %291 = vector.shape_cast %290 : vector<1x1x8xf32> to vector<1x8xf32>
    %292 = vector.broadcast %291 : vector<1x8xf32> to vector<8x8xf32>
    %293 = arith.addf %289, %292 : vector<8x8xf32>
    %c2_210 = arith.constant 2 : index
    %c0_211 = arith.constant 0 : index
    %c0_212 = arith.constant 0 : index
    %294 = vector.load %arg14[%c2_210, %c0_211, %c0_212] : memref<4x32x8xf32, #tpu.memory_space<vmem>>, vector<1x32x8xf32>
    %295 = vector.shape_cast %294 : vector<1x32x8xf32> to vector<32x8xf32>
    %cst_213 = arith.constant dense<0.000000e+00> : vector<8x8xf32>
    %296 = tpu.matmul %1, %295, %cst_213 {dimension_numbers = #tpu.dot_dimension_numbers<[1], [0], [0], [1], [0, 0, 1, 1], [], []>} : vector<8x32xf32>, vector<32x8xf32>, vector<8x8xf32> -> vector<8x8xf32>
    %c2_214 = arith.constant 2 : index
    %c0_215 = arith.constant 0 : index
    %c0_216 = arith.constant 0 : index
    %297 = vector.load %arg15[%c2_214, %c0_215, %c0_216] : memref<4x1x8xf32, #tpu.memory_space<vmem>>, vector<1x1x8xf32>
    %298 = vector.shape_cast %297 : vector<1x1x8xf32> to vector<1x8xf32>
    %299 = vector.broadcast %298 : vector<1x8xf32> to vector<8x8xf32>
    %300 = arith.addf %296, %299 : vector<8x8xf32>
    %c2_217 = arith.constant 2 : index
    %c0_218 = arith.constant 0 : index
    %c0_219 = arith.constant 0 : index
    %301 = vector.load %arg16[%c2_217, %c0_218, %c0_219] : memref<4x32x8xf32, #tpu.memory_space<vmem>>, vector<1x32x8xf32>
    %302 = vector.shape_cast %301 : vector<1x32x8xf32> to vector<32x8xf32>
    %cst_220 = arith.constant dense<0.000000e+00> : vector<8x8xf32>
    %303 = tpu.matmul %1, %302, %cst_220 {dimension_numbers = #tpu.dot_dimension_numbers<[1], [0], [0], [1], [0, 0, 1, 1], [], []>} : vector<8x32xf32>, vector<32x8xf32>, vector<8x8xf32> -> vector<8x8xf32>
    %c2_221 = arith.constant 2 : index
    %c0_222 = arith.constant 0 : index
    %c0_223 = arith.constant 0 : index
    %304 = vector.load %arg17[%c2_221, %c0_222, %c0_223] : memref<4x1x8xf32, #tpu.memory_space<vmem>>, vector<1x1x8xf32>
    %305 = vector.shape_cast %304 : vector<1x1x8xf32> to vector<1x8xf32>
    %306 = vector.broadcast %305 : vector<1x8xf32> to vector<8x8xf32>
    %307 = arith.addf %303, %306 : vector<8x8xf32>
    %cst_224 = arith.constant dense<0.000000e+00> : vector<8x8xf32>
    %308 = tpu.matmul %293, %300, %cst_224 {dimension_numbers = #tpu.dot_dimension_numbers<[1], [1], [0], [0], [0, 0, 1, 0], [], []>} : vector<8x8xf32>, vector<8x8xf32>, vector<8x8xf32> -> vector<8x8xf32>
    %cst_225 = arith.constant 0.353553385 : f32
    %309 = vector.broadcast %cst_225 : f32 to vector<8x8xf32>
    %310 = arith.mulf %308, %309 : vector<8x8xf32>
    %311 = arith.addf %310, %2 : vector<8x8xf32>
    %cst_226 = arith.constant dense<0xFF800000> : vector<8xf32>
    %312 = vector.multi_reduction <maximumf>, %311, %cst_226 [1] : vector<8x8xf32> to vector<8xf32>
    %313 = vector.shape_cast %312 : vector<8xf32> to vector<8x1xf32>
    %314 = vector.broadcast %313 : vector<8x1xf32> to vector<8x8xf32>
    %315 = arith.subf %311, %314 : vector<8x8xf32>
    %316 = math.exp %315 : vector<8x8xf32>
    %cst_227 = arith.constant dense<0.000000e+00> : vector<8xf32>
    %317 = vector.multi_reduction <add>, %316, %cst_227 [1] : vector<8x8xf32> to vector<8xf32>
    %318 = vector.shape_cast %317 : vector<8xf32> to vector<8x1xf32>
    %319 = vector.broadcast %318 : vector<8x1xf32> to vector<8x8xf32>
    %320 = arith.divf %316, %319 : vector<8x8xf32>
    %cst_228 = arith.constant dense<0.000000e+00> : vector<8x8xf32>
    %321 = tpu.matmul %320, %307, %cst_228 {dimension_numbers = #tpu.dot_dimension_numbers<[1], [0], [0], [1], [0, 0, 1, 1], [], []>} : vector<8x8xf32>, vector<8x8xf32>, vector<8x8xf32> -> vector<8x8xf32>
    %c2_229 = arith.constant 2 : index
    %c0_230 = arith.constant 0 : index
    %c0_231 = arith.constant 0 : index
    %322 = vector.load %arg18[%c2_229, %c0_230, %c0_231] : memref<4x8x32xf32, #tpu.memory_space<vmem>>, vector<1x8x32xf32>
    %323 = vector.shape_cast %322 : vector<1x8x32xf32> to vector<8x32xf32>
    %cst_232 = arith.constant dense<0.000000e+00> : vector<8x32xf32>
    %324 = tpu.matmul %321, %323, %cst_232 {dimension_numbers = #tpu.dot_dimension_numbers<[1], [0], [0], [1], [0, 0, 1, 1], [], []>} : vector<8x8xf32>, vector<8x32xf32>, vector<8x32xf32> -> vector<8x32xf32>
    %325 = arith.addf %286, %324 : vector<8x32xf32>
    %c3_233 = arith.constant 3 : index
    %c0_234 = arith.constant 0 : index
    %c0_235 = arith.constant 0 : index
    %326 = vector.load %arg12[%c3_233, %c0_234, %c0_235] : memref<4x32x8xf32, #tpu.memory_space<vmem>>, vector<1x32x8xf32>
    %327 = vector.shape_cast %326 : vector<1x32x8xf32> to vector<32x8xf32>
    %cst_236 = arith.constant dense<0.000000e+00> : vector<8x8xf32>
    %328 = tpu.matmul %207, %327, %cst_236 {dimension_numbers = #tpu.dot_dimension_numbers<[1], [0], [0], [1], [0, 0, 1, 1], [], []>} : vector<8x32xf32>, vector<32x8xf32>, vector<8x8xf32> -> vector<8x8xf32>
    %c3_237 = arith.constant 3 : index
    %c0_238 = arith.constant 0 : index
    %c0_239 = arith.constant 0 : index
    %329 = vector.load %arg13[%c3_237, %c0_238, %c0_239] : memref<4x1x8xf32, #tpu.memory_space<vmem>>, vector<1x1x8xf32>
    %330 = vector.shape_cast %329 : vector<1x1x8xf32> to vector<1x8xf32>
    %331 = vector.broadcast %330 : vector<1x8xf32> to vector<8x8xf32>
    %332 = arith.addf %328, %331 : vector<8x8xf32>
    %c3_240 = arith.constant 3 : index
    %c0_241 = arith.constant 0 : index
    %c0_242 = arith.constant 0 : index
    %333 = vector.load %arg14[%c3_240, %c0_241, %c0_242] : memref<4x32x8xf32, #tpu.memory_space<vmem>>, vector<1x32x8xf32>
    %334 = vector.shape_cast %333 : vector<1x32x8xf32> to vector<32x8xf32>
    %cst_243 = arith.constant dense<0.000000e+00> : vector<8x8xf32>
    %335 = tpu.matmul %1, %334, %cst_243 {dimension_numbers = #tpu.dot_dimension_numbers<[1], [0], [0], [1], [0, 0, 1, 1], [], []>} : vector<8x32xf32>, vector<32x8xf32>, vector<8x8xf32> -> vector<8x8xf32>
    %c3_244 = arith.constant 3 : index
    %c0_245 = arith.constant 0 : index
    %c0_246 = arith.constant 0 : index
    %336 = vector.load %arg15[%c3_244, %c0_245, %c0_246] : memref<4x1x8xf32, #tpu.memory_space<vmem>>, vector<1x1x8xf32>
    %337 = vector.shape_cast %336 : vector<1x1x8xf32> to vector<1x8xf32>
    %338 = vector.broadcast %337 : vector<1x8xf32> to vector<8x8xf32>
    %339 = arith.addf %335, %338 : vector<8x8xf32>
    %c3_247 = arith.constant 3 : index
    %c0_248 = arith.constant 0 : index
    %c0_249 = arith.constant 0 : index
    %340 = vector.load %arg16[%c3_247, %c0_248, %c0_249] : memref<4x32x8xf32, #tpu.memory_space<vmem>>, vector<1x32x8xf32>
    %341 = vector.shape_cast %340 : vector<1x32x8xf32> to vector<32x8xf32>
    %cst_250 = arith.constant dense<0.000000e+00> : vector<8x8xf32>
    %342 = tpu.matmul %1, %341, %cst_250 {dimension_numbers = #tpu.dot_dimension_numbers<[1], [0], [0], [1], [0, 0, 1, 1], [], []>} : vector<8x32xf32>, vector<32x8xf32>, vector<8x8xf32> -> vector<8x8xf32>
    %c3_251 = arith.constant 3 : index
    %c0_252 = arith.constant 0 : index
    %c0_253 = arith.constant 0 : index
    %343 = vector.load %arg17[%c3_251, %c0_252, %c0_253] : memref<4x1x8xf32, #tpu.memory_space<vmem>>, vector<1x1x8xf32>
    %344 = vector.shape_cast %343 : vector<1x1x8xf32> to vector<1x8xf32>
    %345 = vector.broadcast %344 : vector<1x8xf32> to vector<8x8xf32>
    %346 = arith.addf %342, %345 : vector<8x8xf32>
    %cst_254 = arith.constant dense<0.000000e+00> : vector<8x8xf32>
    %347 = tpu.matmul %332, %339, %cst_254 {dimension_numbers = #tpu.dot_dimension_numbers<[1], [1], [0], [0], [0, 0, 1, 0], [], []>} : vector<8x8xf32>, vector<8x8xf32>, vector<8x8xf32> -> vector<8x8xf32>
    %cst_255 = arith.constant 0.353553385 : f32
    %348 = vector.broadcast %cst_255 : f32 to vector<8x8xf32>
    %349 = arith.mulf %347, %348 : vector<8x8xf32>
    %350 = arith.addf %349, %2 : vector<8x8xf32>
    %cst_256 = arith.constant dense<0xFF800000> : vector<8xf32>
    %351 = vector.multi_reduction <maximumf>, %350, %cst_256 [1] : vector<8x8xf32> to vector<8xf32>
    %352 = vector.shape_cast %351 : vector<8xf32> to vector<8x1xf32>
    %353 = vector.broadcast %352 : vector<8x1xf32> to vector<8x8xf32>
    %354 = arith.subf %350, %353 : vector<8x8xf32>
    %355 = math.exp %354 : vector<8x8xf32>
    %cst_257 = arith.constant dense<0.000000e+00> : vector<8xf32>
    %356 = vector.multi_reduction <add>, %355, %cst_257 [1] : vector<8x8xf32> to vector<8xf32>
    %357 = vector.shape_cast %356 : vector<8xf32> to vector<8x1xf32>
    %358 = vector.broadcast %357 : vector<8x1xf32> to vector<8x8xf32>
    %359 = arith.divf %355, %358 : vector<8x8xf32>
    %cst_258 = arith.constant dense<0.000000e+00> : vector<8x8xf32>
    %360 = tpu.matmul %359, %346, %cst_258 {dimension_numbers = #tpu.dot_dimension_numbers<[1], [0], [0], [1], [0, 0, 1, 1], [], []>} : vector<8x8xf32>, vector<8x8xf32>, vector<8x8xf32> -> vector<8x8xf32>
    %c3_259 = arith.constant 3 : index
    %c0_260 = arith.constant 0 : index
    %c0_261 = arith.constant 0 : index
    %361 = vector.load %arg18[%c3_259, %c0_260, %c0_261] : memref<4x8x32xf32, #tpu.memory_space<vmem>>, vector<1x8x32xf32>
    %362 = vector.shape_cast %361 : vector<1x8x32xf32> to vector<8x32xf32>
    %cst_262 = arith.constant dense<0.000000e+00> : vector<8x32xf32>
    %363 = tpu.matmul %360, %362, %cst_262 {dimension_numbers = #tpu.dot_dimension_numbers<[1], [0], [0], [1], [0, 0, 1, 1], [], []>} : vector<8x8xf32>, vector<8x32xf32>, vector<8x32xf32> -> vector<8x32xf32>
    %364 = arith.addf %325, %363 : vector<8x32xf32>
    %c0_263 = arith.constant 0 : index
    %c0_264 = arith.constant 0 : index
    %365 = vector.load %arg19[%c0_263, %c0_264] : memref<1x32xf32, #tpu.memory_space<vmem>>, vector<1x32xf32>
    %366 = vector.broadcast %365 : vector<1x32xf32> to vector<8x32xf32>
    %367 = arith.addf %364, %366 : vector<8x32xf32>
    %368 = arith.addf %183, %367 : vector<8x32xf32>
    %c2_265 = arith.constant 2 : index
    %c0_266 = arith.constant 0 : index
    %369 = memref.load %arg0[%c2_265, %c0_266] : memref<3x2xf32, #tpu.memory_space<smem>>
    %c2_267 = arith.constant 2 : index
    %c1_268 = arith.constant 1 : index
    %370 = memref.load %arg0[%c2_267, %c1_268] : memref<3x2xf32, #tpu.memory_space<smem>>
    %cst_269 = arith.constant dense<0.000000e+00> : vector<8xf32>
    %371 = vector.multi_reduction <add>, %368, %cst_269 [1] : vector<8x32xf32> to vector<8xf32>
    %372 = vector.shape_cast %371 : vector<8xf32> to vector<8x1xf32>
    %cst_270 = arith.constant 3.200000e+01 : f32
    %373 = vector.broadcast %cst_270 : f32 to vector<8x1xf32>
    %374 = arith.divf %372, %373 : vector<8x1xf32>
    %375 = vector.broadcast %374 : vector<8x1xf32> to vector<8x32xf32>
    %376 = arith.subf %368, %375 : vector<8x32xf32>
    %377 = arith.mulf %376, %376 : vector<8x32xf32>
    %cst_271 = arith.constant dense<0.000000e+00> : vector<8xf32>
    %378 = vector.multi_reduction <add>, %377, %cst_271 [1] : vector<8x32xf32> to vector<8xf32>
    %379 = vector.shape_cast %378 : vector<8xf32> to vector<8x1xf32>
    %cst_272 = arith.constant 3.100000e+01 : f32
    %380 = vector.broadcast %cst_272 : f32 to vector<8x1xf32>
    %381 = arith.divf %379, %380 : vector<8x1xf32>
    %382 = math.sqrt %381 : vector<8x1xf32>
    %383 = vector.broadcast %374 : vector<8x1xf32> to vector<8x32xf32>
    %384 = arith.subf %368, %383 : vector<8x32xf32>
    %385 = vector.broadcast %369 : f32 to vector<8x32xf32>
    %386 = arith.mulf %385, %384 : vector<8x32xf32>
    %cst_273 = arith.constant 9.99999997E-7 : f32
    %387 = vector.broadcast %cst_273 : f32 to vector<8x1xf32>
    %388 = arith.addf %382, %387 : vector<8x1xf32>
    %389 = vector.broadcast %388 : vector<8x1xf32> to vector<8x32xf32>
    %390 = arith.divf %386, %389 : vector<8x32xf32>
    %391 = vector.broadcast %370 : f32 to vector<8x32xf32>
    %392 = arith.addf %390, %391 : vector<8x32xf32>
    %c0_274 = arith.constant 0 : index
    %c0_275 = arith.constant 0 : index
    %393 = vector.load %arg20[%c0_274, %c0_275] : memref<32x64xf32, #tpu.memory_space<vmem>>, vector<32x64xf32>
    %cst_276 = arith.constant dense<0.000000e+00> : vector<8x64xf32>
    %394 = tpu.matmul %392, %393, %cst_276 {dimension_numbers = #tpu.dot_dimension_numbers<[1], [0], [0], [1], [0, 0, 1, 1], [], []>} : vector<8x32xf32>, vector<32x64xf32>, vector<8x64xf32> -> vector<8x64xf32>
    %c0_277 = arith.constant 0 : index
    %c0_278 = arith.constant 0 : index
    %395 = vector.load %arg21[%c0_277, %c0_278] : memref<1x64xf32, #tpu.memory_space<vmem>>, vector<1x64xf32>
    %396 = vector.broadcast %395 : vector<1x64xf32> to vector<8x64xf32>
    %397 = arith.addf %394, %396 : vector<8x64xf32>
    %cst_279 = arith.constant 0.000000e+00 : f32
    %398 = vector.broadcast %cst_279 : f32 to vector<8x64xf32>
    %399 = arith.maximumf %397, %398 : vector<8x64xf32>
    %c0_280 = arith.constant 0 : index
    %c0_281 = arith.constant 0 : index
    %400 = vector.load %arg22[%c0_280, %c0_281] : memref<64x32xf32, #tpu.memory_space<vmem>>, vector<64x32xf32>
    %cst_282 = arith.constant dense<0.000000e+00> : vector<8x32xf32>
    %401 = tpu.matmul %399, %400, %cst_282 {dimension_numbers = #tpu.dot_dimension_numbers<[1], [0], [0], [1], [0, 0, 1, 1], [], []>} : vector<8x64xf32>, vector<64x32xf32>, vector<8x32xf32> -> vector<8x32xf32>
    %c0_283 = arith.constant 0 : index
    %c0_284 = arith.constant 0 : index
    %402 = vector.load %arg23[%c0_283, %c0_284] : memref<1x32xf32, #tpu.memory_space<vmem>>, vector<1x32xf32>
    %403 = vector.broadcast %402 : vector<1x32xf32> to vector<8x32xf32>
    %404 = arith.addf %401, %403 : vector<8x32xf32>
    %405 = arith.addf %368, %404 : vector<8x32xf32>
    %c0_285 = arith.constant 0 : index
    %c0_286 = arith.constant 0 : index
    %406 = vector.load %arg24[%c0_285, %c0_286] : memref<8x32xf32, #tpu.memory_space<vmem>>, vector<8x32xf32>
    tpu.vector_store %arg24[%c0_285, %c0_286], %405 {strides = array<i32>} : memref<8x32xf32, #tpu.memory_space<vmem>>, vector<8x32xf32>,
    return
  }
}

</mosaic_0001>

<llo_original>
// kernel: tpu_custom_call.1
$region0: #{tpu_custom_call.1}
  #allocation0 [shape = 'u32[]', space=smem, size = 0x4, offset = 0x4, fixed_abs, tag = 'smem constant byte address 0x4 - core index']
  #allocation1 [shape = 'u32[144,128]{1,0:T(1,128)}', space=vmem, size = 0x12000, scoped, tag = 'internal scratch']
  %s0 = inlined_call_operand.vmem [shape: f32[3,2], index: 0, kind: input, shape index: {}]
  %s1 = inlined_call_operand.hbm [shape: f32[8,32], index: 1, kind: input, shape index: {}, may-alias: {1,24}]
  %s2 = inlined_call_operand.vmem [shape: f32[8,32], index: 2, kind: input, shape index: {}]
  %s3 = inlined_call_operand.vmem [shape: f32[8,8], index: 3, kind: input, shape index: {}]
  %s4 = inlined_call_operand.vmem [shape: f32[4,32,8], index: 4, kind: input, shape index: {}]
  %s5 = inlined_call_operand.vmem [shape: f32[4,1,8], index: 5, kind: input, shape index: {}]
  %s6 = inlined_call_operand.vmem [shape: f32[4,32,8], index: 6, kind: input, shape index: {}]
  %s7 = inlined_call_operand.vmem [shape: f32[4,1,8], index: 7, kind: input, shape index: {}]
  %s8 = inlined_call_operand.vmem [shape: f32[4,32,8], index: 8, kind: input, shape index: {}]
  %s9 = inlined_call_operand.vmem [shape: f32[4,1,8], index: 9, kind: input, shape index: {}]
  %s10 = inlined_call_operand.vmem [shape: f32[4,8,32], index: 10, kind: input, shape index: {}]
  %s11 = inlined_call_operand.vmem [shape: f32[1,32], index: 11, kind: input, shape index: {}]
  %s12 = inlined_call_operand.vmem [shape: f32[4,32,8], index: 12, kind: input, shape index: {}]
  %s13 = inlined_call_operand.vmem [shape: f32[4,1,8], index: 13, kind: input, shape index: {}]
  %s14 = inlined_call_operand.vmem [shape: f32[4,32,8], index: 14, kind: input, shape index: {}]
  %s15 = inlined_call_operand.vmem [shape: f32[4,1,8], index: 15, kind: input, shape index: {}]
  %s16 = inlined_call_operand.vmem [shape: f32[4,32,8], index: 16, kind: input, shape index: {}]
  %s17 = inlined_call_operand.vmem [shape: f32[4,1,8], index: 17, kind: input, shape index: {}]
  %s18 = inlined_call_operand.vmem [shape: f32[4,8,32], index: 18, kind: input, shape index: {}]
  %s19 = inlined_call_operand.vmem [shape: f32[1,32], index: 19, kind: input, shape index: {}]
  %s20 = inlined_call_operand.vmem [shape: f32[32,64], index: 20, kind: input, shape index: {}]
  %s21 = inlined_call_operand.vmem [shape: f32[1,64], index: 21, kind: input, shape index: {}]
  %s22 = inlined_call_operand.vmem [shape: f32[64,32], index: 22, kind: input, shape index: {}]
  %s23 = inlined_call_operand.vmem [shape: f32[1,32], index: 23, kind: input, shape index: {}]
  %s24 = inlined_call_operand.hbm [shape: f32[8,32], index: 24, kind: output, shape index: {}, may-alias: {1,24}]
  %s25 = sld [smem:[#allocation0]]
  $region114: #{tpu_custom_call.1} parent=0
    _
  %s27 = ssub.s32 1, %s25
  %s28 = scalar_select 0, %s27, %s25
  $region1: #{tpu_custom_call.1} parent=0
    #allocation2 [shape = 'u8[2048]{0}', space=smem, size = 0x800, scoped, tag = 'input window, operand 0, single buffered']
    #allocation3 [shape = 's32[1]{0}', space=sflag, size = 0x4, scoped, tag = 'scoped memory for tpu_custom_call.1']
    #allocation4 [shape = 's32[1]{0}', space=sflag, size = 0x4, scoped, tag = 'scoped memory for tpu_custom_call.1']
    #allocation5 [shape = 's32[1]{0}', space=sflag, size = 0x4, scoped, tag = 'scoped memory for tpu_custom_call.1']
    #allocation6 [shape = 'u8[4096]{0}', space=vmem, size = 0x1000, scoped, tag = 'input window, operand 1, single buffered']
    #allocation7 [shape = 'u8[4096]{0}', space=vmem, size = 0x1000, scoped, tag = 'output window, operand 0, single buffered']
    %29 = vsyncpa [#allocation5], 0
    %30 = vsyncpa [#allocation3], 0
    %31 = vsyncpa [#allocation4], 0
    // Predicated region
    $region2: #{tpu_custom_call.1} parent=1 // pred_check
      _
    $region3: #{tpu_custom_call.1} parent=1 // pred_check_branch
      %33 = sbr.rel (0) target = $region5
    $region4: #{tpu_custom_call.1} parent=1 // pred_region
      %s35 = ssub.s32 64, 64
      %36 = vsyncadd [#allocation5], %s35
      %s38 = sshll.u32 %s0, 4
      %s39 = int_to_ptr.vmem [resolvable:$true] %s38
      %41 = dma.vmem_to_smem %s39, 64, [#allocation2], [#allocation5]
    $region5: #{tpu_custom_call.1} parent=1 // pred_fallthru
      _
    // Predicated region
    $region6: #{tpu_custom_call.1} parent=1 // pred_check
      _
    $region7: #{tpu_custom_call.1} parent=1 // pred_check_branch
      %43 = sbr.rel (0) target = $region9
    $region8: #{tpu_custom_call.1} parent=1 // pred_region
      %s45 = ssub.s32 128, 128
      %46 = vsyncadd [#allocation3], %s45
      %s48 = sshll.u32 [#allocation6], 4
      %s49 = int_to_ptr.vmem [resolvable:$true] %s48
      %51 = dma.hbm_to_vmem [thread:$0]  %s1, 128, %s49, [#allocation3]
    $region9: #{tpu_custom_call.1} parent=1 // pred_fallthru
      _
    // Predicated region
    $region10: #{tpu_custom_call.1} parent=1 // pred_check
      _
    $region11: #{tpu_custom_call.1} parent=1 // pred_check_branch
      %53 = sbr.rel (0) target = $region13
    $region12: #{tpu_custom_call.1} parent=1 // pred_region
      _
    $region13: #{tpu_custom_call.1} parent=1 // pred_fallthru
      _
    // Predicated region
    $region14: #{tpu_custom_call.1} parent=1 // pred_check
      _
    $region15: #{tpu_custom_call.1} parent=1 // pred_check_branch
      %55 = sbr.rel (0) target = $region17
    $region16: #{tpu_custom_call.1} parent=1 // pred_region
      _
    $region17: #{tpu_custom_call.1} parent=1 // pred_fallthru
      _
    // Predicated region
    $region18: #{tpu_custom_call.1} parent=1 // pred_check
      _
    $region19: #{tpu_custom_call.1} parent=1 // pred_check_branch
      %57 = sbr.rel (0) target = $region21
    $region20: #{tpu_custom_call.1} parent=1 // pred_region
      _
    $region21: #{tpu_custom_call.1} parent=1 // pred_fallthru
      _
    // Predicated region
    $region22: #{tpu_custom_call.1} parent=1 // pred_check
      _
    $region23: #{tpu_custom_call.1} parent=1 // pred_check_branch
      %59 = sbr.rel (0) target = $region25
    $region24: #{tpu_custom_call.1} parent=1 // pred_region
      _
    $region25: #{tpu_custom_call.1} parent=1 // pred_fallthru
      _
    // Predicated region
    $region26: #{tpu_custom_call.1} parent=1 // pred_check
      _
    $region27: #{tpu_custom_call.1} parent=1 // pred_check_branch
      %61 = sbr.rel (0) target = $region29
    $region28: #{tpu_custom_call.1} parent=1 // pred_region
      _
    $region29: #{tpu_custom_call.1} parent=1 // pred_fallthru
      _
    // Predicated region
    $region30: #{tpu_custom_call.1} parent=1 // pred_check
      _
    $region31: #{tpu_custom_call.1} parent=1 // pred_check_branch
      %63 = sbr.rel (0) target = $region33
    $region32: #{tpu_custom_call.1} parent=1 // pred_region
      _
    $region33: #{tpu_custom_call.1} parent=1 // pred_fallthru
      _
    // Predicated region
    $region34: #{tpu_custom_call.1} parent=1 // pred_check
      _
    $region35: #{tpu_custom_call.1} parent=1 // pred_check_branch
      %65 = sbr.rel (0) target = $region37
    $region36: #{tpu_custom_call.1} parent=1 // pred_region
      _
    $region37: #{tpu_custom_call.1} parent=1 // pred_fallthru
      _
    // Predicated region
    $region38: #{tpu_custom_call.1} parent=1 // pred_check
      _
    $region39: #{tpu_custom_call.1} parent=1 // pred_check_branch
      %67 = sbr.rel (0) target = $region41
    $region40: #{tpu_custom_call.1} parent=1 // pred_region
      _
    $region41: #{tpu_custom_call.1} parent=1 // pred_fallthru
      _
    // Predicated region
    $region42: #{tpu_custom_call.1} parent=1 // pred_check
      _
    $region43: #{tpu_custom_call.1} parent=1 // pred_check_branch
      %69 = sbr.rel (0) target = $region45
    $region44: #{tpu_custom_call.1} parent=1 // pred_region
      _
    $region45: #{tpu_custom_call.1} parent=1 // pred_fallthru
      _
    // Predicated region
    $region46: #{tpu_custom_call.1} parent=1 // pred_check
      _
    $region47: #{tpu_custom_call.1} parent=1 // pred_check_branch
      %71 = sbr.rel (0) target = $region49
    $region48: #{tpu_custom_call.1} parent=1 // pred_region
      _
    $region49: #{tpu_custom_call.1} parent=1 // pred_fallthru
      _
    // Predicated region
    $region50: #{tpu_custom_call.1} parent=1 // pred_check
      _
    $region51: #{tpu_custom_call.1} parent=1 // pred_check_branch
      %73 = sbr.rel (0) target = $region53
    $region52: #{tpu_custom_call.1} parent=1 // pred_region
      _
    $region53: #{tpu_custom_call.1} parent=1 // pred_fallthru
      _
    // Predicated region
    $region54: #{tpu_custom_call.1} parent=1 // pred_check
      _
    $region55: #{tpu_custom_call.1} parent=1 // pred_check_branch
      %75 = sbr.rel (0) target = $region57
    $region56: #{tpu_custom_call.1} parent=1 // pred_region
      _
    $region57: #{tpu_custom_call.1} parent=1 // pred_fallthru
      _
    // Predicated region
    $region58: #{tpu_custom_call.1} parent=1 // pred_check
      _
    $region59: #{tpu_custom_call.1} parent=1 // pred_check_branch
      %77 = sbr.rel (0) target = $region61
    $region60: #{tpu_custom_call.1} parent=1 // pred_region
      _
    $region61: #{tpu_custom_call.1} parent=1 // pred_fallthru
      _
    // Predicated region
    $region62: #{tpu_custom_call.1} parent=1 // pred_check
      _
    $region63: #{tpu_custom_call.1} parent=1 // pred_check_branch
      %79 = sbr.rel (0) target = $region65
    $region64: #{tpu_custom_call.1} parent=1 // pred_region
      _
    $region65: #{tpu_custom_call.1} parent=1 // pred_fallthru
      _
    // Predicated region
    $region66: #{tpu_custom_call.1} parent=1 // pred_check
      _
    $region67: #{tpu_custom_call.1} parent=1 // pred_check_branch
      %81 = sbr.rel (0) target = $region69
    $region68: #{tpu_custom_call.1} parent=1 // pred_region
      _
    $region69: #{tpu_custom_call.1} parent=1 // pred_fallthru
      _
    // Predicated region
    $region70: #{tpu_custom_call.1} parent=1 // pred_check
      _
    $region71: #{tpu_custom_call.1} parent=1 // pred_check_branch
      %83 = sbr.rel (0) target = $region73
    $region72: #{tpu_custom_call.1} parent=1 // pred_region
      _
    $region73: #{tpu_custom_call.1} parent=1 // pred_fallthru
      _
    // Predicated region
    $region74: #{tpu_custom_call.1} parent=1 // pred_check
      _
    $region75: #{tpu_custom_call.1} parent=1 // pred_check_branch
      %85 = sbr.rel (0) target = $region77
    $region76: #{tpu_custom_call.1} parent=1 // pred_region
      _
    $region77: #{tpu_custom_call.1} parent=1 // pred_fallthru
      _
    // Predicated region
    $region78: #{tpu_custom_call.1} parent=1 // pred_check
      _
    $region79: #{tpu_custom_call.1} parent=1 // pred_check_branch
      %87 = sbr.rel (0) target = $region81
    $region80: #{tpu_custom_call.1} parent=1 // pred_region
      _
    $region81: #{tpu_custom_call.1} parent=1 // pred_fallthru
      _
    // Predicated region
    $region82: #{tpu_custom_call.1} parent=1 // pred_check
      _
    $region83: #{tpu_custom_call.1} parent=1 // pred_check_branch
      %89 = sbr.rel (0) target = $region85
    $region84: #{tpu_custom_call.1} parent=1 // pred_region
      _
    $region85: #{tpu_custom_call.1} parent=1 // pred_fallthru
      _
    // Predicated region
    $region86: #{tpu_custom_call.1} parent=1 // pred_check
      _
    $region87: #{tpu_custom_call.1} parent=1 // pred_check_branch
      %91 = sbr.rel (0) target = $region89
    $region88: #{tpu_custom_call.1} parent=1 // pred_region
      _
    $region89: #{tpu_custom_call.1} parent=1 // pred_fallthru
      _
    // Predicated region
    $region90: #{tpu_custom_call.1} parent=1 // pred_check
      _
    $region91: #{tpu_custom_call.1} parent=1 // pred_check_branch
      %93 = sbr.rel (0) target = $region93
    $region92: #{tpu_custom_call.1} parent=1 // pred_region
      _
    $region93: #{tpu_custom_call.1} parent=1 // pred_fallthru
      _
    // Predicated region
    $region94: #{tpu_custom_call.1} parent=1 // pred_check
      _
    $region95: #{tpu_custom_call.1} parent=1 // pred_check_branch
      %95 = sbr.rel (0) target = $region97
    $region96: #{tpu_custom_call.1} parent=1 // pred_region
      _
    $region97: #{tpu_custom_call.1} parent=1 // pred_fallthru
      _
    // Predicated region
    $region98: #{tpu_custom_call.1} parent=1 // pred_check
      _
    $region99: #{tpu_custom_call.1} parent=1 // pred_check_branch
      %97 = sbr.rel (0) target = $region101
    $region100: #{tpu_custom_call.1} parent=1 // pred_region
      %98 = dma.done [#allocation5], 64
    $region101: #{tpu_custom_call.1} parent=1 // pred_fallthru
      _
    // Predicated region
    $region102: #{tpu_custom_call.1} parent=1 // pred_check
      _
    $region103: #{tpu_custom_call.1} parent=1 // pred_check_branch
      %100 = sbr.rel (0) target = $region105
    $region104: #{tpu_custom_call.1} parent=1 // pred_region
      %101 = dma.done [#allocation3], 128
    $region105: #{tpu_custom_call.1} parent=1 // pred_fallthru
      _
    %102 = sfence
    %v103 = vld [vmem:[#allocation6] sm:$0xff]
    %v104 = vld [vmem:[%s2] sm:$0xff]
    %v105 = vld [vmem:[%s3] sm:$0xff]
    %s106 = sld [smem:[#allocation2]]
    %s107 = sld [smem:[#allocation2 + $0x1]]
    %vm108 = vcmask 261120
    %v109 = vsel %vm108, %v103, 0.0
    %110 = vadd.xlane.f32.xlu0 %v109
    %v111 = vpop.xlane.xlu0 %110
    %v112 = vrcp.pop 32.0
    %v113 = vmul.f32 %v111, %v112
    %v114 = vsub.f32 %v103, %v113
    %v115 = vmul.f32 %v114, %v114
    %v116 = vsel %vm108, %v115, 0.0
    %117 = vadd.xlane.f32.xlu0 %v116
    %v118 = vpop.xlane.xlu0 %117
    %v119 = vrcp.pop 31.0
    %v120 = vmul.f32 %v118, %v119
    %v121 = vrsqrt.pop %v120
    %v122 = vmul.f32 %v120, %v121
    %vm123 = vcmp.eq.f32.partialorder %v120, inf
    %v124 = vsel %vm123, %v120, %v122
    %vm125 = vcmp.eq.f32.partialorder %v120, 0.0
    %v126 = vand.u32 %v120, 2147483648
    %v127 = vsel %vm125, %v126, %v124
    %v128 = vstv %s106
    %v129 = vmul.f32 %v128, %v114
    %v130 = vadd.f32 %v127, 1e-06
    %v131 = vrcp.pop %v130
    %v132 = vmul.f32 %v129, %v131
    %v133 = vstv %s107
    %v134 = vadd.f32 %v132, %v133
    %v135 = vld [vmem:[%s4] sm:$0xff]
    %v136 = vld [vmem:[%s4 + $0x8] sm:$0xff]
    %v137 = vld [vmem:[%s4 + $0x10] sm:$0xff]
    %v138 = vld [vmem:[%s4 + $0x18] sm:$0xff]
    %v139 = vld [vmem:[%s5] sm:$0x1]
    %v141 = vlaneseq
    %v142 = vshrl.u32 %v141, 7
    %v143 = vsub.s32 0, %v142
    %v144 = vrot.slane %v139, %v143
    %v147 = vsel %vm108, %v134, 0
    %149 = vmatprep.subr.mxu0 0.0
    %150 = vmatpush1.msra.mxu0 %v135
    %151 = vmatprep.subr.mxu0 0.0
    %152 = vmatpush1.msra.mxu0 %v136
    %153 = vmatprep.subr.mxu0 0.0
    %154 = vmatpush1.msra.mxu0 %v137
    %155 = vmatprep.subr.mxu0 0.0
    %156 = vmatpush1.msra.mxu0 %v138
    %157 = vmatprep.subr.mxu0 0.0
    %158 = vmatpush1.msra.mxu0 0.0
    %159 = vmatprep.subr.mxu0 0.0
    %160 = vmatpush1.msra.mxu0 0.0
    %161 = vmatprep.subr.mxu0 0.0
    %162 = vmatpush1.msra.mxu0 0.0
    %163 = vmatprep.subr.mxu0 0.0
    %164 = vmatpush1.msra.mxu0 0.0
    %165 = vmatprep.subr.mxu0 0.0
    %166 = vmatpush1.msra.mxu0 0.0
    %167 = vmatprep.subr.mxu0 0.0
    %168 = vmatpush1.msra.mxu0 0.0
    %169 = vmatprep.subr.mxu0 0.0
    %170 = vmatpush1.msra.mxu0 0.0
    %171 = vmatprep.subr.mxu0 0.0
    %172 = vmatpush1.msra.mxu0 0.0
    %173 = vmatprep.subr.mxu0 0.0
    %174 = vmatpush1.msra.mxu0 0.0
    %175 = vmatprep.subr.mxu0 0.0
    %176 = vmatpush1.msra.mxu0 0.0
    %177 = vmatprep.subr.mxu0 0.0
    %178 = vmatpush1.msra.mxu0 0.0
    %179 = vmatprep.subr.mxu0 0.0
    %180 = vmatpush1.msra.mxu0 0.0
    %181 = vmatprep.subr.mxu0 0.0
    %182 = vmatpush1.msra.mxu0 0.0
    %183 = vmatprep.subr.mxu0 0.0
    %184 = vmatpush1.msra.mxu0 0.0
    %185 = vmatprep.subr.mxu0 0.0
    %186 = vmatpush1.msra.mxu0 0.0
    %187 = vmatprep.subr.mxu0 0.0
    %188 = vmatpush1.msra.mxu0 0.0
    %189 = vmatprep.subr.mxu0 0.0
    %190 = vmatpush1.msra.mxu0 0.0
    %191 = vmatprep.subr.mxu0 0.0
    %192 = vmatpush1.msra.mxu0 0.0
    %193 = vmatprep.subr.mxu0 0.0
    %194 = vmatpush1.msra.mxu0 0.0
    %195 = vmatprep.subr.mxu0 0.0
    %196 = vmatpush1.msra.mxu0 0.0
    %197 = vmatprep.subr.mxu0 0.0
    %198 = vmatpush1.msra.mxu0 0.0
    %199 = vmatprep.subr.mxu0 0.0
    %200 = vmatpush1.msra.mxu0 0.0
    %201 = vmatprep.subr.mxu0 0.0
    %202 = vmatpush1.msra.mxu0 0.0
    %203 = vmatprep.subr.mxu0 0.0
    %204 = vmatpush1.msra.mxu0 0.0
    %205 = vmatprep.subr.mxu0 0.0
    %206 = vmatpush1.msra.mxu0 0.0
    %207 = vmatprep.subr.mxu0 0.0
    %208 = vmatpush1.msra.mxu0 0.0
    %209 = vmatprep.subr.mxu0 0.0
    %210 = vmatpush1.msra.mxu0 0.0
    %211 = vmatprep.subr.mxu0 0.0
    %212 = vmatpush1.msra.mxu0 0.0
    %213 = vmatprep.mubr.f32.mxu0 0.0
    %214 = vmatmul.mubr.f32.gmra.mrb[0].mxu0 %v147
    %v215 = vpop.f32.mrb[0].mxu0
    %v216 = vadd.f32 %v144, %v215
    %v217 = vpop.f32.mrb[0].mxu0
    %218 = vdwg.mxu0
    %v219 = vld [vmem:[%s6] sm:$0xff]
    %v220 = vld [vmem:[%s6 + $0x8] sm:$0xff]
    %v221 = vld [vmem:[%s6 + $0x10] sm:$0xff]
    %v222 = vld [vmem:[%s6 + $0x18] sm:$0xff]
    %v223 = vld [vmem:[%s7] sm:$0x1]
    %v225 = vlaneseq
    %v226 = vshrl.u32 %v225, 7
    %v227 = vsub.s32 0, %v226
    %v228 = vrot.slane %v223, %v227
    %230 = vmatprep.subr.mxu0 0.0
    %231 = vmatpush1.msra.mxu0 %v219
    %232 = vmatprep.subr.mxu0 0.0
    %233 = vmatpush1.msra.mxu0 %v220
    %234 = vmatprep.subr.mxu0 0.0
    %235 = vmatpush1.msra.mxu0 %v221
    %236 = vmatprep.subr.mxu0 0.0
    %237 = vmatpush1.msra.mxu0 %v222
    %238 = vmatprep.subr.mxu0 0.0
    %239 = vmatpush1.msra.mxu0 0.0
    %240 = vmatprep.subr.mxu0 0.0
    %241 = vmatpush1.msra.mxu0 0.0
    %242 = vmatprep.subr.mxu0 0.0
    %243 = vmatpush1.msra.mxu0 0.0
    %244 = vmatprep.subr.mxu0 0.0
    %245 = vmatpush1.msra.mxu0 0.0
    %246 = vmatprep.subr.mxu0 0.0
    %247 = vmatpush1.msra.mxu0 0.0
    %248 = vmatprep.subr.mxu0 0.0
    %249 = vmatpush1.msra.mxu0 0.0
    %250 = vmatprep.subr.mxu0 0.0
    %251 = vmatpush1.msra.mxu0 0.0
    %252 = vmatprep.subr.mxu0 0.0
    %253 = vmatpush1.msra.mxu0 0.0
    %254 = vmatprep.subr.mxu0 0.0
    %255 = vmatpush1.msra.mxu0 0.0
    %256 = vmatprep.subr.mxu0 0.0
    %257 = vmatpush1.msra.mxu0 0.0
    %258 = vmatprep.subr.mxu0 0.0
    %259 = vmatpush1.msra.mxu0 0.0
    %260 = vmatprep.subr.mxu0 0.0
    %261 = vmatpush1.msra.mxu0 0.0
    %262 = vmatprep.subr.mxu0 0.0
    %263 = vmatpush1.msra.mxu0 0.0
    %264 = vmatprep.subr.mxu0 0.0
    %265 = vmatpush1.msra.mxu0 0.0
    %266 = vmatprep.subr.mxu0 0.0
    %267 = vmatpush1.msra.mxu0 0.0
    %268 = vmatprep.subr.mxu0 0.0
    %269 = vmatpush1.msra.mxu0 0.0
    %270 = vmatprep.subr.mxu0 0.0
    %271 = vmatpush1.msra.mxu0 0.0
    %272 = vmatprep.subr.mxu0 0.0
    %273 = vmatpush1.msra.mxu0 0.0
    %274 = vmatprep.subr.mxu0 0.0
    %275 = vmatpush1.msra.mxu0 0.0
    %276 = vmatprep.subr.mxu0 0.0
    %277 = vmatpush1.msra.mxu0 0.0
    %278 = vmatprep.subr.mxu0 0.0
    %279 = vmatpush1.msra.mxu0 0.0
    %280 = vmatprep.subr.mxu0 0.0
    %281 = vmatpush1.msra.mxu0 0.0
    %282 = vmatprep.subr.mxu0 0.0
    %283 = vmatpush1.msra.mxu0 0.0
    %284 = vmatprep.subr.mxu0 0.0
    %285 = vmatpush1.msra.mxu0 0.0
    %286 = vmatprep.subr.mxu0 0.0
    %287 = vmatpush1.msra.mxu0 0.0
    %288 = vmatprep.subr.mxu0 0.0
    %289 = vmatpush1.msra.mxu0 0.0
    %290 = vmatprep.subr.mxu0 0.0
    %291 = vmatpush1.msra.mxu0 0.0
    %292 = vmatprep.subr.mxu0 0.0
    %293 = vmatpush1.msra.mxu0 0.0
    %294 = vmatprep.mubr.f32.mxu0 0.0
    %295 = vmatmul.mubr.f32.gmra.mrb[0].mxu0 %v147
    %v296 = vpop.f32.mrb[0].mxu0
    %v297 = vadd.f32 %v228, %v296
    %v298 = vpop.f32.mrb[0].mxu0
    %299 = vdwg.mxu0
    %v300 = vld [vmem:[%s8] sm:$0xff]
    %v301 = vld [vmem:[%s8 + $0x8] sm:$0xff]
    %v302 = vld [vmem:[%s8 + $0x10] sm:$0xff]
    %v303 = vld [vmem:[%s8 + $0x18] sm:$0xff]
    %v304 = vld [vmem:[%s9] sm:$0x1]
    %v306 = vlaneseq
    %v307 = vshrl.u32 %v306, 7
    %v308 = vsub.s32 0, %v307
    %v309 = vrot.slane %v304, %v308
    %311 = vmatprep.subr.mxu0 0.0
    %312 = vmatpush1.msra.mxu0 %v300
    %313 = vmatprep.subr.mxu0 0.0
    %314 = vmatpush1.msra.mxu0 %v301
    %315 = vmatprep.subr.mxu0 0.0
    %316 = vmatpush1.msra.mxu0 %v302
    %317 = vmatprep.subr.mxu0 0.0
    %318 = vmatpush1.msra.mxu0 %v303
    %319 = vmatprep.subr.mxu0 0.0
    %320 = vmatpush1.msra.mxu0 0.0
    %321 = vmatprep.subr.mxu0 0.0
    %322 = vmatpush1.msra.mxu0 0.0
    %323 = vmatprep.subr.mxu0 0.0
    %324 = vmatpush1.msra.mxu0 0.0
    %325 = vmatprep.subr.mxu0 0.0
    %326 = vmatpush1.msra.mxu0 0.0
    %327 = vmatprep.subr.mxu0 0.0
    %328 = vmatpush1.msra.mxu0 0.0
    %329 = vmatprep.subr.mxu0 0.0
    %330 = vmatpush1.msra.mxu0 0.0
    %331 = vmatprep.subr.mxu0 0.0
    %332 = vmatpush1.msra.mxu0 0.0
    %333 = vmatprep.subr.mxu0 0.0
    %334 = vmatpush1.msra.mxu0 0.0
    %335 = vmatprep.subr.mxu0 0.0
    %336 = vmatpush1.msra.mxu0 0.0
    %337 = vmatprep.subr.mxu0 0.0
    %338 = vmatpush1.msra.mxu0 0.0
    %339 = vmatprep.subr.mxu0 0.0
    %340 = vmatpush1.msra.mxu0 0.0
    %341 = vmatprep.subr.mxu0 0.0
    %342 = vmatpush1.msra.mxu0 0.0
    %343 = vmatprep.subr.mxu0 0.0
    %344 = vmatpush1.msra.mxu0 0.0
    %345 = vmatprep.subr.mxu0 0.0
    %346 = vmatpush1.msra.mxu0 0.0
    %347 = vmatprep.subr.mxu0 0.0
    %348 = vmatpush1.msra.mxu0 0.0
    %349 = vmatprep.subr.mxu0 0.0
    %350 = vmatpush1.msra.mxu0 0.0
    %351 = vmatprep.subr.mxu0 0.0
    %352 = vmatpush1.msra.mxu0 0.0
    %353 = vmatprep.subr.mxu0 0.0
    %354 = vmatpush1.msra.mxu0 0.0
    %355 = vmatprep.subr.mxu0 0.0
    %356 = vmatpush1.msra.mxu0 0.0
    %357 = vmatprep.subr.mxu0 0.0
    %358 = vmatpush1.msra.mxu0 0.0
    %359 = vmatprep.subr.mxu0 0.0
    %360 = vmatpush1.msra.mxu0 0.0
    %361 = vmatprep.subr.mxu0 0.0
    %362 = vmatpush1.msra.mxu0 0.0
    %363 = vmatprep.subr.mxu0 0.0
    %364 = vmatpush1.msra.mxu0 0.0
    %365 = vmatprep.subr.mxu0 0.0
    %366 = vmatpush1.msra.mxu0 0.0
    %367 = vmatprep.subr.mxu0 0.0
    %368 = vmatpush1.msra.mxu0 0.0
    %369 = vmatprep.subr.mxu0 0.0
    %370 = vmatpush1.msra.mxu0 0.0
    %371 = vmatprep.subr.mxu0 0.0
    %372 = vmatpush1.msra.mxu0 0.0
    %373 = vmatprep.subr.mxu0 0.0
    %374 = vmatpush1.msra.mxu0 0.0
    %375 = vmatprep.mubr.f32.mxu0 0.0
    %376 = vmatmul.mubr.f32.gmra.mrb[0].mxu0 %v147
    %v377 = vpop.f32.mrb[0].mxu0
    %v378 = vadd.f32 %v309, %v377
    %v379 = vpop.f32.mrb[0].mxu0
    %380 = vdwg.mxu0
    %vm381 = vcmask 64512
    %v383 = vsel %vm381, %v216, 0
    %v386 = vsel %vm381, %v297, 0
    %388 = vmatprep.subr.mxu0 0.0
    %389 = vmatpush1.xpose.msra.mxu0 %v386
    %390 = vmatprep.subr.mxu0 0.0
    %391 = vmatpush1.xpose.msra.mxu0 0.0
    %392 = vmatprep.subr.mxu0 0.0
    %393 = vmatpush1.xpose.msra.mxu0 0.0
    %394 = vmatprep.subr.mxu0 0.0
    %395 = vmatpush1.xpose.msra.mxu0 0.0
    %396 = vmatprep.subr.mxu0 0.0
    %397 = vmatpush1.xpose.msra.mxu0 0.0
    %398 = vmatprep.subr.mxu0 0.0
    %399 = vmatpush1.xpose.msra.mxu0 0.0
    %400 = vmatprep.subr.mxu0 0.0
    %401 = vmatpush1.xpose.msra.mxu0 0.0
    %402 = vmatprep.subr.mxu0 0.0
    %403 = vmatpush1.xpose.msra.mxu0 0.0
    %404 = vmatprep.subr.mxu0 0.0
    %405 = vmatpush1.xpose.msra.mxu0 0.0
    %406 = vmatprep.subr.mxu0 0.0
    %407 = vmatpush1.xpose.msra.mxu0 0.0
    %408 = vmatprep.subr.mxu0 0.0
    %409 = vmatpush1.xpose.msra.mxu0 0.0
    %410 = vmatprep.subr.mxu0 0.0
    %411 = vmatpush1.xpose.msra.mxu0 0.0
    %412 = vmatprep.subr.mxu0 0.0
    %413 = vmatpush1.xpose.msra.mxu0 0.0
    %414 = vmatprep.subr.mxu0 0.0
    %415 = vmatpush1.xpose.msra.mxu0 0.0
    %416 = vmatprep.subr.mxu0 0.0
    %417 = vmatpush1.xpose.msra.mxu0 0.0
    %418 = vmatprep.subr.mxu0 0.0
    %419 = vmatpush1.xpose.msra.mxu0 0.0
    %420 = vmatprep.subr.mxu0 0.0
    %421 = vmatpush1.xpose.msra.mxu0 0.0
    %422 = vmatprep.subr.mxu0 0.0
    %423 = vmatpush1.xpose.msra.mxu0 0.0
    %424 = vmatprep.subr.mxu0 0.0
    %425 = vmatpush1.xpose.msra.mxu0 0.0
    %426 = vmatprep.subr.mxu0 0.0
    %427 = vmatpush1.xpose.msra.mxu0 0.0
    %428 = vmatprep.subr.mxu0 0.0
    %429 = vmatpush1.xpose.msra.mxu0 0.0
    %430 = vmatprep.subr.mxu0 0.0
    %431 = vmatpush1.xpose.msra.mxu0 0.0
    %432 = vmatprep.subr.mxu0 0.0
    %433 = vmatpush1.xpose.msra.mxu0 0.0
    %434 = vmatprep.subr.mxu0 0.0
    %435 = vmatpush1.xpose.msra.mxu0 0.0
    %436 = vmatprep.subr.mxu0 0.0
    %437 = vmatpush1.xpose.msra.mxu0 0.0
    %438 = vmatprep.subr.mxu0 0.0
    %439 = vmatpush1.xpose.msra.mxu0 0.0
    %440 = vmatprep.subr.mxu0 0.0
    %441 = vmatpush1.xpose.msra.mxu0 0.0
    %442 = vmatprep.subr.mxu0 0.0
    %443 = vmatpush1.xpose.msra.mxu0 0.0
    %444 = vmatprep.subr.mxu0 0.0
    %445 = vmatpush1.xpose.msra.mxu0 0.0
    %446 = vmatprep.subr.mxu0 0.0
    %447 = vmatpush1.xpose.msra.mxu0 0.0
    %448 = vmatprep.subr.mxu0 0.0
    %449 = vmatpush1.xpose.msra.mxu0 0.0
    %450 = vmatprep.subr.mxu0 0.0
    %451 = vmatpush1.xpose.msra.mxu0 0.0
    %452 = vmatprep.mubr.f32.mxu0 0.0
    %453 = vmatmul.mubr.f32.gmra.mrb[0].mxu0 %v383
    %v454 = vpop.f32.mrb[0].mxu0
    %v455 = vadd.f32 0.0, %v454
    %v456 = vpop.f32.mrb[0].mxu0
    %457 = vdwg.mxu0
    %v458 = vmul.f32 %v455, 0.35355338
    %v459 = vsel %vm381, %v458, -inf
    %460 = vmax.xlane.f32.xlu0 %v459
    %v461 = vpop.xlane.xlu0 %460
    %v462 = vsub.f32 %v458, %v461
    %v463 = vmul.f32 %v462, 1.442695
    %v464 = vpow.pop %v463
    %v465 = vsel %vm381, %v464, 0.0
    %466 = vadd.xlane.f32.xlu0 %v465
    %v467 = vpop.xlane.xlu0 %466
    %v468 = vrcp.pop %v467
    %v469 = vmul.f32 %v464, %v468
    %v471 = vsel %vm381, %v469, 0
    %473 = vmatprep.subr.mxu0 0.0
    %474 = vmatpush1.msra.mxu0 %v378
    %475 = vmatprep.subr.mxu0 0.0
    %476 = vmatpush1.msra.mxu0 0.0
    %477 = vmatprep.subr.mxu0 0.0
    %478 = vmatpush1.msra.mxu0 0.0
    %479 = vmatprep.subr.mxu0 0.0
    %480 = vmatpush1.msra.mxu0 0.0
    %481 = vmatprep.subr.mxu0 0.0
    %482 = vmatpush1.msra.mxu0 0.0
    %483 = vmatprep.subr.mxu0 0.0
    %484 = vmatpush1.msra.mxu0 0.0
    %485 = vmatprep.subr.mxu0 0.0
    %486 = vmatpush1.msra.mxu0 0.0
    %487 = vmatprep.subr.mxu0 0.0
    %488 = vmatpush1.msra.mxu0 0.0
    %489 = vmatprep.subr.mxu0 0.0
    %490 = vmatpush1.msra.mxu0 0.0
    %491 = vmatprep.subr.mxu0 0.0
    %492 = vmatpush1.msra.mxu0 0.0
    %493 = vmatprep.subr.mxu0 0.0
    %494 = vmatpush1.msra.mxu0 0.0
    %495 = vmatprep.subr.mxu0 0.0
    %496 = vmatpush1.msra.mxu0 0.0
    %497 = vmatprep.subr.mxu0 0.0
    %498 = vmatpush1.msra.mxu0 0.0
    %499 = vmatprep.subr.mxu0 0.0
    %500 = vmatpush1.msra.mxu0 0.0
    %501 = vmatprep.subr.mxu0 0.0
    %502 = vmatpush1.msra.mxu0 0.0
    %503 = vmatprep.subr.mxu0 0.0
    %504 = vmatpush1.msra.mxu0 0.0
    %505 = vmatprep.subr.mxu0 0.0
    %506 = vmatpush1.msra.mxu0 0.0
    %507 = vmatprep.subr.mxu0 0.0
    %508 = vmatpush1.msra.mxu0 0.0
    %509 = vmatprep.subr.mxu0 0.0
    %510 = vmatpush1.msra.mxu0 0.0
    %511 = vmatprep.subr.mxu0 0.0
    %512 = vmatpush1.msra.mxu0 0.0
    %513 = vmatprep.subr.mxu0 0.0
    %514 = vmatpush1.msra.mxu0 0.0
    %515 = vmatprep.subr.mxu0 0.0
    %516 = vmatpush1.msra.mxu0 0.0
    %517 = vmatprep.subr.mxu0 0.0
    %518 = vmatpush1.msra.mxu0 0.0
    %519 = vmatprep.subr.mxu0 0.0
    %520 = vmatpush1.msra.mxu0 0.0
    %521 = vmatprep.subr.mxu0 0.0
    %522 = vmatpush1.msra.mxu0 0.0
    %523 = vmatprep.subr.mxu0 0.0
    %524 = vmatpush1.msra.mxu0 0.0
    %525 = vmatprep.subr.mxu0 0.0
    %526 = vmatpush1.msra.mxu0 0.0
    %527 = vmatprep.subr.mxu0 0.0
    %528 = vmatpush1.msra.mxu0 0.0
    %529 = vmatprep.subr.mxu0 0.0
    %530 = vmatpush1.msra.mxu0 0.0
    %531 = vmatprep.subr.mxu0 0.0
    %532 = vmatpush1.msra.mxu0 0.0
    %533 = vmatprep.subr.mxu0 0.0
    %534 = vmatpush1.msra.mxu0 0.0
    %535 = vmatprep.subr.mxu0 0.0
    %536 = vmatpush1.msra.mxu0 0.0
    %537 = vmatprep.mubr.f32.mxu0 0.0
    %538 = vmatmul.mubr.f32.gmra.mrb[0].mxu0 %v471
    %v539 = vpop.f32.mrb[0].mxu0
    %v540 = vadd.f32 0.0, %v539
    %v541 = vpop.f32.mrb[0].mxu0
    %542 = vdwg.mxu0
    %v543 = vld [vmem:[%s10] sm:$0xff]
    %s544 = scalar_lea.vmem %s4, 32
    %v545 = vld [vmem:[%s544] sm:$0xff]
    %v546 = vld [vmem:[%s544 + $0x8] sm:$0xff]
    %v547 = vld [vmem:[%s544 + $0x10] sm:$0xff]
    %v548 = vld [vmem:[%s544 + $0x18] sm:$0xff]
    %s549 = scalar_lea.vmem %s5, 1
    %v550 = vld [vmem:[%s549] sm:$0x1]
    %v552 = vlaneseq
    %v553 = vshrl.u32 %v552, 7
    %v554 = vsub.s32 0, %v553
    %v555 = vrot.slane %v550, %v554
    %557 = vmatprep.subr.mxu0 0.0
    %558 = vmatpush1.msra.mxu0 %v545
    %559 = vmatprep.subr.mxu0 0.0
    %560 = vmatpush1.msra.mxu0 %v546
    %561 = vmatprep.subr.mxu0 0.0
    %562 = vmatpush1.msra.mxu0 %v547
    %563 = vmatprep.subr.mxu0 0.0
    %564 = vmatpush1.msra.mxu0 %v548
    %565 = vmatprep.subr.mxu0 0.0
    %566 = vmatpush1.msra.mxu0 0.0
    %567 = vmatprep.subr.mxu0 0.0
    %568 = vmatpush1.msra.mxu0 0.0
    %569 = vmatprep.subr.mxu0 0.0
    %570 = vmatpush1.msra.mxu0 0.0
    %571 = vmatprep.subr.mxu0 0.0
    %572 = vmatpush1.msra.mxu0 0.0
    %573 = vmatprep.subr.mxu0 0.0
    %574 = vmatpush1.msra.mxu0 0.0
    %575 = vmatprep.subr.mxu0 0.0
    %576 = vmatpush1.msra.mxu0 0.0
    %577 = vmatprep.subr.mxu0 0.0
    %578 = vmatpush1.msra.mxu0 0.0
    %579 = vmatprep.subr.mxu0 0.0
    %580 = vmatpush1.msra.mxu0 0.0
    %581 = vmatprep.subr.mxu0 0.0
    %582 = vmatpush1.msra.mxu0 0.0
    %583 = vmatprep.subr.mxu0 0.0
    %584 = vmatpush1.msra.mxu0 0.0
    %585 = vmatprep.subr.mxu0 0.0
    %586 = vmatpush1.msra.mxu0 0.0
    %587 = vmatprep.subr.mxu0 0.0
    %588 = vmatpush1.msra.mxu0 0.0
    %589 = vmatprep.subr.mxu0 0.0
    %590 = vmatpush1.msra.mxu0 0.0
    %591 = vmatprep.subr.mxu0 0.0
    %592 = vmatpush1.msra.mxu0 0.0
    %593 = vmatprep.subr.mxu0 0.0
    %594 = vmatpush1.msra.mxu0 0.0
    %595 = vmatprep.subr.mxu0 0.0
    %596 = vmatpush1.msra.mxu0 0.0
    %597 = vmatprep.subr.mxu0 0.0
    %598 = vmatpush1.msra.mxu0 0.0
    %599 = vmatprep.subr.mxu0 0.0
    %600 = vmatpush1.msra.mxu0 0.0
    %601 = vmatprep.subr.mxu0 0.0
    %602 = vmatpush1.msra.mxu0 0.0
    %603 = vmatprep.subr.mxu0 0.0
    %604 = vmatpush1.msra.mxu0 0.0
    %605 = vmatprep.subr.mxu0 0.0
    %606 = vmatpush1.msra.mxu0 0.0
    %607 = vmatprep.subr.mxu0 0.0
    %608 = vmatpush1.msra.mxu0 0.0
    %609 = vmatprep.subr.mxu0 0.0
    %610 = vmatpush1.msra.mxu0 0.0
    %611 = vmatprep.subr.mxu0 0.0
    %612 = vmatpush1.msra.mxu0 0.0
    %613 = vmatprep.subr.mxu0 0.0
    %614 = vmatpush1.msra.mxu0 0.0
    %615 = vmatprep.subr.mxu0 0.0
    %616 = vmatpush1.msra.mxu0 0.0
    %617 = vmatprep.subr.mxu0 0.0
    %618 = vmatpush1.msra.mxu0 0.0
    %619 = vmatprep.subr.mxu0 0.0
    %620 = vmatpush1.msra.mxu0 0.0
    %621 = vmatprep.mubr.f32.mxu0 0.0
    %622 = vmatmul.mubr.f32.gmra.mrb[0].mxu0 %v147
    %v623 = vpop.f32.mrb[0].mxu0
    %v624 = vadd.f32 %v555, %v623
    %v625 = vpop.f32.mrb[0].mxu0
    %626 = vdwg.mxu0
    %s627 = scalar_lea.vmem %s6, 32
    %v628 = vld [vmem:[%s627] sm:$0xff]
    %v629 = vld [vmem:[%s627 + $0x8] sm:$0xff]
    %v630 = vld [vmem:[%s627 + $0x10] sm:$0xff]
    %v631 = vld [vmem:[%s627 + $0x18] sm:$0xff]
    %s632 = scalar_lea.vmem %s7, 1
    %v633 = vld [vmem:[%s632] sm:$0x1]
    %v635 = vlaneseq
    %v636 = vshrl.u32 %v635, 7
    %v637 = vsub.s32 0, %v636
    %v638 = vrot.slane %v633, %v637
    %640 = vmatprep.subr.mxu0 0.0
    %641 = vmatpush1.msra.mxu0 %v628
    %642 = vmatprep.subr.mxu0 0.0
    %643 = vmatpush1.msra.mxu0 %v629
    %644 = vmatprep.subr.mxu0 0.0
    %645 = vmatpush1.msra.mxu0 %v630
    %646 = vmatprep.subr.mxu0 0.0
    %647 = vmatpush1.msra.mxu0 %v631
    %648 = vmatprep.subr.mxu0 0.0
    %649 = vmatpush1.msra.mxu0 0.0
    %650 = vmatprep.subr.mxu0 0.0
    %651 = vmatpush1.msra.mxu0 0.0
    %652 = vmatprep.subr.mxu0 0.0
    %653 = vmatpush1.msra.mxu0 0.0
    %654 = vmatprep.subr.mxu0 0.0
    %655 = vmatpush1.msra.mxu0 0.0
    %656 = vmatprep.subr.mxu0 0.0
    %657 = vmatpush1.msra.mxu0 0.0
    %658 = vmatprep.subr.mxu0 0.0
    %659 = vmatpush1.msra.mxu0 0.0
    %660 = vmatprep.subr.mxu0 0.0
    %661 = vmatpush1.msra.mxu0 0.0
    %662 = vmatprep.subr.mxu0 0.0
    %663 = vmatpush1.msra.mxu0 0.0
    %664 = vmatprep.subr.mxu0 0.0
    %665 = vmatpush1.msra.mxu0 0.0
    %666 = vmatprep.subr.mxu0 0.0
    %667 = vmatpush1.msra.mxu0 0.0
    %668 = vmatprep.subr.mxu0 0.0
    %669 = vmatpush1.msra.mxu0 0.0
    %670 = vmatprep.subr.mxu0 0.0
    %671 = vmatpush1.msra.mxu0 0.0
    %672 = vmatprep.subr.mxu0 0.0
    %673 = vmatpush1.msra.mxu0 0.0
    %674 = vmatprep.subr.mxu0 0.0
    %675 = vmatpush1.msra.mxu0 0.0
    %676 = vmatprep.subr.mxu0 0.0
    %677 = vmatpush1.msra.mxu0 0.0
    %678 = vmatprep.subr.mxu0 0.0
    %679 = vmatpush1.msra.mxu0 0.0
    %680 = vmatprep.subr.mxu0 0.0
    %681 = vmatpush1.msra.mxu0 0.0
    %682 = vmatprep.subr.mxu0 0.0
    %683 = vmatpush1.msra.mxu0 0.0
    %684 = vmatprep.subr.mxu0 0.0
    %685 = vmatpush1.msra.mxu0 0.0
    %686 = vmatprep.subr.mxu0 0.0
    %687 = vmatpush1.msra.mxu0 0.0
    %688 = vmatprep.subr.mxu0 0.0
    %689 = vmatpush1.msra.mxu0 0.0
    %690 = vmatprep.subr.mxu0 0.0
    %691 = vmatpush1.msra.mxu0 0.0
    %692 = vmatprep.subr.mxu0 0.0
    %693 = vmatpush1.msra.mxu0 0.0
    %694 = vmatprep.subr.mxu0 0.0
    %695 = vmatpush1.msra.mxu0 0.0
    %696 = vmatprep.subr.mxu0 0.0
    %697 = vmatpush1.msra.mxu0 0.0
    %698 = vmatprep.subr.mxu0 0.0
    %699 = vmatpush1.msra.mxu0 0.0
    %700 = vmatprep.subr.mxu0 0.0
    %701 = vmatpush1.msra.mxu0 0.0
    %702 = vmatprep.subr.mxu0 0.0
    %703 = vmatpush1.msra.mxu0 0.0
    %704 = vmatprep.mubr.f32.mxu0 0.0
    %705 = vmatmul.mubr.f32.gmra.mrb[0].mxu0 %v147
    %v706 = vpop.f32.mrb[0].mxu0
    %v707 = vadd.f32 %v638, %v706
    %v708 = vpop.f32.mrb[0].mxu0
    %709 = vdwg.mxu0
    %s710 = scalar_lea.vmem %s8, 32
    %v711 = vld [vmem:[%s710] sm:$0xff]
    %v712 = vld [vmem:[%s710 + $0x8] sm:$0xff]
    %v713 = vld [vmem:[%s710 + $0x10] sm:$0xff]
    %v714 = vld [vmem:[%s710 + $0x18] sm:$0xff]
    %s715 = scalar_lea.vmem %s9, 1
    %v716 = vld [vmem:[%s715] sm:$0x1]
    %v718 = vlaneseq
    %v719 = vshrl.u32 %v718, 7
    %v720 = vsub.s32 0, %v719
    %v721 = vrot.slane %v716, %v720
    %723 = vmatprep.subr.mxu0 0.0
    %724 = vmatpush1.msra.mxu0 %v711
    %725 = vmatprep.subr.mxu0 0.0
    %726 = vmatpush1.msra.mxu0 %v712
    %727 = vmatprep.subr.mxu0 0.0
    %728 = vmatpush1.msra.mxu0 %v713
    %729 = vmatprep.subr.mxu0 0.0
    %730 = vmatpush1.msra.mxu0 %v714
    %731 = vmatprep.subr.mxu0 0.0
    %732 = vmatpush1.msra.mxu0 0.0
    %733 = vmatprep.subr.mxu0 0.0
    %734 = vmatpush1.msra.mxu0 0.0
    %735 = vmatprep.subr.mxu0 0.0
    %736 = vmatpush1.msra.mxu0 0.0
    %737 = vmatprep.subr.mxu0 0.0
    %738 = vmatpush1.msra.mxu0 0.0
    %739 = vmatprep.subr.mxu0 0.0
    %740 = vmatpush1.msra.mxu0 0.0
    %741 = vmatprep.subr.mxu0 0.0
    %742 = vmatpush1.msra.mxu0 0.0
    %743 = vmatprep.subr.mxu0 0.0
    %744 = vmatpush1.msra.mxu0 0.0
    %745 = vmatprep.subr.mxu0 0.0
    %746 = vmatpush1.msra.mxu0 0.0
    %747 = vmatprep.subr.mxu0 0.0
    %748 = vmatpush1.msra.mxu0 0.0
    %749 = vmatprep.subr.mxu0 0.0
    %750 = vmatpush1.msra.mxu0 0.0
    %751 = vmatprep.subr.mxu0 0.0
    %752 = vmatpush1.msra.mxu0 0.0
    %753 = vmatprep.subr.mxu0 0.0
    %754 = vmatpush1.msra.mxu0 0.0
    %755 = vmatprep.subr.mxu0 0.0
    %756 = vmatpush1.msra.mxu0 0.0
    %757 = vmatprep.subr.mxu0 0.0
    %758 = vmatpush1.msra.mxu0 0.0
    %759 = vmatprep.subr.mxu0 0.0
    %760 = vmatpush1.msra.mxu0 0.0
    %761 = vmatprep.subr.mxu0 0.0
    %762 = vmatpush1.msra.mxu0 0.0
    %763 = vmatprep.subr.mxu0 0.0
    %764 = vmatpush1.msra.mxu0 0.0
    %765 = vmatprep.subr.mxu0 0.0
    %766 = vmatpush1.msra.mxu0 0.0
    %767 = vmatprep.subr.mxu0 0.0
    %768 = vmatpush1.msra.mxu0 0.0
    %769 = vmatprep.subr.mxu0 0.0
    %770 = vmatpush1.msra.mxu0 0.0
    %771 = vmatprep.subr.mxu0 0.0
    %772 = vmatpush1.msra.mxu0 0.0
    %773 = vmatprep.subr.mxu0 0.0
    %774 = vmatpush1.msra.mxu0 0.0
    %775 = vmatprep.subr.mxu0 0.0
    %776 = vmatpush1.msra.mxu0 0.0
    %777 = vmatprep.subr.mxu0 0.0
    %778 = vmatpush1.msra.mxu0 0.0
    %779 = vmatprep.subr.mxu0 0.0
    %780 = vmatpush1.msra.mxu0 0.0
    %781 = vmatprep.subr.mxu0 0.0
    %782 = vmatpush1.msra.mxu0 0.0
    %783 = vmatprep.subr.mxu0 0.0
    %784 = vmatpush1.msra.mxu0 0.0
    %785 = vmatprep.subr.mxu0 0.0
    %786 = vmatpush1.msra.mxu0 0.0
    %787 = vmatprep.mubr.f32.mxu0 0.0
    %788 = vmatmul.mubr.f32.gmra.mrb[0].mxu0 %v147
    %v789 = vpop.f32.mrb[0].mxu0
    %v790 = vadd.f32 %v721, %v789
    %v791 = vpop.f32.mrb[0].mxu0
    %792 = vdwg.mxu0
    %v794 = vsel %vm381, %v624, 0
    %v797 = vsel %vm381, %v707, 0
    %799 = vmatprep.subr.mxu0 0.0
    %800 = vmatpush1.xpose.msra.mxu0 %v797
    %801 = vmatprep.subr.mxu0 0.0
    %802 = vmatpush1.xpose.msra.mxu0 0.0
    %803 = vmatprep.subr.mxu0 0.0
    %804 = vmatpush1.xpose.msra.mxu0 0.0
    %805 = vmatprep.subr.mxu0 0.0
    %806 = vmatpush1.xpose.msra.mxu0 0.0
    %807 = vmatprep.subr.mxu0 0.0
    %808 = vmatpush1.xpose.msra.mxu0 0.0
    %809 = vmatprep.subr.mxu0 0.0
    %810 = vmatpush1.xpose.msra.mxu0 0.0
    %811 = vmatprep.subr.mxu0 0.0
    %812 = vmatpush1.xpose.msra.mxu0 0.0
    %813 = vmatprep.subr.mxu0 0.0
    %814 = vmatpush1.xpose.msra.mxu0 0.0
    %815 = vmatprep.subr.mxu0 0.0
    %816 = vmatpush1.xpose.msra.mxu0 0.0
    %817 = vmatprep.subr.mxu0 0.0
    %818 = vmatpush1.xpose.msra.mxu0 0.0
    %819 = vmatprep.subr.mxu0 0.0
    %820 = vmatpush1.xpose.msra.mxu0 0.0
    %821 = vmatprep.subr.mxu0 0.0
    %822 = vmatpush1.xpose.msra.mxu0 0.0
    %823 = vmatprep.subr.mxu0 0.0
    %824 = vmatpush1.xpose.msra.mxu0 0.0
    %825 = vmatprep.subr.mxu0 0.0
    %826 = vmatpush1.xpose.msra.mxu0 0.0
    %827 = vmatprep.subr.mxu0 0.0
    %828 = vmatpush1.xpose.msra.mxu0 0.0
    %829 = vmatprep.subr.mxu0 0.0
    %830 = vmatpush1.xpose.msra.mxu0 0.0
    %831 = vmatprep.subr.mxu0 0.0
    %832 = vmatpush1.xpose.msra.mxu0 0.0
    %833 = vmatprep.subr.mxu0 0.0
    %834 = vmatpush1.xpose.msra.mxu0 0.0
    %835 = vmatprep.subr.mxu0 0.0
    %836 = vmatpush1.xpose.msra.mxu0 0.0
    %837 = vmatprep.subr.mxu0 0.0
    %838 = vmatpush1.xpose.msra.mxu0 0.0
    %839 = vmatprep.subr.mxu0 0.0
    %840 = vmatpush1.xpose.msra.mxu0 0.0
    %841 = vmatprep.subr.mxu0 0.0
    %842 = vmatpush1.xpose.msra.mxu0 0.0
    %843 = vmatprep.subr.mxu0 0.0
    %844 = vmatpush1.xpose.msra.mxu0 0.0
    %845 = vmatprep.subr.mxu0 0.0
    %846 = vmatpush1.xpose.msra.mxu0 0.0
    %847 = vmatprep.subr.mxu0 0.0
    %848 = vmatpush1.xpose.msra.mxu0 0.0
    %849 = vmatprep.subr.mxu0 0.0
    %850 = vmatpush1.xpose.msra.mxu0 0.0
    %851 = vmatprep.subr.mxu0 0.0
    %852 = vmatpush1.xpose.msra.mxu0 0.0
    %853 = vmatprep.subr.mxu0 0.0
    %854 = vmatpush1.xpose.msra.mxu0 0.0
    %855 = vmatprep.subr.mxu0 0.0
    %856 = vmatpush1.xpose.msra.mxu0 0.0
    %857 = vmatprep.subr.mxu0 0.0
    %858 = vmatpush1.xpose.msra.mxu0 0.0
    %859 = vmatprep.subr.mxu0 0.0
    %860 = vmatpush1.xpose.msra.mxu0 0.0
    %861 = vmatprep.subr.mxu0 0.0
    %862 = vmatpush1.xpose.msra.mxu0 0.0
    %863 = vmatprep.mubr.f32.mxu0 0.0
    %864 = vmatmul.mubr.f32.gmra.mrb[0].mxu0 %v794
    %v865 = vpop.f32.mrb[0].mxu0
    %v866 = vadd.f32 0.0, %v865
    %v867 = vpop.f32.mrb[0].mxu0
    %868 = vdwg.mxu0
    %v869 = vmul.f32 %v866, 0.35355338
    %v870 = vsel %vm381, %v869, -inf
    %871 = vmax.xlane.f32.xlu0 %v870
    %v872 = vpop.xlane.xlu0 %871
    %v873 = vsub.f32 %v869, %v872
    %v874 = vmul.f32 %v873, 1.442695
    %v875 = vpow.pop %v874
    %v876 = vsel %vm381, %v875, 0.0
    %877 = vadd.xlane.f32.xlu0 %v876
    %v878 = vpop.xlane.xlu0 %877
    %v879 = vrcp.pop %v878
    %v880 = vmul.f32 %v875, %v879
    %v882 = vsel %vm381, %v880, 0
    %884 = vmatprep.subr.mxu0 0.0
    %885 = vmatpush1.msra.mxu0 %v790
    %886 = vmatprep.subr.mxu0 0.0
    %887 = vmatpush1.msra.mxu0 0.0
    %888 = vmatprep.subr.mxu0 0.0
    %889 = vmatpush1.msra.mxu0 0.0
    %890 = vmatprep.subr.mxu0 0.0
    %891 = vmatpush1.msra.mxu0 0.0
    %892 = vmatprep.subr.mxu0 0.0
    %893 = vmatpush1.msra.mxu0 0.0
    %894 = vmatprep.subr.mxu0 0.0
    %895 = vmatpush1.msra.mxu0 0.0
    %896 = vmatprep.subr.mxu0 0.0
    %897 = vmatpush1.msra.mxu0 0.0
    %898 = vmatprep.subr.mxu0 0.0
    %899 = vmatpush1.msra.mxu0 0.0
    %900 = vmatprep.subr.mxu0 0.0
    %901 = vmatpush1.msra.mxu0 0.0
    %902 = vmatprep.subr.mxu0 0.0
    %903 = vmatpush1.msra.mxu0 0.0
    %904 = vmatprep.subr.mxu0 0.0
    %905 = vmatpush1.msra.mxu0 0.0
    %906 = vmatprep.subr.mxu0 0.0
    %907 = vmatpush1.msra.mxu0 0.0
    %908 = vmatprep.subr.mxu0 0.0
    %909 = vmatpush1.msra.mxu0 0.0
    %910 = vmatprep.subr.mxu0 0.0
    %911 = vmatpush1.msra.mxu0 0.0
    %912 = vmatprep.subr.mxu0 0.0
    %913 = vmatpush1.msra.mxu0 0.0
    %914 = vmatprep.subr.mxu0 0.0
    %915 = vmatpush1.msra.mxu0 0.0
    %916 = vmatprep.subr.mxu0 0.0
    %917 = vmatpush1.msra.mxu0 0.0
    %918 = vmatprep.subr.mxu0 0.0
    %919 = vmatpush1.msra.mxu0 0.0
    %920 = vmatprep.subr.mxu0 0.0
    %921 = vmatpush1.msra.mxu0 0.0
    %922 = vmatprep.subr.mxu0 0.0
    %923 = vmatpush1.msra.mxu0 0.0
    %924 = vmatprep.subr.mxu0 0.0
    %925 = vmatpush1.msra.mxu0 0.0
    %926 = vmatprep.subr.mxu0 0.0
    %927 = vmatpush1.msra.mxu0 0.0
    %928 = vmatprep.subr.mxu0 0.0
    %929 = vmatpush1.msra.mxu0 0.0
    %930 = vmatprep.subr.mxu0 0.0
    %931 = vmatpush1.msra.mxu0 0.0
    %932 = vmatprep.subr.mxu0 0.0
    %933 = vmatpush1.msra.mxu0 0.0
    %934 = vmatprep.subr.mxu0 0.0
    %935 = vmatpush1.msra.mxu0 0.0
    %936 = vmatprep.subr.mxu0 0.0
    %937 = vmatpush1.msra.mxu0 0.0
    %938 = vmatprep.subr.mxu0 0.0
    %939 = vmatpush1.msra.mxu0 0.0
    %940 = vmatprep.subr.mxu0 0.0
    %941 = vmatpush1.msra.mxu0 0.0
    %942 = vmatprep.subr.mxu0 0.0
    %943 = vmatpush1.msra.mxu0 0.0
    %944 = vmatprep.subr.mxu0 0.0
    %945 = vmatpush1.msra.mxu0 0.0
    %946 = vmatprep.subr.mxu0 0.0
    %947 = vmatpush1.msra.mxu0 0.0
    %948 = vmatprep.mubr.f32.mxu0 0.0
    %949 = vmatmul.mubr.f32.gmra.mrb[0].mxu0 %v882
    %v950 = vpop.f32.mrb[0].mxu0
    %v951 = vadd.f32 0.0, %v950
    %v952 = vpop.f32.mrb[0].mxu0
    %953 = vdwg.mxu0
    %s954 = scalar_lea.vmem %s10, 8
    %v955 = vld [vmem:[%s954] sm:$0xff]
    %v957 = vsel %vm381, %v951, 0
    %959 = vmatprep.subr.mxu0 0.0
    %960 = vmatpush1.msra.mxu0 %v955
    %961 = vmatprep.subr.mxu0 0.0
    %962 = vmatpush1.msra.mxu0 0.0
    %963 = vmatprep.subr.mxu0 0.0
    %964 = vmatpush1.msra.mxu0 0.0
    %965 = vmatprep.subr.mxu0 0.0
    %966 = vmatpush1.msra.mxu0 0.0
    %967 = vmatprep.subr.mxu0 0.0
    %968 = vmatpush1.msra.mxu0 0.0
    %969 = vmatprep.subr.mxu0 0.0
    %970 = vmatpush1.msra.mxu0 0.0
    %971 = vmatprep.subr.mxu0 0.0
    %972 = vmatpush1.msra.mxu0 0.0
    %973 = vmatprep.subr.mxu0 0.0
    %974 = vmatpush1.msra.mxu0 0.0
    %975 = vmatprep.subr.mxu0 0.0
    %976 = vmatpush1.msra.mxu0 0.0
    %977 = vmatprep.subr.mxu0 0.0
    %978 = vmatpush1.msra.mxu0 0.0
    %979 = vmatprep.subr.mxu0 0.0
    %980 = vmatpush1.msra.mxu0 0.0
    %981 = vmatprep.subr.mxu0 0.0
    %982 = vmatpush1.msra.mxu0 0.0
    %983 = vmatprep.subr.mxu0 0.0
    %984 = vmatpush1.msra.mxu0 0.0
    %985 = vmatprep.subr.mxu0 0.0
    %986 = vmatpush1.msra.mxu0 0.0
    %987 = vmatprep.subr.mxu0 0.0
    %988 = vmatpush1.msra.mxu0 0.0
    %989 = vmatprep.subr.mxu0 0.0
    %990 = vmatpush1.msra.mxu0 0.0
    %991 = vmatprep.subr.mxu0 0.0
    %992 = vmatpush1.msra.mxu0 0.0
    %993 = vmatprep.subr.mxu0 0.0
    %994 = vmatpush1.msra.mxu0 0.0
    %995 = vmatprep.subr.mxu0 0.0
    %996 = vmatpush1.msra.mxu0 0.0
    %997 = vmatprep.subr.mxu0 0.0
    %998 = vmatpush1.msra.mxu0 0.0
    %999 = vmatprep.subr.mxu0 0.0
    %1000 = vmatpush1.msra.mxu0 0.0
    %1001 = vmatprep.subr.mxu0 0.0
    %1002 = vmatpush1.msra.mxu0 0.0
    %1003 = vmatprep.subr.mxu0 0.0
    %1004 = vmatpush1.msra.mxu0 0.0
    %1005 = vmatprep.subr.mxu0 0.0
    %1006 = vmatpush1.msra.mxu0 0.0
    %1007 = vmatprep.subr.mxu0 0.0
    %1008 = vmatpush1.msra.mxu0 0.0
    %1009 = vmatprep.subr.mxu0 0.0
    %1010 = vmatpush1.msra.mxu0 0.0
    %1011 = vmatprep.subr.mxu0 0.0
    %1012 = vmatpush1.msra.mxu0 0.0
    %1013 = vmatprep.subr.mxu0 0.0
    %1014 = vmatpush1.msra.mxu0 0.0
    %1015 = vmatprep.subr.mxu0 0.0
    %1016 = vmatpush1.msra.mxu0 0.0
    %1017 = vmatprep.subr.mxu0 0.0
    %1018 = vmatpush1.msra.mxu0 0.0
    %1019 = vmatprep.subr.mxu0 0.0
    %1020 = vmatpush1.msra.mxu0 0.0
    %1021 = vmatprep.subr.mxu0 0.0
    %1022 = vmatpush1.msra.mxu0 0.0
    %1023 = vmatprep.mubr.f32.mxu0 0.0
    %1024 = vmatmul.mubr.f32.gmra.mrb[0].mxu0 %v957
    %v1025 = vpop.f32.mrb[0].mxu0
    %v1026 = vadd.f32 0.0, %v1025
    %v1027 = vpop.f32.mrb[0].mxu0
    %1028 = vdwg.mxu0
    %v1030 = vsel %vm381, %v540, 0
    %1032 = vmatprep.subr.mxu0 0.0
    %1033 = vmatpush1.msra.mxu0 %v543
    %1034 = vmatprep.subr.mxu0 0.0
    %1035 = vmatpush1.msra.mxu0 0.0
    %1036 = vmatprep.subr.mxu0 0.0
    %1037 = vmatpush1.msra.mxu0 0.0
    %1038 = vmatprep.subr.mxu0 0.0
    %1039 = vmatpush1.msra.mxu0 0.0
    %1040 = vmatprep.subr.mxu0 0.0
    %1041 = vmatpush1.msra.mxu0 0.0
    %1042 = vmatprep.subr.mxu0 0.0
    %1043 = vmatpush1.msra.mxu0 0.0
    %1044 = vmatprep.subr.mxu0 0.0
    %1045 = vmatpush1.msra.mxu0 0.0
    %1046 = vmatprep.subr.mxu0 0.0
    %1047 = vmatpush1.msra.mxu0 0.0
    %1048 = vmatprep.subr.mxu0 0.0
    %1049 = vmatpush1.msra.mxu0 0.0
    %1050 = vmatprep.subr.mxu0 0.0
    %1051 = vmatpush1.msra.mxu0 0.0
    %1052 = vmatprep.subr.mxu0 0.0
    %1053 = vmatpush1.msra.mxu0 0.0
    %1054 = vmatprep.subr.mxu0 0.0
    %1055 = vmatpush1.msra.mxu0 0.0
    %1056 = vmatprep.subr.mxu0 0.0
    %1057 = vmatpush1.msra.mxu0 0.0
    %1058 = vmatprep.subr.mxu0 0.0
    %1059 = vmatpush1.msra.mxu0 0.0
    %1060 = vmatprep.subr.mxu0 0.0
    %1061 = vmatpush1.msra.mxu0 0.0
    %1062 = vmatprep.subr.mxu0 0.0
    %1063 = vmatpush1.msra.mxu0 0.0
    %1064 = vmatprep.subr.mxu0 0.0
    %1065 = vmatpush1.msra.mxu0 0.0
    %1066 = vmatprep.subr.mxu0 0.0
    %1067 = vmatpush1.msra.mxu0 0.0
    %1068 = vmatprep.subr.mxu0 0.0
    %1069 = vmatpush1.msra.mxu0 0.0
    %1070 = vmatprep.subr.mxu0 0.0
    %1071 = vmatpush1.msra.mxu0 0.0
    %1072 = vmatprep.subr.mxu0 0.0
    %1073 = vmatpush1.msra.mxu0 0.0
    %1074 = vmatprep.subr.mxu0 0.0
    %1075 = vmatpush1.msra.mxu0 0.0
    %1076 = vmatprep.subr.mxu0 0.0
    %1077 = vmatpush1.msra.mxu0 0.0
    %1078 = vmatprep.subr.mxu0 0.0
    %1079 = vmatpush1.msra.mxu0 0.0
    %1080 = vmatprep.subr.mxu0 0.0
    %1081 = vmatpush1.msra.mxu0 0.0
    %1082 = vmatprep.subr.mxu0 0.0
    %1083 = vmatpush1.msra.mxu0 0.0
    %1084 = vmatprep.subr.mxu0 0.0
    %1085 = vmatpush1.msra.mxu0 0.0
    %1086 = vmatprep.subr.mxu0 0.0
    %1087 = vmatpush1.msra.mxu0 0.0
    %1088 = vmatprep.subr.mxu0 0.0
    %1089 = vmatpush1.msra.mxu0 0.0
    %1090 = vmatprep.subr.mxu0 0.0
    %1091 = vmatpush1.msra.mxu0 0.0
    %1092 = vmatprep.subr.mxu0 0.0
    %1093 = vmatpush1.msra.mxu0 0.0
    %1094 = vmatprep.subr.mxu0 0.0
    %1095 = vmatpush1.msra.mxu0 0.0
    %1096 = vmatprep.mubr.f32.mxu0 0.0
    %1097 = vmatmul.mubr.f32.gmra.mrb[0].mxu0 %v1030
    %v1098 = vpop.f32.mrb[0].mxu0
    %v1099 = vadd.f32 %v1026, %v1098
    %v1100 = vpop.f32.mrb[0].mxu0
    %1101 = vdwg.mxu0
    %s1102 = scalar_lea.vmem %s4, 64
    %v1103 = vld [vmem:[%s1102] sm:$0xff]
    %v1104 = vld [vmem:[%s1102 + $0x8] sm:$0xff]
    %v1105 = vld [vmem:[%s1102 + $0x10] sm:$0xff]
    %v1106 = vld [vmem:[%s1102 + $0x18] sm:$0xff]
    %s1107 = scalar_lea.vmem %s5, 2
    %v1108 = vld [vmem:[%s1107] sm:$0x1]
    %v1110 = vlaneseq
    %v1111 = vshrl.u32 %v1110, 7
    %v1112 = vsub.s32 0, %v1111
    %v1113 = vrot.slane %v1108, %v1112
    %1115 = vmatprep.subr.mxu0 0.0
    %1116 = vmatpush1.msra.mxu0 %v1103
    %1117 = vmatprep.subr.mxu0 0.0
    %1118 = vmatpush1.msra.mxu0 %v1104
    %1119 = vmatprep.subr.mxu0 0.0
    %1120 = vmatpush1.msra.mxu0 %v1105
    %1121 = vmatprep.subr.mxu0 0.0
    %1122 = vmatpush1.msra.mxu0 %v1106
    %1123 = vmatprep.subr.mxu0 0.0
    %1124 = vmatpush1.msra.mxu0 0.0
    %1125 = vmatprep.subr.mxu0 0.0
    %1126 = vmatpush1.msra.mxu0 0.0
    %1127 = vmatprep.subr.mxu0 0.0
    %1128 = vmatpush1.msra.mxu0 0.0
    %1129 = vmatprep.subr.mxu0 0.0
    %1130 = vmatpush1.msra.mxu0 0.0
    %1131 = vmatprep.subr.mxu0 0.0
    %1132 = vmatpush1.msra.mxu0 0.0
    %1133 = vmatprep.subr.mxu0 0.0
    %1134 = vmatpush1.msra.mxu0 0.0
    %1135 = vmatprep.subr.mxu0 0.0
    %1136 = vmatpush1.msra.mxu0 0.0
    %1137 = vmatprep.subr.mxu0 0.0
    %1138 = vmatpush1.msra.mxu0 0.0
    %1139 = vmatprep.subr.mxu0 0.0
    %1140 = vmatpush1.msra.mxu0 0.0
    %1141 = vmatprep.subr.mxu0 0.0
    %1142 = vmatpush1.msra.mxu0 0.0
    %1143 = vmatprep.subr.mxu0 0.0
    %1144 = vmatpush1.msra.mxu0 0.0
    %1145 = vmatprep.subr.mxu0 0.0
    %1146 = vmatpush1.msra.mxu0 0.0
    %1147 = vmatprep.subr.mxu0 0.0
    %1148 = vmatpush1.msra.mxu0 0.0
    %1149 = vmatprep.subr.mxu0 0.0
    %1150 = vmatpush1.msra.mxu0 0.0
    %1151 = vmatprep.subr.mxu0 0.0
    %1152 = vmatpush1.msra.mxu0 0.0
    %1153 = vmatprep.subr.mxu0 0.0
    %1154 = vmatpush1.msra.mxu0 0.0
    %1155 = vmatprep.subr.mxu0 0.0
    %1156 = vmatpush1.msra.mxu0 0.0
    %1157 = vmatprep.subr.mxu0 0.0
    %1158 = vmatpush1.msra.mxu0 0.0
    %1159 = vmatprep.subr.mxu0 0.0
    %1160 = vmatpush1.msra.mxu0 0.0
    %1161 = vmatprep.subr.mxu0 0.0
    %1162 = vmatpush1.msra.mxu0 0.0
    %1163 = vmatprep.subr.mxu0 0.0
    %1164 = vmatpush1.msra.mxu0 0.0
    %1165 = vmatprep.subr.mxu0 0.0
    %1166 = vmatpush1.msra.mxu0 0.0
    %1167 = vmatprep.subr.mxu0 0.0
    %1168 = vmatpush1.msra.mxu0 0.0
    %1169 = vmatprep.subr.mxu0 0.0
    %1170 = vmatpush1.msra.mxu0 0.0
    %1171 = vmatprep.subr.mxu0 0.0
    %1172 = vmatpush1.msra.mxu0 0.0
    %1173 = vmatprep.subr.mxu0 0.0
    %1174 = vmatpush1.msra.mxu0 0.0
    %1175 = vmatprep.subr.mxu0 0.0
    %1176 = vmatpush1.msra.mxu0 0.0
    %1177 = vmatprep.subr.mxu0 0.0
    %1178 = vmatpush1.msra.mxu0 0.0
    %1179 = vmatprep.mubr.f32.mxu0 0.0
    %1180 = vmatmul.mubr.f32.gmra.mrb[0].mxu0 %v147
    %v1181 = vpop.f32.mrb[0].mxu0
    %v1182 = vadd.f32 %v1113, %v1181
    %v1183 = vpop.f32.mrb[0].mxu0
    %1184 = vdwg.mxu0
    %s1185 = scalar_lea.vmem %s6, 64
    %v1186 = vld [vmem:[%s1185] sm:$0xff]
    %v1187 = vld [vmem:[%s1185 + $0x8] sm:$0xff]
    %v1188 = vld [vmem:[%s1185 + $0x10] sm:$0xff]
    %v1189 = vld [vmem:[%s1185 + $0x18] sm:$0xff]
    %s1190 = scalar_lea.vmem %s7, 2
    %v1191 = vld [vmem:[%s1190] sm:$0x1]
    %v1193 = vlaneseq
    %v1194 = vshrl.u32 %v1193, 7
    %v1195 = vsub.s32 0, %v1194
    %v1196 = vrot.slane %v1191, %v1195
    %1198 = vmatprep.subr.mxu0 0.0
    %1199 = vmatpush1.msra.mxu0 %v1186
    %1200 = vmatprep.subr.mxu0 0.0
    %1201 = vmatpush1.msra.mxu0 %v1187
    %1202 = vmatprep.subr.mxu0 0.0
    %1203 = vmatpush1.msra.mxu0 %v1188
    %1204 = vmatprep.subr.mxu0 0.0
    %1205 = vmatpush1.msra.mxu0 %v1189
    %1206 = vmatprep.subr.mxu0 0.0
    %1207 = vmatpush1.msra.mxu0 0.0
    %1208 = vmatprep.subr.mxu0 0.0
    %1209 = vmatpush1.msra.mxu0 0.0
    %1210 = vmatprep.subr.mxu0 0.0
    %1211 = vmatpush1.msra.mxu0 0.0
    %1212 = vmatprep.subr.mxu0 0.0
    %1213 = vmatpush1.msra.mxu0 0.0
    %1214 = vmatprep.subr.mxu0 0.0
    %1215 = vmatpush1.msra.mxu0 0.0
    %1216 = vmatprep.subr.mxu0 0.0
    %1217 = vmatpush1.msra.mxu0 0.0
    %1218 = vmatprep.subr.mxu0 0.0
    %1219 = vmatpush1.msra.mxu0 0.0
    %1220 = vmatprep.subr.mxu0 0.0
    %1221 = vmatpush1.msra.mxu0 0.0
    %1222 = vmatprep.subr.mxu0 0.0
    %1223 = vmatpush1.msra.mxu0 0.0
    %1224 = vmatprep.subr.mxu0 0.0
    %1225 = vmatpush1.msra.mxu0 0.0
    %1226 = vmatprep.subr.mxu0 0.0
    %1227 = vmatpush1.msra.mxu0 0.0
    %1228 = vmatprep.subr.mxu0 0.0
    %1229 = vmatpush1.msra.mxu0 0.0
    %1230 = vmatprep.subr.mxu0 0.0
    %1231 = vmatpush1.msra.mxu0 0.0
    %1232 = vmatprep.subr.mxu0 0.0
    %1233 = vmatpush1.msra.mxu0 0.0
    %1234 = vmatprep.subr.mxu0 0.0
    %1235 = vmatpush1.msra.mxu0 0.0
    %1236 = vmatprep.subr.mxu0 0.0
    %1237 = vmatpush1.msra.mxu0 0.0
    %1238 = vmatprep.subr.mxu0 0.0
    %1239 = vmatpush1.msra.mxu0 0.0
    %1240 = vmatprep.subr.mxu0 0.0
    %1241 = vmatpush1.msra.mxu0 0.0
    %1242 = vmatprep.subr.mxu0 0.0
    %1243 = vmatpush1.msra.mxu0 0.0
    %1244 = vmatprep.subr.mxu0 0.0
    %1245 = vmatpush1.msra.mxu0 0.0
    %1246 = vmatprep.subr.mxu0 0.0
    %1247 = vmatpush1.msra.mxu0 0.0
    %1248 = vmatprep.subr.mxu0 0.0
    %1249 = vmatpush1.msra.mxu0 0.0
    %1250 = vmatprep.subr.mxu0 0.0
    %1251 = vmatpush1.msra.mxu0 0.0
    %1252 = vmatprep.subr.mxu0 0.0
    %1253 = vmatpush1.msra.mxu0 0.0
    %1254 = vmatprep.subr.mxu0 0.0
    %1255 = vmatpush1.msra.mxu0 0.0
    %1256 = vmatprep.subr.mxu0 0.0
    %1257 = vmatpush1.msra.mxu0 0.0
    %1258 = vmatprep.subr.mxu0 0.0
    %1259 = vmatpush1.msra.mxu0 0.0
    %1260 = vmatprep.subr.mxu0 0.0
    %1261 = vmatpush1.msra.mxu0 0.0
    %1262 = vmatprep.mubr.f32.mxu0 0.0
    %1263 = vmatmul.mubr.f32.gmra.mrb[0].mxu0 %v147
    %v1264 = vpop.f32.mrb[0].mxu0
    %v1265 = vadd.f32 %v1196, %v1264
    %v1266 = vpop.f32.mrb[0].mxu0
    %1267 = vdwg.mxu0
    %s1268 = scalar_lea.vmem %s8, 64
    %v1269 = vld [vmem:[%s1268] sm:$0xff]
    %v1270 = vld [vmem:[%s1268 + $0x8] sm:$0xff]
    %v1271 = vld [vmem:[%s1268 + $0x10] sm:$0xff]
    %v1272 = vld [vmem:[%s1268 + $0x18] sm:$0xff]
    %s1273 = scalar_lea.vmem %s9, 2
    %v1274 = vld [vmem:[%s1273] sm:$0x1]
    %v1276 = vlaneseq
    %v1277 = vshrl.u32 %v1276, 7
    %v1278 = vsub.s32 0, %v1277
    %v1279 = vrot.slane %v1274, %v1278
    %1281 = vmatprep.subr.mxu0 0.0
    %1282 = vmatpush1.msra.mxu0 %v1269
    %1283 = vmatprep.subr.mxu0 0.0
    %1284 = vmatpush1.msra.mxu0 %v1270
    %1285 = vmatprep.subr.mxu0 0.0
    %1286 = vmatpush1.msra.mxu0 %v1271
    %1287 = vmatprep.subr.mxu0 0.0
    %1288 = vmatpush1.msra.mxu0 %v1272
    %1289 = vmatprep.subr.mxu0 0.0
    %1290 = vmatpush1.msra.mxu0 0.0
    %1291 = vmatprep.subr.mxu0 0.0
    %1292 = vmatpush1.msra.mxu0 0.0
    %1293 = vmatprep.subr.mxu0 0.0
    %1294 = vmatpush1.msra.mxu0 0.0
    %1295 = vmatprep.subr.mxu0 0.0
    %1296 = vmatpush1.msra.mxu0 0.0
    %1297 = vmatprep.subr.mxu0 0.0
    %1298 = vmatpush1.msra.mxu0 0.0
    %1299 = vmatprep.subr.mxu0 0.0
    %1300 = vmatpush1.msra.mxu0 0.0
    %1301 = vmatprep.subr.mxu0 0.0
    %1302 = vmatpush1.msra.mxu0 0.0
    %1303 = vmatprep.subr.mxu0 0.0
    %1304 = vmatpush1.msra.mxu0 0.0
    %1305 = vmatprep.subr.mxu0 0.0
    %1306 = vmatpush1.msra.mxu0 0.0
    %1307 = vmatprep.subr.mxu0 0.0
    %1308 = vmatpush1.msra.mxu0 0.0
    %1309 = vmatprep.subr.mxu0 0.0
    %1310 = vmatpush1.msra.mxu0 0.0
    %1311 = vmatprep.subr.mxu0 0.0
    %1312 = vmatpush1.msra.mxu0 0.0
    %1313 = vmatprep.subr.mxu0 0.0
    %1314 = vmatpush1.msra.mxu0 0.0
    %1315 = vmatprep.subr.mxu0 0.0
    %1316 = vmatpush1.msra.mxu0 0.0
    %1317 = vmatprep.subr.mxu0 0.0
    %1318 = vmatpush1.msra.mxu0 0.0
    %1319 = vmatprep.subr.mxu0 0.0
    %1320 = vmatpush1.msra.mxu0 0.0
    %1321 = vmatprep.subr.mxu0 0.0
    %1322 = vmatpush1.msra.mxu0 0.0
    %1323 = vmatprep.subr.mxu0 0.0
    %1324 = vmatpush1.msra.mxu0 0.0
    %1325 = vmatprep.subr.mxu0 0.0
    %1326 = vmatpush1.msra.mxu0 0.0
    %1327 = vmatprep.subr.mxu0 0.0
    %1328 = vmatpush1.msra.mxu0 0.0
    %1329 = vmatprep.subr.mxu0 0.0
    %1330 = vmatpush1.msra.mxu0 0.0
    %1331 = vmatprep.subr.mxu0 0.0
    %1332 = vmatpush1.msra.mxu0 0.0
    %1333 = vmatprep.subr.mxu0 0.0
    %1334 = vmatpush1.msra.mxu0 0.0
    %1335 = vmatprep.subr.mxu0 0.0
    %1336 = vmatpush1.msra.mxu0 0.0
    %1337 = vmatprep.subr.mxu0 0.0
    %1338 = vmatpush1.msra.mxu0 0.0
    %1339 = vmatprep.subr.mxu0 0.0
    %1340 = vmatpush1.msra.mxu0 0.0
    %1341 = vmatprep.subr.mxu0 0.0
    %1342 = vmatpush1.msra.mxu0 0.0
    %1343 = vmatprep.subr.mxu0 0.0
    %1344 = vmatpush1.msra.mxu0 0.0
    %1345 = vmatprep.mubr.f32.mxu0 0.0
    %1346 = vmatmul.mubr.f32.gmra.mrb[0].mxu0 %v147
    %v1347 = vpop.f32.mrb[0].mxu0
    %v1348 = vadd.f32 %v1279, %v1347
    %v1349 = vpop.f32.mrb[0].mxu0
    %1350 = vdwg.mxu0
    %v1352 = vsel %vm381, %v1182, 0
    %v1355 = vsel %vm381, %v1265, 0
    %1357 = vmatprep.subr.mxu0 0.0
    %1358 = vmatpush1.xpose.msra.mxu0 %v1355
    %1359 = vmatprep.subr.mxu0 0.0
    %1360 = vmatpush1.xpose.msra.mxu0 0.0
    %1361 = vmatprep.subr.mxu0 0.0
    %1362 = vmatpush1.xpose.msra.mxu0 0.0
    %1363 = vmatprep.subr.mxu0 0.0
    %1364 = vmatpush1.xpose.msra.mxu0 0.0
    %1365 = vmatprep.subr.mxu0 0.0
    %1366 = vmatpush1.xpose.msra.mxu0 0.0
    %1367 = vmatprep.subr.mxu0 0.0
    %1368 = vmatpush1.xpose.msra.mxu0 0.0
    %1369 = vmatprep.subr.mxu0 0.0
    %1370 = vmatpush1.xpose.msra.mxu0 0.0
    %1371 = vmatprep.subr.mxu0 0.0
    %1372 = vmatpush1.xpose.msra.mxu0 0.0
    %1373 = vmatprep.subr.mxu0 0.0
    %1374 = vmatpush1.xpose.msra.mxu0 0.0
    %1375 = vmatprep.subr.mxu0 0.0
    %1376 = vmatpush1.xpose.msra.mxu0 0.0
    %1377 = vmatprep.subr.mxu0 0.0
    %1378 = vmatpush1.xpose.msra.mxu0 0.0
    %1379 = vmatprep.subr.mxu0 0.0
    %1380 = vmatpush1.xpose.msra.mxu0 0.0
    %1381 = vmatprep.subr.mxu0 0.0
    %1382 = vmatpush1.xpose.msra.mxu0 0.0
    %1383 = vmatprep.subr.mxu0 0.0
    %1384 = vmatpush1.xpose.msra.mxu0 0.0
    %1385 = vmatprep.subr.mxu0 0.0
    %1386 = vmatpush1.xpose.msra.mxu0 0.0
    %1387 = vmatprep.subr.mxu0 0.0
    %1388 = vmatpush1.xpose.msra.mxu0 0.0
    %1389 = vmatprep.subr.mxu0 0.0
    %1390 = vmatpush1.xpose.msra.mxu0 0.0
    %1391 = vmatprep.subr.mxu0 0.0
    %1392 = vmatpush1.xpose.msra.mxu0 0.0
    %1393 = vmatprep.subr.mxu0 0.0
    %1394 = vmatpush1.xpose.msra.mxu0 0.0
    %1395 = vmatprep.subr.mxu0 0.0
    %1396 = vmatpush1.xpose.msra.mxu0 0.0
    %1397 = vmatprep.subr.mxu0 0.0
    %1398 = vmatpush1.xpose.msra.mxu0 0.0
    %1399 = vmatprep.subr.mxu0 0.0
    %1400 = vmatpush1.xpose.msra.mxu0 0.0
    %1401 = vmatprep.subr.mxu0 0.0
    %1402 = vmatpush1.xpose.msra.mxu0 0.0
    %1403 = vmatprep.subr.mxu0 0.0
    %1404 = vmatpush1.xpose.msra.mxu0 0.0
    %1405 = vmatprep.subr.mxu0 0.0
    %1406 = vmatpush1.xpose.msra.mxu0 0.0
    %1407 = vmatprep.subr.mxu0 0.0
    %1408 = vmatpush1.xpose.msra.mxu0 0.0
    %1409 = vmatprep.subr.mxu0 0.0
    %1410 = vmatpush1.xpose.msra.mxu0 0.0
    %1411 = vmatprep.subr.mxu0 0.0
    %1412 = vmatpush1.xpose.msra.mxu0 0.0
    %1413 = vmatprep.subr.mxu0 0.0
    %1414 = vmatpush1.xpose.msra.mxu0 0.0
    %1415 = vmatprep.subr.mxu0 0.0
    %1416 = vmatpush1.xpose.msra.mxu0 0.0
    %1417 = vmatprep.subr.mxu0 0.0
    %1418 = vmatpush1.xpose.msra.mxu0 0.0
    %1419 = vmatprep.subr.mxu0 0.0
    %1420 = vmatpush1.xpose.msra.mxu0 0.0
    %1421 = vmatprep.mubr.f32.mxu0 0.0
    %1422 = vmatmul.mubr.f32.gmra.mrb[0].mxu0 %v1352
    %v1423 = vpop.f32.mrb[0].mxu0
    %v1424 = vadd.f32 0.0, %v1423
    %v1425 = vpop.f32.mrb[0].mxu0
    %1426 = vdwg.mxu0
    %v1427 = vmul.f32 %v1424, 0.35355338
    %v1428 = vsel %vm381, %v1427, -inf
    %1429 = vmax.xlane.f32.xlu0 %v1428
    %v1430 = vpop.xlane.xlu0 %1429
    %v1431 = vsub.f32 %v1427, %v1430
    %v1432 = vmul.f32 %v1431, 1.442695
    %v1433 = vpow.pop %v1432
    %v1434 = vsel %vm381, %v1433, 0.0
    %1435 = vadd.xlane.f32.xlu0 %v1434
    %v1436 = vpop.xlane.xlu0 %1435
    %v1437 = vrcp.pop %v1436
    %v1438 = vmul.f32 %v1433, %v1437
    %v1440 = vsel %vm381, %v1438, 0
    %1442 = vmatprep.subr.mxu0 0.0
    %1443 = vmatpush1.msra.mxu0 %v1348
    %1444 = vmatprep.subr.mxu0 0.0
    %1445 = vmatpush1.msra.mxu0 0.0
    %1446 = vmatprep.subr.mxu0 0.0
    %1447 = vmatpush1.msra.mxu0 0.0
    %1448 = vmatprep.subr.mxu0 0.0
    %1449 = vmatpush1.msra.mxu0 0.0
    %1450 = vmatprep.subr.mxu0 0.0
    %1451 = vmatpush1.msra.mxu0 0.0
    %1452 = vmatprep.subr.mxu0 0.0
    %1453 = vmatpush1.msra.mxu0 0.0
    %1454 = vmatprep.subr.mxu0 0.0
    %1455 = vmatpush1.msra.mxu0 0.0
    %1456 = vmatprep.subr.mxu0 0.0
    %1457 = vmatpush1.msra.mxu0 0.0
    %1458 = vmatprep.subr.mxu0 0.0
    %1459 = vmatpush1.msra.mxu0 0.0
    %1460 = vmatprep.subr.mxu0 0.0
    %1461 = vmatpush1.msra.mxu0 0.0
    %1462 = vmatprep.subr.mxu0 0.0
    %1463 = vmatpush1.msra.mxu0 0.0
    %1464 = vmatprep.subr.mxu0 0.0
    %1465 = vmatpush1.msra.mxu0 0.0
    %1466 = vmatprep.subr.mxu0 0.0
    %1467 = vmatpush1.msra.mxu0 0.0
    %1468 = vmatprep.subr.mxu0 0.0
    %1469 = vmatpush1.msra.mxu0 0.0
    %1470 = vmatprep.subr.mxu0 0.0
    %1471 = vmatpush1.msra.mxu0 0.0
    %1472 = vmatprep.subr.mxu0 0.0
    %1473 = vmatpush1.msra.mxu0 0.0
    %1474 = vmatprep.subr.mxu0 0.0
    %1475 = vmatpush1.msra.mxu0 0.0
    %1476 = vmatprep.subr.mxu0 0.0
    %1477 = vmatpush1.msra.mxu0 0.0
    %1478 = vmatprep.subr.mxu0 0.0
    %1479 = vmatpush1.msra.mxu0 0.0
    %1480 = vmatprep.subr.mxu0 0.0
    %1481 = vmatpush1.msra.mxu0 0.0
    %1482 = vmatprep.subr.mxu0 0.0
    %1483 = vmatpush1.msra.mxu0 0.0
    %1484 = vmatprep.subr.mxu0 0.0
    %1485 = vmatpush1.msra.mxu0 0.0
    %1486 = vmatprep.subr.mxu0 0.0
    %1487 = vmatpush1.msra.mxu0 0.0
    %1488 = vmatprep.subr.mxu0 0.0
    %1489 = vmatpush1.msra.mxu0 0.0
    %1490 = vmatprep.subr.mxu0 0.0
    %1491 = vmatpush1.msra.mxu0 0.0
    %1492 = vmatprep.subr.mxu0 0.0
    %1493 = vmatpush1.msra.mxu0 0.0
    %1494 = vmatprep.subr.mxu0 0.0
    %1495 = vmatpush1.msra.mxu0 0.0
    %1496 = vmatprep.subr.mxu0 0.0
    %1497 = vmatpush1.msra.mxu0 0.0
    %1498 = vmatprep.subr.mxu0 0.0
    %1499 = vmatpush1.msra.mxu0 0.0
    %1500 = vmatprep.subr.mxu0 0.0
    %1501 = vmatpush1.msra.mxu0 0.0
    %1502 = vmatprep.subr.mxu0 0.0
    %1503 = vmatpush1.msra.mxu0 0.0
    %1504 = vmatprep.subr.mxu0 0.0
    %1505 = vmatpush1.msra.mxu0 0.0
    %1506 = vmatprep.mubr.f32.mxu0 0.0
    %1507 = vmatmul.mubr.f32.gmra.mrb[0].mxu0 %v1440
    %v1508 = vpop.f32.mrb[0].mxu0
    %v1509 = vadd.f32 0.0, %v1508
    %v1510 = vpop.f32.mrb[0].mxu0
    %1511 = vdwg.mxu0
    %s1512 = scalar_lea.vmem %s10, 16
    %v1513 = vld [vmem:[%s1512] sm:$0xff]
    %v1515 = vsel %vm381, %v1509, 0
    %1517 = vmatprep.subr.mxu0 0.0
    %1518 = vmatpush1.msra.mxu0 %v1513
    %1519 = vmatprep.subr.mxu0 0.0
    %1520 = vmatpush1.msra.mxu0 0.0
    %1521 = vmatprep.subr.mxu0 0.0
    %1522 = vmatpush1.msra.mxu0 0.0
    %1523 = vmatprep.subr.mxu0 0.0
    %1524 = vmatpush1.msra.mxu0 0.0
    %1525 = vmatprep.subr.mxu0 0.0
    %1526 = vmatpush1.msra.mxu0 0.0
    %1527 = vmatprep.subr.mxu0 0.0
    %1528 = vmatpush1.msra.mxu0 0.0
    %1529 = vmatprep.subr.mxu0 0.0
    %1530 = vmatpush1.msra.mxu0 0.0
    %1531 = vmatprep.subr.mxu0 0.0
    %1532 = vmatpush1.msra.mxu0 0.0
    %1533 = vmatprep.subr.mxu0 0.0
    %1534 = vmatpush1.msra.mxu0 0.0
    %1535 = vmatprep.subr.mxu0 0.0
    %1536 = vmatpush1.msra.mxu0 0.0
    %1537 = vmatprep.subr.mxu0 0.0
    %1538 = vmatpush1.msra.mxu0 0.0
    %1539 = vmatprep.subr.mxu0 0.0
    %1540 = vmatpush1.msra.mxu0 0.0
    %1541 = vmatprep.subr.mxu0 0.0
    %1542 = vmatpush1.msra.mxu0 0.0
    %1543 = vmatprep.subr.mxu0 0.0
    %1544 = vmatpush1.msra.mxu0 0.0
    %1545 = vmatprep.subr.mxu0 0.0
    %1546 = vmatpush1.msra.mxu0 0.0
    %1547 = vmatprep.subr.mxu0 0.0
    %1548 = vmatpush1.msra.mxu0 0.0
    %1549 = vmatprep.subr.mxu0 0.0
    %1550 = vmatpush1.msra.mxu0 0.0
    %1551 = vmatprep.subr.mxu0 0.0
    %1552 = vmatpush1.msra.mxu0 0.0
    %1553 = vmatprep.subr.mxu0 0.0
    %1554 = vmatpush1.msra.mxu0 0.0
    %1555 = vmatprep.subr.mxu0 0.0
    %1556 = vmatpush1.msra.mxu0 0.0
    %1557 = vmatprep.subr.mxu0 0.0
    %1558 = vmatpush1.msra.mxu0 0.0
    %1559 = vmatprep.subr.mxu0 0.0
    %1560 = vmatpush1.msra.mxu0 0.0
    %1561 = vmatprep.subr.mxu0 0.0
    %1562 = vmatpush1.msra.mxu0 0.0
    %1563 = vmatprep.subr.mxu0 0.0
    %1564 = vmatpush1.msra.mxu0 0.0
    %1565 = vmatprep.subr.mxu0 0.0
    %1566 = vmatpush1.msra.mxu0 0.0
    %1567 = vmatprep.subr.mxu0 0.0
    %1568 = vmatpush1.msra.mxu0 0.0
    %1569 = vmatprep.subr.mxu0 0.0
    %1570 = vmatpush1.msra.mxu0 0.0
    %1571 = vmatprep.subr.mxu0 0.0
    %1572 = vmatpush1.msra.mxu0 0.0
    %1573 = vmatprep.subr.mxu0 0.0
    %1574 = vmatpush1.msra.mxu0 0.0
    %1575 = vmatprep.subr.mxu0 0.0
    %1576 = vmatpush1.msra.mxu0 0.0
    %1577 = vmatprep.subr.mxu0 0.0
    %1578 = vmatpush1.msra.mxu0 0.0
    %1579 = vmatprep.subr.mxu0 0.0
    %1580 = vmatpush1.msra.mxu0 0.0
    %1581 = vmatprep.mubr.f32.mxu0 0.0
    %1582 = vmatmul.mubr.f32.gmra.mrb[0].mxu0 %v1515
    %v1583 = vpop.f32.mrb[0].mxu0
    %v1584 = vadd.f32 0.0, %v1583
    %v1585 = vpop.f32.mrb[0].mxu0
    %1586 = vdwg.mxu0
    %v1587 = vadd.f32 %v1099, %v1584
    %s1588 = scalar_lea.vmem %s4, 96
    %v1589 = vld [vmem:[%s1588] sm:$0xff]
    %v1590 = vld [vmem:[%s1588 + $0x8] sm:$0xff]
    %v1591 = vld [vmem:[%s1588 + $0x10] sm:$0xff]
    %v1592 = vld [vmem:[%s1588 + $0x18] sm:$0xff]
    %s1593 = scalar_lea.vmem %s5, 3
    %v1594 = vld [vmem:[%s1593] sm:$0x1]
    %v1596 = vlaneseq
    %v1597 = vshrl.u32 %v1596, 7
    %v1598 = vsub.s32 0, %v1597
    %v1599 = vrot.slane %v1594, %v1598
    %1601 = vmatprep.subr.mxu0 0.0
    %1602 = vmatpush1.msra.mxu0 %v1589
    %1603 = vmatprep.subr.mxu0 0.0
    %1604 = vmatpush1.msra.mxu0 %v1590
    %1605 = vmatprep.subr.mxu0 0.0
    %1606 = vmatpush1.msra.mxu0 %v1591
    %1607 = vmatprep.subr.mxu0 0.0
    %1608 = vmatpush1.msra.mxu0 %v1592
    %1609 = vmatprep.subr.mxu0 0.0
    %1610 = vmatpush1.msra.mxu0 0.0
    %1611 = vmatprep.subr.mxu0 0.0
    %1612 = vmatpush1.msra.mxu0 0.0
    %1613 = vmatprep.subr.mxu0 0.0
    %1614 = vmatpush1.msra.mxu0 0.0
    %1615 = vmatprep.subr.mxu0 0.0
    %1616 = vmatpush1.msra.mxu0 0.0
    %1617 = vmatprep.subr.mxu0 0.0
    %1618 = vmatpush1.msra.mxu0 0.0
    %1619 = vmatprep.subr.mxu0 0.0
    %1620 = vmatpush1.msra.mxu0 0.0
    %1621 = vmatprep.subr.mxu0 0.0
    %1622 = vmatpush1.msra.mxu0 0.0
    %1623 = vmatprep.subr.mxu0 0.0
    %1624 = vmatpush1.msra.mxu0 0.0
    %1625 = vmatprep.subr.mxu0 0.0
    %1626 = vmatpush1.msra.mxu0 0.0
    %1627 = vmatprep.subr.mxu0 0.0
    %1628 = vmatpush1.msra.mxu0 0.0
    %1629 = vmatprep.subr.mxu0 0.0
    %1630 = vmatpush1.msra.mxu0 0.0
    %1631 = vmatprep.subr.mxu0 0.0
    %1632 = vmatpush1.msra.mxu0 0.0
    %1633 = vmatprep.subr.mxu0 0.0
    %1634 = vmatpush1.msra.mxu0 0.0
    %1635 = vmatprep.subr.mxu0 0.0
    %1636 = vmatpush1.msra.mxu0 0.0
    %1637 = vmatprep.subr.mxu0 0.0
    %1638 = vmatpush1.msra.mxu0 0.0
    %1639 = vmatprep.subr.mxu0 0.0
    %1640 = vmatpush1.msra.mxu0 0.0
    %1641 = vmatprep.subr.mxu0 0.0
    %1642 = vmatpush1.msra.mxu0 0.0
    %1643 = vmatprep.subr.mxu0 0.0
    %1644 = vmatpush1.msra.mxu0 0.0
    %1645 = vmatprep.subr.mxu0 0.0
    %1646 = vmatpush1.msra.mxu0 0.0
    %1647 = vmatprep.subr.mxu0 0.0
    %1648 = vmatpush1.msra.mxu0 0.0
    %1649 = vmatprep.subr.mxu0 0.0
    %1650 = vmatpush1.msra.mxu0 0.0
    %1651 = vmatprep.subr.mxu0 0.0
    %1652 = vmatpush1.msra.mxu0 0.0
    %1653 = vmatprep.subr.mxu0 0.0
    %1654 = vmatpush1.msra.mxu0 0.0
    %1655 = vmatprep.subr.mxu0 0.0
    %1656 = vmatpush1.msra.mxu0 0.0
    %1657 = vmatprep.subr.mxu0 0.0
    %1658 = vmatpush1.msra.mxu0 0.0
    %1659 = vmatprep.subr.mxu0 0.0
    %1660 = vmatpush1.msra.mxu0 0.0
    %1661 = vmatprep.subr.mxu0 0.0
    %1662 = vmatpush1.msra.mxu0 0.0
    %1663 = vmatprep.subr.mxu0 0.0
    %1664 = vmatpush1.msra.mxu0 0.0
    %1665 = vmatprep.mubr.f32.mxu0 0.0
    %1666 = vmatmul.mubr.f32.gmra.mrb[0].mxu0 %v147
    %v1667 = vpop.f32.mrb[0].mxu0
    %v1668 = vadd.f32 %v1599, %v1667
    %v1669 = vpop.f32.mrb[0].mxu0
    %1670 = vdwg.mxu0
    %s1671 = scalar_lea.vmem %s6, 96
    %v1672 = vld [vmem:[%s1671] sm:$0xff]
    %v1673 = vld [vmem:[%s1671 + $0x8] sm:$0xff]
    %v1674 = vld [vmem:[%s1671 + $0x10] sm:$0xff]
    %v1675 = vld [vmem:[%s1671 + $0x18] sm:$0xff]
    %s1676 = scalar_lea.vmem %s7, 3
    %v1677 = vld [vmem:[%s1676] sm:$0x1]
    %v1679 = vlaneseq
    %v1680 = vshrl.u32 %v1679, 7
    %v1681 = vsub.s32 0, %v1680
    %v1682 = vrot.slane %v1677, %v1681
    %1684 = vmatprep.subr.mxu0 0.0
    %1685 = vmatpush1.msra.mxu0 %v1672
    %1686 = vmatprep.subr.mxu0 0.0
    %1687 = vmatpush1.msra.mxu0 %v1673
    %1688 = vmatprep.subr.mxu0 0.0
    %1689 = vmatpush1.msra.mxu0 %v1674
    %1690 = vmatprep.subr.mxu0 0.0
    %1691 = vmatpush1.msra.mxu0 %v1675
    %1692 = vmatprep.subr.mxu0 0.0
    %1693 = vmatpush1.msra.mxu0 0.0
    %1694 = vmatprep.subr.mxu0 0.0
    %1695 = vmatpush1.msra.mxu0 0.0
    %1696 = vmatprep.subr.mxu0 0.0
    %1697 = vmatpush1.msra.mxu0 0.0
    %1698 = vmatprep.subr.mxu0 0.0
    %1699 = vmatpush1.msra.mxu0 0.0
    %1700 = vmatprep.subr.mxu0 0.0
    %1701 = vmatpush1.msra.mxu0 0.0
    %1702 = vmatprep.subr.mxu0 0.0
    %1703 = vmatpush1.msra.mxu0 0.0
    %1704 = vmatprep.subr.mxu0 0.0
    %1705 = vmatpush1.msra.mxu0 0.0
    %1706 = vmatprep.subr.mxu0 0.0
    %1707 = vmatpush1.msra.mxu0 0.0
    %1708 = vmatprep.subr.mxu0 0.0
    %1709 = vmatpush1.msra.mxu0 0.0
    %1710 = vmatprep.subr.mxu0 0.0
    %1711 = vmatpush1.msra.mxu0 0.0
    %1712 = vmatprep.subr.mxu0 0.0
    %1713 = vmatpush1.msra.mxu0 0.0
    %1714 = vmatprep.subr.mxu0 0.0
    %1715 = vmatpush1.msra.mxu0 0.0
    %1716 = vmatprep.subr.mxu0 0.0
    %1717 = vmatpush1.msra.mxu0 0.0
    %1718 = vmatprep.subr.mxu0 0.0
    %1719 = vmatpush1.msra.mxu0 0.0
    %1720 = vmatprep.subr.mxu0 0.0
    %1721 = vmatpush1.msra.mxu0 0.0
    %1722 = vmatprep.subr.mxu0 0.0
    %1723 = vmatpush1.msra.mxu0 0.0
    %1724 = vmatprep.subr.mxu0 0.0
    %1725 = vmatpush1.msra.mxu0 0.0
    %1726 = vmatprep.subr.mxu0 0.0
    %1727 = vmatpush1.msra.mxu0 0.0
    %1728 = vmatprep.subr.mxu0 0.0
    %1729 = vmatpush1.msra.mxu0 0.0
    %1730 = vmatprep.subr.mxu0 0.0
    %1731 = vmatpush1.msra.mxu0 0.0
    %1732 = vmatprep.subr.mxu0 0.0
    %1733 = vmatpush1.msra.mxu0 0.0
    %1734 = vmatprep.subr.mxu0 0.0
    %1735 = vmatpush1.msra.mxu0 0.0
    %1736 = vmatprep.subr.mxu0 0.0
    %1737 = vmatpush1.msra.mxu0 0.0
    %1738 = vmatprep.subr.mxu0 0.0
    %1739 = vmatpush1.msra.mxu0 0.0
    %1740 = vmatprep.subr.mxu0 0.0
    %1741 = vmatpush1.msra.mxu0 0.0
    %1742 = vmatprep.subr.mxu0 0.0
    %1743 = vmatpush1.msra.mxu0 0.0
    %1744 = vmatprep.subr.mxu0 0.0
    %1745 = vmatpush1.msra.mxu0 0.0
    %1746 = vmatprep.subr.mxu0 0.0
    %1747 = vmatpush1.msra.mxu0 0.0
    %1748 = vmatprep.mubr.f32.mxu0 0.0
    %1749 = vmatmul.mubr.f32.gmra.mrb[0].mxu0 %v147
    %v1750 = vpop.f32.mrb[0].mxu0
    %v1751 = vadd.f32 %v1682, %v1750
    %v1752 = vpop.f32.mrb[0].mxu0
    %1753 = vdwg.mxu0
    %s1754 = scalar_lea.vmem %s8, 96
    %v1755 = vld [vmem:[%s1754] sm:$0xff]
    %v1756 = vld [vmem:[%s1754 + $0x8] sm:$0xff]
    %v1757 = vld [vmem:[%s1754 + $0x10] sm:$0xff]
    %v1758 = vld [vmem:[%s1754 + $0x18] sm:$0xff]
    %s1759 = scalar_lea.vmem %s9, 3
    %v1760 = vld [vmem:[%s1759] sm:$0x1]
    %v1762 = vlaneseq
    %v1763 = vshrl.u32 %v1762, 7
    %v1764 = vsub.s32 0, %v1763
    %v1765 = vrot.slane %v1760, %v1764
    %1767 = vmatprep.subr.mxu0 0.0
    %1768 = vmatpush1.msra.mxu0 %v1755
    %1769 = vmatprep.subr.mxu0 0.0
    %1770 = vmatpush1.msra.mxu0 %v1756
    %1771 = vmatprep.subr.mxu0 0.0
    %1772 = vmatpush1.msra.mxu0 %v1757
    %1773 = vmatprep.subr.mxu0 0.0
    %1774 = vmatpush1.msra.mxu0 %v1758
    %1775 = vmatprep.subr.mxu0 0.0
    %1776 = vmatpush1.msra.mxu0 0.0
    %1777 = vmatprep.subr.mxu0 0.0
    %1778 = vmatpush1.msra.mxu0 0.0
    %1779 = vmatprep.subr.mxu0 0.0
    %1780 = vmatpush1.msra.mxu0 0.0
    %1781 = vmatprep.subr.mxu0 0.0
    %1782 = vmatpush1.msra.mxu0 0.0
    %1783 = vmatprep.subr.mxu0 0.0
    %1784 = vmatpush1.msra.mxu0 0.0
    %1785 = vmatprep.subr.mxu0 0.0
    %1786 = vmatpush1.msra.mxu0 0.0
    %1787 = vmatprep.subr.mxu0 0.0
    %1788 = vmatpush1.msra.mxu0 0.0
    %1789 = vmatprep.subr.mxu0 0.0
    %1790 = vmatpush1.msra.mxu0 0.0
    %1791 = vmatprep.subr.mxu0 0.0
    %1792 = vmatpush1.msra.mxu0 0.0
    %1793 = vmatprep.subr.mxu0 0.0
    %1794 = vmatpush1.msra.mxu0 0.0
    %1795 = vmatprep.subr.mxu0 0.0
    %1796 = vmatpush1.msra.mxu0 0.0
    %1797 = vmatprep.subr.mxu0 0.0
    %1798 = vmatpush1.msra.mxu0 0.0
    %1799 = vmatprep.subr.mxu0 0.0
    %1800 = vmatpush1.msra.mxu0 0.0
    %1801 = vmatprep.subr.mxu0 0.0
    %1802 = vmatpush1.msra.mxu0 0.0
    %1803 = vmatprep.subr.mxu0 0.0
    %1804 = vmatpush1.msra.mxu0 0.0
    %1805 = vmatprep.subr.mxu0 0.0
    %1806 = vmatpush1.msra.mxu0 0.0
    %1807 = vmatprep.subr.mxu0 0.0
    %1808 = vmatpush1.msra.mxu0 0.0
    %1809 = vmatprep.subr.mxu0 0.0
    %1810 = vmatpush1.msra.mxu0 0.0
    %1811 = vmatprep.subr.mxu0 0.0
    %1812 = vmatpush1.msra.mxu0 0.0
    %1813 = vmatprep.subr.mxu0 0.0
    %1814 = vmatpush1.msra.mxu0 0.0
    %1815 = vmatprep.subr.mxu0 0.0
    %1816 = vmatpush1.msra.mxu0 0.0
    %1817 = vmatprep.subr.mxu0 0.0
    %1818 = vmatpush1.msra.mxu0 0.0
    %1819 = vmatprep.subr.mxu0 0.0
    %1820 = vmatpush1.msra.mxu0 0.0
    %1821 = vmatprep.subr.mxu0 0.0
    %1822 = vmatpush1.msra.mxu0 0.0
    %1823 = vmatprep.subr.mxu0 0.0
    %1824 = vmatpush1.msra.mxu0 0.0
    %1825 = vmatprep.subr.mxu0 0.0
    %1826 = vmatpush1.msra.mxu0 0.0
    %1827 = vmatprep.subr.mxu0 0.0
    %1828 = vmatpush1.msra.mxu0 0.0
    %1829 = vmatprep.subr.mxu0 0.0
    %1830 = vmatpush1.msra.mxu0 0.0
    %1831 = vmatprep.mubr.f32.mxu0 0.0
    %1832 = vmatmul.mubr.f32.gmra.mrb[0].mxu0 %v147
    %v1833 = vpop.f32.mrb[0].mxu0
    %v1834 = vadd.f32 %v1765, %v1833
    %v1835 = vpop.f32.mrb[0].mxu0
    %1836 = vdwg.mxu0
    %v1838 = vsel %vm381, %v1668, 0
    %v1841 = vsel %vm381, %v1751, 0
    %1843 = vmatprep.subr.mxu0 0.0
    %1844 = vmatpush1.xpose.msra.mxu0 %v1841
    %1845 = vmatprep.subr.mxu0 0.0
    %1846 = vmatpush1.xpose.msra.mxu0 0.0
    %1847 = vmatprep.subr.mxu0 0.0
    %1848 = vmatpush1.xpose.msra.mxu0 0.0
    %1849 = vmatprep.subr.mxu0 0.0
    %1850 = vmatpush1.xpose.msra.mxu0 0.0
    %1851 = vmatprep.subr.mxu0 0.0
    %1852 = vmatpush1.xpose.msra.mxu0 0.0
    %1853 = vmatprep.subr.mxu0 0.0
    %1854 = vmatpush1.xpose.msra.mxu0 0.0
    %1855 = vmatprep.subr.mxu0 0.0
    %1856 = vmatpush1.xpose.msra.mxu0 0.0
    %1857 = vmatprep.subr.mxu0 0.0
    %1858 = vmatpush1.xpose.msra.mxu0 0.0
    %1859 = vmatprep.subr.mxu0 0.0
    %1860 = vmatpush1.xpose.msra.mxu0 0.0
    %1861 = vmatprep.subr.mxu0 0.0
    %1862 = vmatpush1.xpose.msra.mxu0 0.0
    %1863 = vmatprep.subr.mxu0 0.0
    %1864 = vmatpush1.xpose.msra.mxu0 0.0
    %1865 = vmatprep.subr.mxu0 0.0
    %1866 = vmatpush1.xpose.msra.mxu0 0.0
    %1867 = vmatprep.subr.mxu0 0.0
    %1868 = vmatpush1.xpose.msra.mxu0 0.0
    %1869 = vmatprep.subr.mxu0 0.0
    %1870 = vmatpush1.xpose.msra.mxu0 0.0
    %1871 = vmatprep.subr.mxu0 0.0
    %1872 = vmatpush1.xpose.msra.mxu0 0.0
    %1873 = vmatprep.subr.mxu0 0.0
    %1874 = vmatpush1.xpose.msra.mxu0 0.0
    %1875 = vmatprep.subr.mxu0 0.0
    %1876 = vmatpush1.xpose.msra.mxu0 0.0
    %1877 = vmatprep.subr.mxu0 0.0
    %1878 = vmatpush1.xpose.msra.mxu0 0.0
    %1879 = vmatprep.subr.mxu0 0.0
    %1880 = vmatpush1.xpose.msra.mxu0 0.0
    %1881 = vmatprep.subr.mxu0 0.0
    %1882 = vmatpush1.xpose.msra.mxu0 0.0
    %1883 = vmatprep.subr.mxu0 0.0
    %1884 = vmatpush1.xpose.msra.mxu0 0.0
    %1885 = vmatprep.subr.mxu0 0.0
    %1886 = vmatpush1.xpose.msra.mxu0 0.0
    %1887 = vmatprep.subr.mxu0 0.0
    %1888 = vmatpush1.xpose.msra.mxu0 0.0
    %1889 = vmatprep.subr.mxu0 0.0
    %1890 = vmatpush1.xpose.msra.mxu0 0.0
    %1891 = vmatprep.subr.mxu0 0.0
    %1892 = vmatpush1.xpose.msra.mxu0 0.0
    %1893 = vmatprep.subr.mxu0 0.0
    %1894 = vmatpush1.xpose.msra.mxu0 0.0
    %1895 = vmatprep.subr.mxu0 0.0
    %1896 = vmatpush1.xpose.msra.mxu0 0.0
    %1897 = vmatprep.subr.mxu0 0.0
    %1898 = vmatpush1.xpose.msra.mxu0 0.0
    %1899 = vmatprep.subr.mxu0 0.0
    %1900 = vmatpush1.xpose.msra.mxu0 0.0
    %1901 = vmatprep.subr.mxu0 0.0
    %1902 = vmatpush1.xpose.msra.mxu0 0.0
    %1903 = vmatprep.subr.mxu0 0.0
    %1904 = vmatpush1.xpose.msra.mxu0 0.0
    %1905 = vmatprep.subr.mxu0 0.0
    %1906 = vmatpush1.xpose.msra.mxu0 0.0
    %1907 = vmatprep.mubr.f32.mxu0 0.0
    %1908 = vmatmul.mubr.f32.gmra.mrb[0].mxu0 %v1838
    %v1909 = vpop.f32.mrb[0].mxu0
    %v1910 = vadd.f32 0.0, %v1909
    %v1911 = vpop.f32.mrb[0].mxu0
    %1912 = vdwg.mxu0
    %v1913 = vmul.f32 %v1910, 0.35355338
    %v1914 = vsel %vm381, %v1913, -inf
    %1915 = vmax.xlane.f32.xlu0 %v1914
    %v1916 = vpop.xlane.xlu0 %1915
    %v1917 = vsub.f32 %v1913, %v1916
    %v1918 = vmul.f32 %v1917, 1.442695
    %v1919 = vpow.pop %v1918
    %v1920 = vsel %vm381, %v1919, 0.0
    %1921 = vadd.xlane.f32.xlu0 %v1920
    %v1922 = vpop.xlane.xlu0 %1921
    %v1923 = vrcp.pop %v1922
    %v1924 = vmul.f32 %v1919, %v1923
    %v1926 = vsel %vm381, %v1924, 0
    %1928 = vmatprep.subr.mxu0 0.0
    %1929 = vmatpush1.msra.mxu0 %v1834
    %1930 = vmatprep.subr.mxu0 0.0
    %1931 = vmatpush1.msra.mxu0 0.0
    %1932 = vmatprep.subr.mxu0 0.0
    %1933 = vmatpush1.msra.mxu0 0.0
    %1934 = vmatprep.subr.mxu0 0.0
    %1935 = vmatpush1.msra.mxu0 0.0
    %1936 = vmatprep.subr.mxu0 0.0
    %1937 = vmatpush1.msra.mxu0 0.0
    %1938 = vmatprep.subr.mxu0 0.0
    %1939 = vmatpush1.msra.mxu0 0.0
    %1940 = vmatprep.subr.mxu0 0.0
    %1941 = vmatpush1.msra.mxu0 0.0
    %1942 = vmatprep.subr.mxu0 0.0
    %1943 = vmatpush1.msra.mxu0 0.0
    %1944 = vmatprep.subr.mxu0 0.0
    %1945 = vmatpush1.msra.mxu0 0.0
    %1946 = vmatprep.subr.mxu0 0.0
    %1947 = vmatpush1.msra.mxu0 0.0
    %1948 = vmatprep.subr.mxu0 0.0
    %1949 = vmatpush1.msra.mxu0 0.0
    %1950 = vmatprep.subr.mxu0 0.0
    %1951 = vmatpush1.msra.mxu0 0.0
    %1952 = vmatprep.subr.mxu0 0.0
    %1953 = vmatpush1.msra.mxu0 0.0
    %1954 = vmatprep.subr.mxu0 0.0
    %1955 = vmatpush1.msra.mxu0 0.0
    %1956 = vmatprep.subr.mxu0 0.0
    %1957 = vmatpush1.msra.mxu0 0.0
    %1958 = vmatprep.subr.mxu0 0.0
    %1959 = vmatpush1.msra.mxu0 0.0
    %1960 = vmatprep.subr.mxu0 0.0
    %1961 = vmatpush1.msra.mxu0 0.0
    %1962 = vmatprep.subr.mxu0 0.0
    %1963 = vmatpush1.msra.mxu0 0.0
    %1964 = vmatprep.subr.mxu0 0.0
    %1965 = vmatpush1.msra.mxu0 0.0
    %1966 = vmatprep.subr.mxu0 0.0
    %1967 = vmatpush1.msra.mxu0 0.0
    %1968 = vmatprep.subr.mxu0 0.0
    %1969 = vmatpush1.msra.mxu0 0.0
    %1970 = vmatprep.subr.mxu0 0.0
    %1971 = vmatpush1.msra.mxu0 0.0
    %1972 = vmatprep.subr.mxu0 0.0
    %1973 = vmatpush1.msra.mxu0 0.0
    %1974 = vmatprep.subr.mxu0 0.0
    %1975 = vmatpush1.msra.mxu0 0.0
    %1976 = vmatprep.subr.mxu0 0.0
    %1977 = vmatpush1.msra.mxu0 0.0
    %1978 = vmatprep.subr.mxu0 0.0
    %1979 = vmatpush1.msra.mxu0 0.0
    %1980 = vmatprep.subr.mxu0 0.0
    %1981 = vmatpush1.msra.mxu0 0.0
    %1982 = vmatprep.subr.mxu0 0.0
    %1983 = vmatpush1.msra.mxu0 0.0
    %1984 = vmatprep.subr.mxu0 0.0
    %1985 = vmatpush1.msra.mxu0 0.0
    %1986 = vmatprep.subr.mxu0 0.0
    %1987 = vmatpush1.msra.mxu0 0.0
    %1988 = vmatprep.subr.mxu0 0.0
    %1989 = vmatpush1.msra.mxu0 0.0
    %1990 = vmatprep.subr.mxu0 0.0
    %1991 = vmatpush1.msra.mxu0 0.0
    %1992 = vmatprep.mubr.f32.mxu0 0.0
    %1993 = vmatmul.mubr.f32.gmra.mrb[0].mxu0 %v1926
    %v1994 = vpop.f32.mrb[0].mxu0
    %v1995 = vadd.f32 0.0, %v1994
    %v1996 = vpop.f32.mrb[0].mxu0
    %1997 = vdwg.mxu0
    %s1998 = scalar_lea.vmem %s10, 24
    %v1999 = vld [vmem:[%s1998] sm:$0xff]
    %v2001 = vsel %vm381, %v1995, 0
    %2003 = vmatprep.subr.mxu0 0.0
    %2004 = vmatpush1.msra.mxu0 %v1999
    %2005 = vmatprep.subr.mxu0 0.0
    %2006 = vmatpush1.msra.mxu0 0.0
    %2007 = vmatprep.subr.mxu0 0.0
    %2008 = vmatpush1.msra.mxu0 0.0
    %2009 = vmatprep.subr.mxu0 0.0
    %2010 = vmatpush1.msra.mxu0 0.0
    %2011 = vmatprep.subr.mxu0 0.0
    %2012 = vmatpush1.msra.mxu0 0.0
    %2013 = vmatprep.subr.mxu0 0.0
    %2014 = vmatpush1.msra.mxu0 0.0
    %2015 = vmatprep.subr.mxu0 0.0
    %2016 = vmatpush1.msra.mxu0 0.0
    %2017 = vmatprep.subr.mxu0 0.0
    %2018 = vmatpush1.msra.mxu0 0.0
    %2019 = vmatprep.subr.mxu0 0.0
    %2020 = vmatpush1.msra.mxu0 0.0
    %2021 = vmatprep.subr.mxu0 0.0
    %2022 = vmatpush1.msra.mxu0 0.0
    %2023 = vmatprep.subr.mxu0 0.0
    %2024 = vmatpush1.msra.mxu0 0.0
    %2025 = vmatprep.subr.mxu0 0.0
    %2026 = vmatpush1.msra.mxu0 0.0
    %2027 = vmatprep.subr.mxu0 0.0
    %2028 = vmatpush1.msra.mxu0 0.0
    %2029 = vmatprep.subr.mxu0 0.0
    %2030 = vmatpush1.msra.mxu0 0.0
    %2031 = vmatprep.subr.mxu0 0.0
    %2032 = vmatpush1.msra.mxu0 0.0
    %2033 = vmatprep.subr.mxu0 0.0
    %2034 = vmatpush1.msra.mxu0 0.0
    %2035 = vmatprep.subr.mxu0 0.0
    %2036 = vmatpush1.msra.mxu0 0.0
    %2037 = vmatprep.subr.mxu0 0.0
    %2038 = vmatpush1.msra.mxu0 0.0
    %2039 = vmatprep.subr.mxu0 0.0
    %2040 = vmatpush1.msra.mxu0 0.0
    %2041 = vmatprep.subr.mxu0 0.0
    %2042 = vmatpush1.msra.mxu0 0.0
    %2043 = vmatprep.subr.mxu0 0.0
    %2044 = vmatpush1.msra.mxu0 0.0
    %2045 = vmatprep.subr.mxu0 0.0
    %2046 = vmatpush1.msra.mxu0 0.0
    %2047 = vmatprep.subr.mxu0 0.0
    %2048 = vmatpush1.msra.mxu0 0.0
    %2049 = vmatprep.subr.mxu0 0.0
    %2050 = vmatpush1.msra.mxu0 0.0
    %2051 = vmatprep.subr.mxu0 0.0
    %2052 = vmatpush1.msra.mxu0 0.0
    %2053 = vmatprep.subr.mxu0 0.0
    %2054 = vmatpush1.msra.mxu0 0.0
    %2055 = vmatprep.subr.mxu0 0.0
    %2056 = vmatpush1.msra.mxu0 0.0
    %2057 = vmatprep.subr.mxu0 0.0
    %2058 = vmatpush1.msra.mxu0 0.0
    %2059 = vmatprep.subr.mxu0 0.0
    %2060 = vmatpush1.msra.mxu0 0.0
    %2061 = vmatprep.subr.mxu0 0.0
    %2062 = vmatpush1.msra.mxu0 0.0
    %2063 = vmatprep.subr.mxu0 0.0
    %2064 = vmatpush1.msra.mxu0 0.0
    %2065 = vmatprep.subr.mxu0 0.0
    %2066 = vmatpush1.msra.mxu0 0.0
    %2067 = vmatprep.mubr.f32.mxu0 0.0
    %2068 = vmatmul.mubr.f32.gmra.mrb[0].mxu0 %v2001
    %v2069 = vpop.f32.mrb[0].mxu0
    %v2070 = vadd.f32 0.0, %v2069
    %v2071 = vpop.f32.mrb[0].mxu0
    %2072 = vdwg.mxu0
    %v2073 = vadd.f32 %v1587, %v2070
    %v2074 = vld [vmem:[%s11] sm:$0x1]
    %v2076 = vlaneseq
    %v2077 = vshrl.u32 %v2076, 7
    %v2078 = vsub.s32 0, %v2077
    %v2079 = vrot.slane %v2074, %v2078
    %v2081 = vadd.f32 %v2073, %v2079
    %v2082 = vadd.f32 %v103, %v2081
    %s2083 = sld [smem:[#allocation2 + $0x80]]
    %s2084 = sld [smem:[#allocation2 + $0x81]]
    %v2085 = vsel %vm108, %v2082, 0.0
    %2086 = vadd.xlane.f32.xlu0 %v2085
    %v2087 = vpop.xlane.xlu0 %2086
    %v2088 = vmul.f32 %v2087, %v112
    %v2089 = vsub.f32 %v2082, %v2088
    %v2090 = vmul.f32 %v2089, %v2089
    %v2091 = vsel %vm108, %v2090, 0.0
    %2092 = vadd.xlane.f32.xlu0 %v2091
    %v2093 = vpop.xlane.xlu0 %2092
    %v2094 = vmul.f32 %v2093, %v119
    %v2095 = vrsqrt.pop %v2094
    %v2096 = vmul.f32 %v2094, %v2095
    %vm2097 = vcmp.eq.f32.partialorder %v2094, inf
    %v2098 = vsel %vm2097, %v2094, %v2096
    %vm2099 = vcmp.eq.f32.partialorder %v2094, 0.0
    %v2100 = vand.u32 %v2094, 2147483648
    %v2101 = vsel %vm2099, %v2100, %v2098
    %v2102 = vstv %s2083
    %v2103 = vmul.f32 %v2102, %v2089
    %v2104 = vadd.f32 %v2101, 1e-06
    %v2105 = vrcp.pop %v2104
    %v2106 = vmul.f32 %v2103, %v2105
    %v2107 = vstv %s2084
    %v2108 = vadd.f32 %v2106, %v2107
    %v2109 = vld [vmem:[%s12] sm:$0xff]
    %v2110 = vld [vmem:[%s12 + $0x8] sm:$0xff]
    %v2111 = vld [vmem:[%s12 + $0x10] sm:$0xff]
    %v2112 = vld [vmem:[%s12 + $0x18] sm:$0xff]
    %v2113 = vld [vmem:[%s13] sm:$0x1]
    %v2115 = vlaneseq
    %v2116 = vshrl.u32 %v2115, 7
    %v2117 = vsub.s32 0, %v2116
    %v2118 = vrot.slane %v2113, %v2117
    %v2121 = vsel %vm108, %v2108, 0
    %2123 = vmatprep.subr.mxu0 0.0
    %2124 = vmatpush1.msra.mxu0 %v2109
    %2125 = vmatprep.subr.mxu0 0.0
    %2126 = vmatpush1.msra.mxu0 %v2110
    %2127 = vmatprep.subr.mxu0 0.0
    %2128 = vmatpush1.msra.mxu0 %v2111
    %2129 = vmatprep.subr.mxu0 0.0
    %2130 = vmatpush1.msra.mxu0 %v2112
    %2131 = vmatprep.subr.mxu0 0.0
    %2132 = vmatpush1.msra.mxu0 0.0
    %2133 = vmatprep.subr.mxu0 0.0
    %2134 = vmatpush1.msra.mxu0 0.0
    %2135 = vmatprep.subr.mxu0 0.0
    %2136 = vmatpush1.msra.mxu0 0.0
    %2137 = vmatprep.subr.mxu0 0.0
    %2138 = vmatpush1.msra.mxu0 0.0
    %2139 = vmatprep.subr.mxu0 0.0
    %2140 = vmatpush1.msra.mxu0 0.0
    %2141 = vmatprep.subr.mxu0 0.0
    %2142 = vmatpush1.msra.mxu0 0.0
    %2143 = vmatprep.subr.mxu0 0.0
    %2144 = vmatpush1.msra.mxu0 0.0
    %2145 = vmatprep.subr.mxu0 0.0
    %2146 = vmatpush1.msra.mxu0 0.0
    %2147 = vmatprep.subr.mxu0 0.0
    %2148 = vmatpush1.msra.mxu0 0.0
    %2149 = vmatprep.subr.mxu0 0.0
    %2150 = vmatpush1.msra.mxu0 0.0
    %2151 = vmatprep.subr.mxu0 0.0
    %2152 = vmatpush1.msra.mxu0 0.0
    %2153 = vmatprep.subr.mxu0 0.0
    %2154 = vmatpush1.msra.mxu0 0.0
    %2155 = vmatprep.subr.mxu0 0.0
    %2156 = vmatpush1.msra.mxu0 0.0
    %2157 = vmatprep.subr.mxu0 0.0
    %2158 = vmatpush1.msra.mxu0 0.0
    %2159 = vmatprep.subr.mxu0 0.0
    %2160 = vmatpush1.msra.mxu0 0.0
    %2161 = vmatprep.subr.mxu0 0.0
    %2162 = vmatpush1.msra.mxu0 0.0
    %2163 = vmatprep.subr.mxu0 0.0
    %2164 = vmatpush1.msra.mxu0 0.0
    %2165 = vmatprep.subr.mxu0 0.0
    %2166 = vmatpush1.msra.mxu0 0.0
    %2167 = vmatprep.subr.mxu0 0.0
    %2168 = vmatpush1.msra.mxu0 0.0
    %2169 = vmatprep.subr.mxu0 0.0
    %2170 = vmatpush1.msra.mxu0 0.0
    %2171 = vmatprep.subr.mxu0 0.0
    %2172 = vmatpush1.msra.mxu0 0.0
    %2173 = vmatprep.subr.mxu0 0.0
    %2174 = vmatpush1.msra.mxu0 0.0
    %2175 = vmatprep.subr.mxu0 0.0
    %2176 = vmatpush1.msra.mxu0 0.0
    %2177 = vmatprep.subr.mxu0 0.0
    %2178 = vmatpush1.msra.mxu0 0.0
    %2179 = vmatprep.subr.mxu0 0.0
    %2180 = vmatpush1.msra.mxu0 0.0
    %2181 = vmatprep.subr.mxu0 0.0
    %2182 = vmatpush1.msra.mxu0 0.0
    %2183 = vmatprep.subr.mxu0 0.0
    %2184 = vmatpush1.msra.mxu0 0.0
    %2185 = vmatprep.subr.mxu0 0.0
    %2186 = vmatpush1.msra.mxu0 0.0
    %2187 = vmatprep.mubr.f32.mxu0 0.0
    %2188 = vmatmul.mubr.f32.gmra.mrb[0].mxu0 %v2121
    %v2189 = vpop.f32.mrb[0].mxu0
    %v2190 = vadd.f32 %v2118, %v2189
    %v2191 = vpop.f32.mrb[0].mxu0
    %2192 = vdwg.mxu0
    %v2193 = vld [vmem:[%s14] sm:$0xff]
    %v2194 = vld [vmem:[%s14 + $0x8] sm:$0xff]
    %v2195 = vld [vmem:[%s14 + $0x10] sm:$0xff]
    %v2196 = vld [vmem:[%s14 + $0x18] sm:$0xff]
    %v2197 = vld [vmem:[%s15] sm:$0x1]
    %v2199 = vlaneseq
    %v2200 = vshrl.u32 %v2199, 7
    %v2201 = vsub.s32 0, %v2200
    %v2202 = vrot.slane %v2197, %v2201
    %v2205 = vsel %vm108, %v104, 0
    %2207 = vmatprep.subr.mxu0 0.0
    %2208 = vmatpush1.msra.mxu0 %v2193
    %2209 = vmatprep.subr.mxu0 0.0
    %2210 = vmatpush1.msra.mxu0 %v2194
    %2211 = vmatprep.subr.mxu0 0.0
    %2212 = vmatpush1.msra.mxu0 %v2195
    %2213 = vmatprep.subr.mxu0 0.0
    %2214 = vmatpush1.msra.mxu0 %v2196
    %2215 = vmatprep.subr.mxu0 0.0
    %2216 = vmatpush1.msra.mxu0 0.0
    %2217 = vmatprep.subr.mxu0 0.0
    %2218 = vmatpush1.msra.mxu0 0.0
    %2219 = vmatprep.subr.mxu0 0.0
    %2220 = vmatpush1.msra.mxu0 0.0
    %2221 = vmatprep.subr.mxu0 0.0
    %2222 = vmatpush1.msra.mxu0 0.0
    %2223 = vmatprep.subr.mxu0 0.0
    %2224 = vmatpush1.msra.mxu0 0.0
    %2225 = vmatprep.subr.mxu0 0.0
    %2226 = vmatpush1.msra.mxu0 0.0
    %2227 = vmatprep.subr.mxu0 0.0
    %2228 = vmatpush1.msra.mxu0 0.0
    %2229 = vmatprep.subr.mxu0 0.0
    %2230 = vmatpush1.msra.mxu0 0.0
    %2231 = vmatprep.subr.mxu0 0.0
    %2232 = vmatpush1.msra.mxu0 0.0
    %2233 = vmatprep.subr.mxu0 0.0
    %2234 = vmatpush1.msra.mxu0 0.0
    %2235 = vmatprep.subr.mxu0 0.0
    %2236 = vmatpush1.msra.mxu0 0.0
    %2237 = vmatprep.subr.mxu0 0.0
    %2238 = vmatpush1.msra.mxu0 0.0
    %2239 = vmatprep.subr.mxu0 0.0
    %2240 = vmatpush1.msra.mxu0 0.0
    %2241 = vmatprep.subr.mxu0 0.0
    %2242 = vmatpush1.msra.mxu0 0.0
    %2243 = vmatprep.subr.mxu0 0.0
    %2244 = vmatpush1.msra.mxu0 0.0
    %2245 = vmatprep.subr.mxu0 0.0
    %2246 = vmatpush1.msra.mxu0 0.0
    %2247 = vmatprep.subr.mxu0 0.0
    %2248 = vmatpush1.msra.mxu0 0.0
    %2249 = vmatprep.subr.mxu0 0.0
    %2250 = vmatpush1.msra.mxu0 0.0
    %2251 = vmatprep.subr.mxu0 0.0
    %2252 = vmatpush1.msra.mxu0 0.0
    %2253 = vmatprep.subr.mxu0 0.0
    %2254 = vmatpush1.msra.mxu0 0.0
    %2255 = vmatprep.subr.mxu0 0.0
    %2256 = vmatpush1.msra.mxu0 0.0
    %2257 = vmatprep.subr.mxu0 0.0
    %2258 = vmatpush1.msra.mxu0 0.0
    %2259 = vmatprep.subr.mxu0 0.0
    %2260 = vmatpush1.msra.mxu0 0.0
    %2261 = vmatprep.subr.mxu0 0.0
    %2262 = vmatpush1.msra.mxu0 0.0
    %2263 = vmatprep.subr.mxu0 0.0
    %2264 = vmatpush1.msra.mxu0 0.0
    %2265 = vmatprep.subr.mxu0 0.0
    %2266 = vmatpush1.msra.mxu0 0.0
    %2267 = vmatprep.subr.mxu0 0.0
    %2268 = vmatpush1.msra.mxu0 0.0
    %2269 = vmatprep.subr.mxu0 0.0
    %2270 = vmatpush1.msra.mxu0 0.0
    %2271 = vmatprep.mubr.f32.mxu0 0.0
    %2272 = vmatmul.mubr.f32.gmra.mrb[0].mxu0 %v2205
    %v2273 = vpop.f32.mrb[0].mxu0
    %v2274 = vadd.f32 %v2202, %v2273
    %v2275 = vpop.f32.mrb[0].mxu0
    %2276 = vdwg.mxu0
    %v2277 = vld [vmem:[%s16] sm:$0xff]
    %v2278 = vld [vmem:[%s16 + $0x8] sm:$0xff]
    %v2279 = vld [vmem:[%s16 + $0x10] sm:$0xff]
    %v2280 = vld [vmem:[%s16 + $0x18] sm:$0xff]
    %v2281 = vld [vmem:[%s17] sm:$0x1]
    %v2283 = vlaneseq
    %v2284 = vshrl.u32 %v2283, 7
    %v2285 = vsub.s32 0, %v2284
    %v2286 = vrot.slane %v2281, %v2285
    %2288 = vmatprep.subr.mxu0 0.0
    %2289 = vmatpush1.msra.mxu0 %v2277
    %2290 = vmatprep.subr.mxu0 0.0
    %2291 = vmatpush1.msra.mxu0 %v2278
    %2292 = vmatprep.subr.mxu0 0.0
    %2293 = vmatpush1.msra.mxu0 %v2279
    %2294 = vmatprep.subr.mxu0 0.0
    %2295 = vmatpush1.msra.mxu0 %v2280
    %2296 = vmatprep.subr.mxu0 0.0
    %2297 = vmatpush1.msra.mxu0 0.0
    %2298 = vmatprep.subr.mxu0 0.0
    %2299 = vmatpush1.msra.mxu0 0.0
    %2300 = vmatprep.subr.mxu0 0.0
    %2301 = vmatpush1.msra.mxu0 0.0
    %2302 = vmatprep.subr.mxu0 0.0
    %2303 = vmatpush1.msra.mxu0 0.0
    %2304 = vmatprep.subr.mxu0 0.0
    %2305 = vmatpush1.msra.mxu0 0.0
    %2306 = vmatprep.subr.mxu0 0.0
    %2307 = vmatpush1.msra.mxu0 0.0
    %2308 = vmatprep.subr.mxu0 0.0
    %2309 = vmatpush1.msra.mxu0 0.0
    %2310 = vmatprep.subr.mxu0 0.0
    %2311 = vmatpush1.msra.mxu0 0.0
    %2312 = vmatprep.subr.mxu0 0.0
    %2313 = vmatpush1.msra.mxu0 0.0
    %2314 = vmatprep.subr.mxu0 0.0
    %2315 = vmatpush1.msra.mxu0 0.0
    %2316 = vmatprep.subr.mxu0 0.0
    %2317 = vmatpush1.msra.mxu0 0.0
    %2318 = vmatprep.subr.mxu0 0.0
    %2319 = vmatpush1.msra.mxu0 0.0
    %2320 = vmatprep.subr.mxu0 0.0
    %2321 = vmatpush1.msra.mxu0 0.0
    %2322 = vmatprep.subr.mxu0 0.0
    %2323 = vmatpush1.msra.mxu0 0.0
    %2324 = vmatprep.subr.mxu0 0.0
    %2325 = vmatpush1.msra.mxu0 0.0
    %2326 = vmatprep.subr.mxu0 0.0
    %2327 = vmatpush1.msra.mxu0 0.0
    %2328 = vmatprep.subr.mxu0 0.0
    %2329 = vmatpush1.msra.mxu0 0.0
    %2330 = vmatprep.subr.mxu0 0.0
    %2331 = vmatpush1.msra.mxu0 0.0
    %2332 = vmatprep.subr.mxu0 0.0
    %2333 = vmatpush1.msra.mxu0 0.0
    %2334 = vmatprep.subr.mxu0 0.0
    %2335 = vmatpush1.msra.mxu0 0.0
    %2336 = vmatprep.subr.mxu0 0.0
    %2337 = vmatpush1.msra.mxu0 0.0
    %2338 = vmatprep.subr.mxu0 0.0
    %2339 = vmatpush1.msra.mxu0 0.0
    %2340 = vmatprep.subr.mxu0 0.0
    %2341 = vmatpush1.msra.mxu0 0.0
    %2342 = vmatprep.subr.mxu0 0.0
    %2343 = vmatpush1.msra.mxu0 0.0
    %2344 = vmatprep.subr.mxu0 0.0
    %2345 = vmatpush1.msra.mxu0 0.0
    %2346 = vmatprep.subr.mxu0 0.0
    %2347 = vmatpush1.msra.mxu0 0.0
    %2348 = vmatprep.subr.mxu0 0.0
    %2349 = vmatpush1.msra.mxu0 0.0
    %2350 = vmatprep.subr.mxu0 0.0
    %2351 = vmatpush1.msra.mxu0 0.0
    %2352 = vmatprep.mubr.f32.mxu0 0.0
    %2353 = vmatmul.mubr.f32.gmra.mrb[0].mxu0 %v2205
    %v2354 = vpop.f32.mrb[0].mxu0
    %v2355 = vadd.f32 %v2286, %v2354
    %v2356 = vpop.f32.mrb[0].mxu0
    %2357 = vdwg.mxu0
    %v2359 = vsel %vm381, %v2190, 0
    %v2362 = vsel %vm381, %v2274, 0
    %2364 = vmatprep.subr.mxu0 0.0
    %2365 = vmatpush1.xpose.msra.mxu0 %v2362
    %2366 = vmatprep.subr.mxu0 0.0
    %2367 = vmatpush1.xpose.msra.mxu0 0.0
    %2368 = vmatprep.subr.mxu0 0.0
    %2369 = vmatpush1.xpose.msra.mxu0 0.0
    %2370 = vmatprep.subr.mxu0 0.0
    %2371 = vmatpush1.xpose.msra.mxu0 0.0
    %2372 = vmatprep.subr.mxu0 0.0
    %2373 = vmatpush1.xpose.msra.mxu0 0.0
    %2374 = vmatprep.subr.mxu0 0.0
    %2375 = vmatpush1.xpose.msra.mxu0 0.0
    %2376 = vmatprep.subr.mxu0 0.0
    %2377 = vmatpush1.xpose.msra.mxu0 0.0
    %2378 = vmatprep.subr.mxu0 0.0
    %2379 = vmatpush1.xpose.msra.mxu0 0.0
    %2380 = vmatprep.subr.mxu0 0.0
    %2381 = vmatpush1.xpose.msra.mxu0 0.0
    %2382 = vmatprep.subr.mxu0 0.0
    %2383 = vmatpush1.xpose.msra.mxu0 0.0
    %2384 = vmatprep.subr.mxu0 0.0
    %2385 = vmatpush1.xpose.msra.mxu0 0.0
    %2386 = vmatprep.subr.mxu0 0.0
    %2387 = vmatpush1.xpose.msra.mxu0 0.0
    %2388 = vmatprep.subr.mxu0 0.0
    %2389 = vmatpush1.xpose.msra.mxu0 0.0
    %2390 = vmatprep.subr.mxu0 0.0
    %2391 = vmatpush1.xpose.msra.mxu0 0.0
    %2392 = vmatprep.subr.mxu0 0.0
    %2393 = vmatpush1.xpose.msra.mxu0 0.0
    %2394 = vmatprep.subr.mxu0 0.0
    %2395 = vmatpush1.xpose.msra.mxu0 0.0
    %2396 = vmatprep.subr.mxu0 0.0
    %2397 = vmatpush1.xpose.msra.mxu0 0.0
    %2398 = vmatprep.subr.mxu0 0.0
    %2399 = vmatpush1.xpose.msra.mxu0 0.0
    %2400 = vmatprep.subr.mxu0 0.0
    %2401 = vmatpush1.xpose.msra.mxu0 0.0
    %2402 = vmatprep.subr.mxu0 0.0
    %2403 = vmatpush1.xpose.msra.mxu0 0.0
    %2404 = vmatprep.subr.mxu0 0.0
    %2405 = vmatpush1.xpose.msra.mxu0 0.0
    %2406 = vmatprep.subr.mxu0 0.0
    %2407 = vmatpush1.xpose.msra.mxu0 0.0
    %2408 = vmatprep.subr.mxu0 0.0
    %2409 = vmatpush1.xpose.msra.mxu0 0.0
    %2410 = vmatprep.subr.mxu0 0.0
    %2411 = vmatpush1.xpose.msra.mxu0 0.0
    %2412 = vmatprep.subr.mxu0 0.0
    %2413 = vmatpush1.xpose.msra.mxu0 0.0
    %2414 = vmatprep.subr.mxu0 0.0
    %2415 = vmatpush1.xpose.msra.mxu0 0.0
    %2416 = vmatprep.subr.mxu0 0.0
    %2417 = vmatpush1.xpose.msra.mxu0 0.0
    %2418 = vmatprep.subr.mxu0 0.0
    %2419 = vmatpush1.xpose.msra.mxu0 0.0
    %2420 = vmatprep.subr.mxu0 0.0
    %2421 = vmatpush1.xpose.msra.mxu0 0.0
    %2422 = vmatprep.subr.mxu0 0.0
    %2423 = vmatpush1.xpose.msra.mxu0 0.0
    %2424 = vmatprep.subr.mxu0 0.0
    %2425 = vmatpush1.xpose.msra.mxu0 0.0
    %2426 = vmatprep.subr.mxu0 0.0
    %2427 = vmatpush1.xpose.msra.mxu0 0.0
    %2428 = vmatprep.mubr.f32.mxu0 0.0
    %2429 = vmatmul.mubr.f32.gmra.mrb[0].mxu0 %v2359
    %v2430 = vpop.f32.mrb[0].mxu0
    %v2431 = vadd.f32 0.0, %v2430
    %v2432 = vpop.f32.mrb[0].mxu0
    %2433 = vdwg.mxu0
    %v2434 = vmul.f32 %v2431, 0.35355338
    %v2435 = vadd.f32 %v2434, %v105
    %v2436 = vsel %vm381, %v2435, -inf
    %2437 = vmax.xlane.f32.xlu0 %v2436
    %v2438 = vpop.xlane.xlu0 %2437
    %v2439 = vsub.f32 %v2435, %v2438
    %v2440 = vmul.f32 %v2439, 1.442695
    %v2441 = vpow.pop %v2440
    %v2442 = vsel %vm381, %v2441, 0.0
    %2443 = vadd.xlane.f32.xlu0 %v2442
    %v2444 = vpop.xlane.xlu0 %2443
    %v2445 = vrcp.pop %v2444
    %v2446 = vmul.f32 %v2441, %v2445
    %v2448 = vsel %vm381, %v2446, 0
    %2450 = vmatprep.subr.mxu0 0.0
    %2451 = vmatpush1.msra.mxu0 %v2355
    %2452 = vmatprep.subr.mxu0 0.0
    %2453 = vmatpush1.msra.mxu0 0.0
    %2454 = vmatprep.subr.mxu0 0.0
    %2455 = vmatpush1.msra.mxu0 0.0
    %2456 = vmatprep.subr.mxu0 0.0
    %2457 = vmatpush1.msra.mxu0 0.0
    %2458 = vmatprep.subr.mxu0 0.0
    %2459 = vmatpush1.msra.mxu0 0.0
    %2460 = vmatprep.subr.mxu0 0.0
    %2461 = vmatpush1.msra.mxu0 0.0
    %2462 = vmatprep.subr.mxu0 0.0
    %2463 = vmatpush1.msra.mxu0 0.0
    %2464 = vmatprep.subr.mxu0 0.0
    %2465 = vmatpush1.msra.mxu0 0.0
    %2466 = vmatprep.subr.mxu0 0.0
    %2467 = vmatpush1.msra.mxu0 0.0
    %2468 = vmatprep.subr.mxu0 0.0
    %2469 = vmatpush1.msra.mxu0 0.0
    %2470 = vmatprep.subr.mxu0 0.0
    %2471 = vmatpush1.msra.mxu0 0.0
    %2472 = vmatprep.subr.mxu0 0.0
    %2473 = vmatpush1.msra.mxu0 0.0
    %2474 = vmatprep.subr.mxu0 0.0
    %2475 = vmatpush1.msra.mxu0 0.0
    %2476 = vmatprep.subr.mxu0 0.0
    %2477 = vmatpush1.msra.mxu0 0.0
    %2478 = vmatprep.subr.mxu0 0.0
    %2479 = vmatpush1.msra.mxu0 0.0
    %2480 = vmatprep.subr.mxu0 0.0
    %2481 = vmatpush1.msra.mxu0 0.0
    %2482 = vmatprep.subr.mxu0 0.0
    %2483 = vmatpush1.msra.mxu0 0.0
    %2484 = vmatprep.subr.mxu0 0.0
    %2485 = vmatpush1.msra.mxu0 0.0
    %2486 = vmatprep.subr.mxu0 0.0
    %2487 = vmatpush1.msra.mxu0 0.0
    %2488 = vmatprep.subr.mxu0 0.0
    %2489 = vmatpush1.msra.mxu0 0.0
    %2490 = vmatprep.subr.mxu0 0.0
    %2491 = vmatpush1.msra.mxu0 0.0
    %2492 = vmatprep.subr.mxu0 0.0
    %2493 = vmatpush1.msra.mxu0 0.0
    %2494 = vmatprep.subr.mxu0 0.0
    %2495 = vmatpush1.msra.mxu0 0.0
    %2496 = vmatprep.subr.mxu0 0.0
    %2497 = vmatpush1.msra.mxu0 0.0
    %2498 = vmatprep.subr.mxu0 0.0
    %2499 = vmatpush1.msra.mxu0 0.0
    %2500 = vmatprep.subr.mxu0 0.0
    %2501 = vmatpush1.msra.mxu0 0.0
    %2502 = vmatprep.subr.mxu0 0.0
    %2503 = vmatpush1.msra.mxu0 0.0
    %2504 = vmatprep.subr.mxu0 0.0
    %2505 = vmatpush1.msra.mxu0 0.0
    %2506 = vmatprep.subr.mxu0 0.0
    %2507 = vmatpush1.msra.mxu0 0.0
    %2508 = vmatprep.subr.mxu0 0.0
    %2509 = vmatpush1.msra.mxu0 0.0
    %2510 = vmatprep.subr.mxu0 0.0
    %2511 = vmatpush1.msra.mxu0 0.0
    %2512 = vmatprep.subr.mxu0 0.0
    %2513 = vmatpush1.msra.mxu0 0.0
    %2514 = vmatprep.mubr.f32.mxu0 0.0
    %2515 = vmatmul.mubr.f32.gmra.mrb[0].mxu0 %v2448
    %v2516 = vpop.f32.mrb[0].mxu0
    %v2517 = vadd.f32 0.0, %v2516
    %v2518 = vpop.f32.mrb[0].mxu0
    %2519 = vdwg.mxu0
    %v2520 = vld [vmem:[%s18] sm:$0xff]
    %s2521 = scalar_lea.vmem %s12, 32
    %v2522 = vld [vmem:[%s2521] sm:$0xff]
    %v2523 = vld [vmem:[%s2521 + $0x8] sm:$0xff]
    %v2524 = vld [vmem:[%s2521 + $0x10] sm:$0xff]
    %v2525 = vld [vmem:[%s2521 + $0x18] sm:$0xff]
    %s2526 = scalar_lea.vmem %s13, 1
    %v2527 = vld [vmem:[%s2526] sm:$0x1]
    %v2529 = vlaneseq
    %v2530 = vshrl.u32 %v2529, 7
    %v2531 = vsub.s32 0, %v2530
    %v2532 = vrot.slane %v2527, %v2531
    %2534 = vmatprep.subr.mxu0 0.0
    %2535 = vmatpush1.msra.mxu0 %v2522
    %2536 = vmatprep.subr.mxu0 0.0
    %2537 = vmatpush1.msra.mxu0 %v2523
    %2538 = vmatprep.subr.mxu0 0.0
    %2539 = vmatpush1.msra.mxu0 %v2524
    %2540 = vmatprep.subr.mxu0 0.0
    %2541 = vmatpush1.msra.mxu0 %v2525
    %2542 = vmatprep.subr.mxu0 0.0
    %2543 = vmatpush1.msra.mxu0 0.0
    %2544 = vmatprep.subr.mxu0 0.0
    %2545 = vmatpush1.msra.mxu0 0.0
    %2546 = vmatprep.subr.mxu0 0.0
    %2547 = vmatpush1.msra.mxu0 0.0
    %2548 = vmatprep.subr.mxu0 0.0
    %2549 = vmatpush1.msra.mxu0 0.0
    %2550 = vmatprep.subr.mxu0 0.0
    %2551 = vmatpush1.msra.mxu0 0.0
    %2552 = vmatprep.subr.mxu0 0.0
    %2553 = vmatpush1.msra.mxu0 0.0
    %2554 = vmatprep.subr.mxu0 0.0
    %2555 = vmatpush1.msra.mxu0 0.0
    %2556 = vmatprep.subr.mxu0 0.0
    %2557 = vmatpush1.msra.mxu0 0.0
    %2558 = vmatprep.subr.mxu0 0.0
    %2559 = vmatpush1.msra.mxu0 0.0
    %2560 = vmatprep.subr.mxu0 0.0
    %2561 = vmatpush1.msra.mxu0 0.0
    %2562 = vmatprep.subr.mxu0 0.0
    %2563 = vmatpush1.msra.mxu0 0.0
    %2564 = vmatprep.subr.mxu0 0.0
    %2565 = vmatpush1.msra.mxu0 0.0
    %2566 = vmatprep.subr.mxu0 0.0
    %2567 = vmatpush1.msra.mxu0 0.0
    %2568 = vmatprep.subr.mxu0 0.0
    %2569 = vmatpush1.msra.mxu0 0.0
    %2570 = vmatprep.subr.mxu0 0.0
    %2571 = vmatpush1.msra.mxu0 0.0
    %2572 = vmatprep.subr.mxu0 0.0
    %2573 = vmatpush1.msra.mxu0 0.0
    %2574 = vmatprep.subr.mxu0 0.0
    %2575 = vmatpush1.msra.mxu0 0.0
    %2576 = vmatprep.subr.mxu0 0.0
    %2577 = vmatpush1.msra.mxu0 0.0
    %2578 = vmatprep.subr.mxu0 0.0
    %2579 = vmatpush1.msra.mxu0 0.0
    %2580 = vmatprep.subr.mxu0 0.0
    %2581 = vmatpush1.msra.mxu0 0.0
    %2582 = vmatprep.subr.mxu0 0.0
    %2583 = vmatpush1.msra.mxu0 0.0
    %2584 = vmatprep.subr.mxu0 0.0
    %2585 = vmatpush1.msra.mxu0 0.0
    %2586 = vmatprep.subr.mxu0 0.0
    %2587 = vmatpush1.msra.mxu0 0.0
    %2588 = vmatprep.subr.mxu0 0.0
    %2589 = vmatpush1.msra.mxu0 0.0
    %2590 = vmatprep.subr.mxu0 0.0
    %2591 = vmatpush1.msra.mxu0 0.0
    %2592 = vmatprep.subr.mxu0 0.0
    %2593 = vmatpush1.msra.mxu0 0.0
    %2594 = vmatprep.subr.mxu0 0.0
    %2595 = vmatpush1.msra.mxu0 0.0
    %2596 = vmatprep.subr.mxu0 0.0
    %2597 = vmatpush1.msra.mxu0 0.0
    %2598 = vmatprep.mubr.f32.mxu0 0.0
    %2599 = vmatmul.mubr.f32.gmra.mrb[0].mxu0 %v2121
    %v2600 = vpop.f32.mrb[0].mxu0
    %v2601 = vadd.f32 %v2532, %v2600
    %v2602 = vpop.f32.mrb[0].mxu0
    %2603 = vdwg.mxu0
    %s2604 = scalar_lea.vmem %s14, 32
    %v2605 = vld [vmem:[%s2604] sm:$0xff]
    %v2606 = vld [vmem:[%s2604 + $0x8] sm:$0xff]
    %v2607 = vld [vmem:[%s2604 + $0x10] sm:$0xff]
    %v2608 = vld [vmem:[%s2604 + $0x18] sm:$0xff]
    %s2609 = scalar_lea.vmem %s15, 1
    %v2610 = vld [vmem:[%s2609] sm:$0x1]
    %v2612 = vlaneseq
    %v2613 = vshrl.u32 %v2612, 7
    %v2614 = vsub.s32 0, %v2613
    %v2615 = vrot.slane %v2610, %v2614
    %2617 = vmatprep.subr.mxu0 0.0
    %2618 = vmatpush1.msra.mxu0 %v2605
    %2619 = vmatprep.subr.mxu0 0.0
    %2620 = vmatpush1.msra.mxu0 %v2606
    %2621 = vmatprep.subr.mxu0 0.0
    %2622 = vmatpush1.msra.mxu0 %v2607
    %2623 = vmatprep.subr.mxu0 0.0
    %2624 = vmatpush1.msra.mxu0 %v2608
    %2625 = vmatprep.subr.mxu0 0.0
    %2626 = vmatpush1.msra.mxu0 0.0
    %2627 = vmatprep.subr.mxu0 0.0
    %2628 = vmatpush1.msra.mxu0 0.0
    %2629 = vmatprep.subr.mxu0 0.0
    %2630 = vmatpush1.msra.mxu0 0.0
    %2631 = vmatprep.subr.mxu0 0.0
    %2632 = vmatpush1.msra.mxu0 0.0
    %2633 = vmatprep.subr.mxu0 0.0
    %2634 = vmatpush1.msra.mxu0 0.0
    %2635 = vmatprep.subr.mxu0 0.0
    %2636 = vmatpush1.msra.mxu0 0.0
    %2637 = vmatprep.subr.mxu0 0.0
    %2638 = vmatpush1.msra.mxu0 0.0
    %2639 = vmatprep.subr.mxu0 0.0
    %2640 = vmatpush1.msra.mxu0 0.0
    %2641 = vmatprep.subr.mxu0 0.0
    %2642 = vmatpush1.msra.mxu0 0.0
    %2643 = vmatprep.subr.mxu0 0.0
    %2644 = vmatpush1.msra.mxu0 0.0
    %2645 = vmatprep.subr.mxu0 0.0
    %2646 = vmatpush1.msra.mxu0 0.0
    %2647 = vmatprep.subr.mxu0 0.0
    %2648 = vmatpush1.msra.mxu0 0.0
    %2649 = vmatprep.subr.mxu0 0.0
    %2650 = vmatpush1.msra.mxu0 0.0
    %2651 = vmatprep.subr.mxu0 0.0
    %2652 = vmatpush1.msra.mxu0 0.0
    %2653 = vmatprep.subr.mxu0 0.0
    %2654 = vmatpush1.msra.mxu0 0.0
    %2655 = vmatprep.subr.mxu0 0.0
    %2656 = vmatpush1.msra.mxu0 0.0
    %2657 = vmatprep.subr.mxu0 0.0
    %2658 = vmatpush1.msra.mxu0 0.0
    %2659 = vmatprep.subr.mxu0 0.0
    %2660 = vmatpush1.msra.mxu0 0.0
    %2661 = vmatprep.subr.mxu0 0.0
    %2662 = vmatpush1.msra.mxu0 0.0
    %2663 = vmatprep.subr.mxu0 0.0
    %2664 = vmatpush1.msra.mxu0 0.0
    %2665 = vmatprep.subr.mxu0 0.0
    %2666 = vmatpush1.msra.mxu0 0.0
    %2667 = vmatprep.subr.mxu0 0.0
    %2668 = vmatpush1.msra.mxu0 0.0
    %2669 = vmatprep.subr.mxu0 0.0
    %2670 = vmatpush1.msra.mxu0 0.0
    %2671 = vmatprep.subr.mxu0 0.0
    %2672 = vmatpush1.msra.mxu0 0.0
    %2673 = vmatprep.subr.mxu0 0.0
    %2674 = vmatpush1.msra.mxu0 0.0
    %2675 = vmatprep.subr.mxu0 0.0
    %2676 = vmatpush1.msra.mxu0 0.0
    %2677 = vmatprep.subr.mxu0 0.0
    %2678 = vmatpush1.msra.mxu0 0.0
    %2679 = vmatprep.subr.mxu0 0.0
    %2680 = vmatpush1.msra.mxu0 0.0
    %2681 = vmatprep.mubr.f32.mxu0 0.0
    %2682 = vmatmul.mubr.f32.gmra.mrb[0].mxu0 %v2205
    %v2683 = vpop.f32.mrb[0].mxu0
    %v2684 = vadd.f32 %v2615, %v2683
    %v2685 = vpop.f32.mrb[0].mxu0
    %2686 = vdwg.mxu0
    %s2687 = scalar_lea.vmem %s16, 32
    %v2688 = vld [vmem:[%s2687] sm:$0xff]
    %v2689 = vld [vmem:[%s2687 + $0x8] sm:$0xff]
    %v2690 = vld [vmem:[%s2687 + $0x10] sm:$0xff]
    %v2691 = vld [vmem:[%s2687 + $0x18] sm:$0xff]
    %s2692 = scalar_lea.vmem %s17, 1
    %v2693 = vld [vmem:[%s2692] sm:$0x1]
    %v2695 = vlaneseq
    %v2696 = vshrl.u32 %v2695, 7
    %v2697 = vsub.s32 0, %v2696
    %v2698 = vrot.slane %v2693, %v2697
    %2700 = vmatprep.subr.mxu0 0.0
    %2701 = vmatpush1.msra.mxu0 %v2688
    %2702 = vmatprep.subr.mxu0 0.0
    %2703 = vmatpush1.msra.mxu0 %v2689
    %2704 = vmatprep.subr.mxu0 0.0
    %2705 = vmatpush1.msra.mxu0 %v2690
    %2706 = vmatprep.subr.mxu0 0.0
    %2707 = vmatpush1.msra.mxu0 %v2691
    %2708 = vmatprep.subr.mxu0 0.0
    %2709 = vmatpush1.msra.mxu0 0.0
    %2710 = vmatprep.subr.mxu0 0.0
    %2711 = vmatpush1.msra.mxu0 0.0
    %2712 = vmatprep.subr.mxu0 0.0
    %2713 = vmatpush1.msra.mxu0 0.0
    %2714 = vmatprep.subr.mxu0 0.0
    %2715 = vmatpush1.msra.mxu0 0.0
    %2716 = vmatprep.subr.mxu0 0.0
    %2717 = vmatpush1.msra.mxu0 0.0
    %2718 = vmatprep.subr.mxu0 0.0
    %2719 = vmatpush1.msra.mxu0 0.0
    %2720 = vmatprep.subr.mxu0 0.0
    %2721 = vmatpush1.msra.mxu0 0.0
    %2722 = vmatprep.subr.mxu0 0.0
    %2723 = vmatpush1.msra.mxu0 0.0
    %2724 = vmatprep.subr.mxu0 0.0
    %2725 = vmatpush1.msra.mxu0 0.0
    %2726 = vmatprep.subr.mxu0 0.0
    %2727 = vmatpush1.msra.mxu0 0.0
    %2728 = vmatprep.subr.mxu0 0.0
    %2729 = vmatpush1.msra.mxu0 0.0
    %2730 = vmatprep.subr.mxu0 0.0
    %2731 = vmatpush1.msra.mxu0 0.0
    %2732 = vmatprep.subr.mxu0 0.0
    %2733 = vmatpush1.msra.mxu0 0.0
    %2734 = vmatprep.subr.mxu0 0.0
    %2735 = vmatpush1.msra.mxu0 0.0
    %2736 = vmatprep.subr.mxu0 0.0
    %2737 = vmatpush1.msra.mxu0 0.0
    %2738 = vmatprep.subr.mxu0 0.0
    %2739 = vmatpush1.msra.mxu0 0.0
    %2740 = vmatprep.subr.mxu0 0.0
    %2741 = vmatpush1.msra.mxu0 0.0
    %2742 = vmatprep.subr.mxu0 0.0
    %2743 = vmatpush1.msra.mxu0 0.0
    %2744 = vmatprep.subr.mxu0 0.0
    %2745 = vmatpush1.msra.mxu0 0.0
    %2746 = vmatprep.subr.mxu0 0.0
    %2747 = vmatpush1.msra.mxu0 0.0
    %2748 = vmatprep.subr.mxu0 0.0
    %2749 = vmatpush1.msra.mxu0 0.0
    %2750 = vmatprep.subr.mxu0 0.0
    %2751 = vmatpush1.msra.mxu0 0.0
    %2752 = vmatprep.subr.mxu0 0.0
    %2753 = vmatpush1.msra.mxu0 0.0
    %2754 = vmatprep.subr.mxu0 0.0
    %2755 = vmatpush1.msra.mxu0 0.0
    %2756 = vmatprep.subr.mxu0 0.0
    %2757 = vmatpush1.msra.mxu0 0.0
    %2758 = vmatprep.subr.mxu0 0.0
    %2759 = vmatpush1.msra.mxu0 0.0
    %2760 = vmatprep.subr.mxu0 0.0
    %2761 = vmatpush1.msra.mxu0 0.0
    %2762 = vmatprep.subr.mxu0 0.0
    %2763 = vmatpush1.msra.mxu0 0.0
    %2764 = vmatprep.mubr.f32.mxu0 0.0
    %2765 = vmatmul.mubr.f32.gmra.mrb[0].mxu0 %v2205
    %v2766 = vpop.f32.mrb[0].mxu0
    %v2767 = vadd.f32 %v2698, %v2766
    %v2768 = vpop.f32.mrb[0].mxu0
    %2769 = vdwg.mxu0
    %v2771 = vsel %vm381, %v2601, 0
    %v2774 = vsel %vm381, %v2684, 0
    %2776 = vmatprep.subr.mxu0 0.0
    %2777 = vmatpush1.xpose.msra.mxu0 %v2774
    %2778 = vmatprep.subr.mxu0 0.0
    %2779 = vmatpush1.xpose.msra.mxu0 0.0
    %2780 = vmatprep.subr.mxu0 0.0
    %2781 = vmatpush1.xpose.msra.mxu0 0.0
    %2782 = vmatprep.subr.mxu0 0.0
    %2783 = vmatpush1.xpose.msra.mxu0 0.0
    %2784 = vmatprep.subr.mxu0 0.0
    %2785 = vmatpush1.xpose.msra.mxu0 0.0
    %2786 = vmatprep.subr.mxu0 0.0
    %2787 = vmatpush1.xpose.msra.mxu0 0.0
    %2788 = vmatprep.subr.mxu0 0.0
    %2789 = vmatpush1.xpose.msra.mxu0 0.0
    %2790 = vmatprep.subr.mxu0 0.0
    %2791 = vmatpush1.xpose.msra.mxu0 0.0
    %2792 = vmatprep.subr.mxu0 0.0
    %2793 = vmatpush1.xpose.msra.mxu0 0.0
    %2794 = vmatprep.subr.mxu0 0.0
    %2795 = vmatpush1.xpose.msra.mxu0 0.0
    %2796 = vmatprep.subr.mxu0 0.0
    %2797 = vmatpush1.xpose.msra.mxu0 0.0
    %2798 = vmatprep.subr.mxu0 0.0
    %2799 = vmatpush1.xpose.msra.mxu0 0.0
    %2800 = vmatprep.subr.mxu0 0.0
    %2801 = vmatpush1.xpose.msra.mxu0 0.0
    %2802 = vmatprep.subr.mxu0 0.0
    %2803 = vmatpush1.xpose.msra.mxu0 0.0
    %2804 = vmatprep.subr.mxu0 0.0
    %2805 = vmatpush1.xpose.msra.mxu0 0.0
    %2806 = vmatprep.subr.mxu0 0.0
    %2807 = vmatpush1.xpose.msra.mxu0 0.0
    %2808 = vmatprep.subr.mxu0 0.0
    %2809 = vmatpush1.xpose.msra.mxu0 0.0
    %2810 = vmatprep.subr.mxu0 0.0
    %2811 = vmatpush1.xpose.msra.mxu0 0.0
    %2812 = vmatprep.subr.mxu0 0.0
    %2813 = vmatpush1.xpose.msra.mxu0 0.0
    %2814 = vmatprep.subr.mxu0 0.0
    %2815 = vmatpush1.xpose.msra.mxu0 0.0
    %2816 = vmatprep.subr.mxu0 0.0
    %2817 = vmatpush1.xpose.msra.mxu0 0.0
    %2818 = vmatprep.subr.mxu0 0.0
    %2819 = vmatpush1.xpose.msra.mxu0 0.0
    %2820 = vmatprep.subr.mxu0 0.0
    %2821 = vmatpush1.xpose.msra.mxu0 0.0
    %2822 = vmatprep.subr.mxu0 0.0
    %2823 = vmatpush1.xpose.msra.mxu0 0.0
    %2824 = vmatprep.subr.mxu0 0.0
    %2825 = vmatpush1.xpose.msra.mxu0 0.0
    %2826 = vmatprep.subr.mxu0 0.0
    %2827 = vmatpush1.xpose.msra.mxu0 0.0
    %2828 = vmatprep.subr.mxu0 0.0
    %2829 = vmatpush1.xpose.msra.mxu0 0.0
    %2830 = vmatprep.subr.mxu0 0.0
    %2831 = vmatpush1.xpose.msra.mxu0 0.0
    %2832 = vmatprep.subr.mxu0 0.0
    %2833 = vmatpush1.xpose.msra.mxu0 0.0
    %2834 = vmatprep.subr.mxu0 0.0
    %2835 = vmatpush1.xpose.msra.mxu0 0.0
    %2836 = vmatprep.subr.mxu0 0.0
    %2837 = vmatpush1.xpose.msra.mxu0 0.0
    %2838 = vmatprep.subr.mxu0 0.0
    %2839 = vmatpush1.xpose.msra.mxu0 0.0
    %2840 = vmatprep.mubr.f32.mxu0 0.0
    %2841 = vmatmul.mubr.f32.gmra.mrb[0].mxu0 %v2771
    %v2842 = vpop.f32.mrb[0].mxu0
    %v2843 = vadd.f32 0.0, %v2842
    %v2844 = vpop.f32.mrb[0].mxu0
    %2845 = vdwg.mxu0
    %v2846 = vmul.f32 %v2843, 0.35355338
    %v2847 = vadd.f32 %v2846, %v105
    %v2848 = vsel %vm381, %v2847, -inf
    %2849 = vmax.xlane.f32.xlu0 %v2848
    %v2850 = vpop.xlane.xlu0 %2849
    %v2851 = vsub.f32 %v2847, %v2850
    %v2852 = vmul.f32 %v2851, 1.442695
    %v2853 = vpow.pop %v2852
    %v2854 = vsel %vm381, %v2853, 0.0
    %2855 = vadd.xlane.f32.xlu0 %v2854
    %v2856 = vpop.xlane.xlu0 %2855
    %v2857 = vrcp.pop %v2856
    %v2858 = vmul.f32 %v2853, %v2857
    %v2860 = vsel %vm381, %v2858, 0
    %2862 = vmatprep.subr.mxu0 0.0
    %2863 = vmatpush1.msra.mxu0 %v2767
    %2864 = vmatprep.subr.mxu0 0.0
    %2865 = vmatpush1.msra.mxu0 0.0
    %2866 = vmatprep.subr.mxu0 0.0
    %2867 = vmatpush1.msra.mxu0 0.0
    %2868 = vmatprep.subr.mxu0 0.0
    %2869 = vmatpush1.msra.mxu0 0.0
    %2870 = vmatprep.subr.mxu0 0.0
    %2871 = vmatpush1.msra.mxu0 0.0
    %2872 = vmatprep.subr.mxu0 0.0
    %2873 = vmatpush1.msra.mxu0 0.0
    %2874 = vmatprep.subr.mxu0 0.0
    %2875 = vmatpush1.msra.mxu0 0.0
    %2876 = vmatprep.subr.mxu0 0.0
    %2877 = vmatpush1.msra.mxu0 0.0
    %2878 = vmatprep.subr.mxu0 0.0
    %2879 = vmatpush1.msra.mxu0 0.0
    %2880 = vmatprep.subr.mxu0 0.0
    %2881 = vmatpush1.msra.mxu0 0.0
    %2882 = vmatprep.subr.mxu0 0.0
    %2883 = vmatpush1.msra.mxu0 0.0
    %2884 = vmatprep.subr.mxu0 0.0
    %2885 = vmatpush1.msra.mxu0 0.0
    %2886 = vmatprep.subr.mxu0 0.0
    %2887 = vmatpush1.msra.mxu0 0.0
    %2888 = vmatprep.subr.mxu0 0.0
    %2889 = vmatpush1.msra.mxu0 0.0
    %2890 = vmatprep.subr.mxu0 0.0
    %2891 = vmatpush1.msra.mxu0 0.0
    %2892 = vmatprep.subr.mxu0 0.0
    %2893 = vmatpush1.msra.mxu0 0.0
    %2894 = vmatprep.subr.mxu0 0.0
    %2895 = vmatpush1.msra.mxu0 0.0
    %2896 = vmatprep.subr.mxu0 0.0
    %2897 = vmatpush1.msra.mxu0 0.0
    %2898 = vmatprep.subr.mxu0 0.0
    %2899 = vmatpush1.msra.mxu0 0.0
    %2900 = vmatprep.subr.mxu0 0.0
    %2901 = vmatpush1.msra.mxu0 0.0
    %2902 = vmatprep.subr.mxu0 0.0
    %2903 = vmatpush1.msra.mxu0 0.0
    %2904 = vmatprep.subr.mxu0 0.0
    %2905 = vmatpush1.msra.mxu0 0.0
    %2906 = vmatprep.subr.mxu0 0.0
    %2907 = vmatpush1.msra.mxu0 0.0
    %2908 = vmatprep.subr.mxu0 0.0
    %2909 = vmatpush1.msra.mxu0 0.0
    %2910 = vmatprep.subr.mxu0 0.0
    %2911 = vmatpush1.msra.mxu0 0.0
    %2912 = vmatprep.subr.mxu0 0.0
    %2913 = vmatpush1.msra.mxu0 0.0
    %2914 = vmatprep.subr.mxu0 0.0
    %2915 = vmatpush1.msra.mxu0 0.0
    %2916 = vmatprep.subr.mxu0 0.0
    %2917 = vmatpush1.msra.mxu0 0.0
    %2918 = vmatprep.subr.mxu0 0.0
    %2919 = vmatpush1.msra.mxu0 0.0
    %2920 = vmatprep.subr.mxu0 0.0
    %2921 = vmatpush1.msra.mxu0 0.0
    %2922 = vmatprep.subr.mxu0 0.0
    %2923 = vmatpush1.msra.mxu0 0.0
    %2924 = vmatprep.subr.mxu0 0.0
    %2925 = vmatpush1.msra.mxu0 0.0
    %2926 = vmatprep.mubr.f32.mxu0 0.0
    %2927 = vmatmul.mubr.f32.gmra.mrb[0].mxu0 %v2860
    %v2928 = vpop.f32.mrb[0].mxu0
    %v2929 = vadd.f32 0.0, %v2928
    %v2930 = vpop.f32.mrb[0].mxu0
    %2931 = vdwg.mxu0
    %s2932 = scalar_lea.vmem %s18, 8
    %v2933 = vld [vmem:[%s2932] sm:$0xff]
    %v2935 = vsel %vm381, %v2929, 0
    %2937 = vmatprep.subr.mxu0 0.0
    %2938 = vmatpush1.msra.mxu0 %v2933
    %2939 = vmatprep.subr.mxu0 0.0
    %2940 = vmatpush1.msra.mxu0 0.0
    %2941 = vmatprep.subr.mxu0 0.0
    %2942 = vmatpush1.msra.mxu0 0.0
    %2943 = vmatprep.subr.mxu0 0.0
    %2944 = vmatpush1.msra.mxu0 0.0
    %2945 = vmatprep.subr.mxu0 0.0
    %2946 = vmatpush1.msra.mxu0 0.0
    %2947 = vmatprep.subr.mxu0 0.0
    %2948 = vmatpush1.msra.mxu0 0.0
    %2949 = vmatprep.subr.mxu0 0.0
    %2950 = vmatpush1.msra.mxu0 0.0
    %2951 = vmatprep.subr.mxu0 0.0
    %2952 = vmatpush1.msra.mxu0 0.0
    %2953 = vmatprep.subr.mxu0 0.0
    %2954 = vmatpush1.msra.mxu0 0.0
    %2955 = vmatprep.subr.mxu0 0.0
    %2956 = vmatpush1.msra.mxu0 0.0
    %2957 = vmatprep.subr.mxu0 0.0
    %2958 = vmatpush1.msra.mxu0 0.0
    %2959 = vmatprep.subr.mxu0 0.0
    %2960 = vmatpush1.msra.mxu0 0.0
    %2961 = vmatprep.subr.mxu0 0.0
    %2962 = vmatpush1.msra.mxu0 0.0
    %2963 = vmatprep.subr.mxu0 0.0
    %2964 = vmatpush1.msra.mxu0 0.0
    %2965 = vmatprep.subr.mxu0 0.0
    %2966 = vmatpush1.msra.mxu0 0.0
    %2967 = vmatprep.subr.mxu0 0.0
    %2968 = vmatpush1.msra.mxu0 0.0
    %2969 = vmatprep.subr.mxu0 0.0
    %2970 = vmatpush1.msra.mxu0 0.0
    %2971 = vmatprep.subr.mxu0 0.0
    %2972 = vmatpush1.msra.mxu0 0.0
    %2973 = vmatprep.subr.mxu0 0.0
    %2974 = vmatpush1.msra.mxu0 0.0
    %2975 = vmatprep.subr.mxu0 0.0
    %2976 = vmatpush1.msra.mxu0 0.0
    %2977 = vmatprep.subr.mxu0 0.0
    %2978 = vmatpush1.msra.mxu0 0.0
    %2979 = vmatprep.subr.mxu0 0.0
    %2980 = vmatpush1.msra.mxu0 0.0
    %2981 = vmatprep.subr.mxu0 0.0
    %2982 = vmatpush1.msra.mxu0 0.0
    %2983 = vmatprep.subr.mxu0 0.0
    %2984 = vmatpush1.msra.mxu0 0.0
    %2985 = vmatprep.subr.mxu0 0.0
    %2986 = vmatpush1.msra.mxu0 0.0
    %2987 = vmatprep.subr.mxu0 0.0
    %2988 = vmatpush1.msra.mxu0 0.0
    %2989 = vmatprep.subr.mxu0 0.0
    %2990 = vmatpush1.msra.mxu0 0.0
    %2991 = vmatprep.subr.mxu0 0.0
    %2992 = vmatpush1.msra.mxu0 0.0
    %2993 = vmatprep.subr.mxu0 0.0
    %2994 = vmatpush1.msra.mxu0 0.0
    %2995 = vmatprep.subr.mxu0 0.0
    %2996 = vmatpush1.msra.mxu0 0.0
    %2997 = vmatprep.subr.mxu0 0.0
    %2998 = vmatpush1.msra.mxu0 0.0
    %2999 = vmatprep.subr.mxu0 0.0
    %3000 = vmatpush1.msra.mxu0 0.0
    %3001 = vmatprep.mubr.f32.mxu0 0.0
    %3002 = vmatmul.mubr.f32.gmra.mrb[0].mxu0 %v2935
    %v3003 = vpop.f32.mrb[0].mxu0
    %v3004 = vadd.f32 0.0, %v3003
    %v3005 = vpop.f32.mrb[0].mxu0
    %3006 = vdwg.mxu0
    %v3008 = vsel %vm381, %v2517, 0
    %3010 = vmatprep.subr.mxu0 0.0
    %3011 = vmatpush1.msra.mxu0 %v2520
    %3012 = vmatprep.subr.mxu0 0.0
    %3013 = vmatpush1.msra.mxu0 0.0
    %3014 = vmatprep.subr.mxu0 0.0
    %3015 = vmatpush1.msra.mxu0 0.0
    %3016 = vmatprep.subr.mxu0 0.0
    %3017 = vmatpush1.msra.mxu0 0.0
    %3018 = vmatprep.subr.mxu0 0.0
    %3019 = vmatpush1.msra.mxu0 0.0
    %3020 = vmatprep.subr.mxu0 0.0
    %3021 = vmatpush1.msra.mxu0 0.0
    %3022 = vmatprep.subr.mxu0 0.0
    %3023 = vmatpush1.msra.mxu0 0.0
    %3024 = vmatprep.subr.mxu0 0.0
    %3025 = vmatpush1.msra.mxu0 0.0
    %3026 = vmatprep.subr.mxu0 0.0
    %3027 = vmatpush1.msra.mxu0 0.0
    %3028 = vmatprep.subr.mxu0 0.0
    %3029 = vmatpush1.msra.mxu0 0.0
    %3030 = vmatprep.subr.mxu0 0.0
    %3031 = vmatpush1.msra.mxu0 0.0
    %3032 = vmatprep.subr.mxu0 0.0
    %3033 = vmatpush1.msra.mxu0 0.0
    %3034 = vmatprep.subr.mxu0 0.0
    %3035 = vmatpush1.msra.mxu0 0.0
    %3036 = vmatprep.subr.mxu0 0.0
    %3037 = vmatpush1.msra.mxu0 0.0
    %3038 = vmatprep.subr.mxu0 0.0
    %3039 = vmatpush1.msra.mxu0 0.0
    %3040 = vmatprep.subr.mxu0 0.0
    %3041 = vmatpush1.msra.mxu0 0.0
    %3042 = vmatprep.subr.mxu0 0.0
    %3043 = vmatpush1.msra.mxu0 0.0
    %3044 = vmatprep.subr.mxu0 0.0
    %3045 = vmatpush1.msra.mxu0 0.0
    %3046 = vmatprep.subr.mxu0 0.0
    %3047 = vmatpush1.msra.mxu0 0.0
    %3048 = vmatprep.subr.mxu0 0.0
    %3049 = vmatpush1.msra.mxu0 0.0
    %3050 = vmatprep.subr.mxu0 0.0
    %3051 = vmatpush1.msra.mxu0 0.0
    %3052 = vmatprep.subr.mxu0 0.0
    %3053 = vmatpush1.msra.mxu0 0.0
    %3054 = vmatprep.subr.mxu0 0.0
    %3055 = vmatpush1.msra.mxu0 0.0
    %3056 = vmatprep.subr.mxu0 0.0
    %3057 = vmatpush1.msra.mxu0 0.0
    %3058 = vmatprep.subr.mxu0 0.0
    %3059 = vmatpush1.msra.mxu0 0.0
    %3060 = vmatprep.subr.mxu0 0.0
    %3061 = vmatpush1.msra.mxu0 0.0
    %3062 = vmatprep.subr.mxu0 0.0
    %3063 = vmatpush1.msra.mxu0 0.0
    %3064 = vmatprep.subr.mxu0 0.0
    %3065 = vmatpush1.msra.mxu0 0.0
    %3066 = vmatprep.subr.mxu0 0.0
    %3067 = vmatpush1.msra.mxu0 0.0
    %3068 = vmatprep.subr.mxu0 0.0
    %3069 = vmatpush1.msra.mxu0 0.0
    %3070 = vmatprep.subr.mxu0 0.0
    %3071 = vmatpush1.msra.mxu0 0.0
    %3072 = vmatprep.subr.mxu0 0.0
    %3073 = vmatpush1.msra.mxu0 0.0
    %3074 = vmatprep.mubr.f32.mxu0 0.0
    %3075 = vmatmul.mubr.f32.gmra.mrb[0].mxu0 %v3008
    %v3076 = vpop.f32.mrb[0].mxu0
    %v3077 = vadd.f32 %v3004, %v3076
    %v3078 = vpop.f32.mrb[0].mxu0
    %3079 = vdwg.mxu0
    %s3080 = scalar_lea.vmem %s12, 64
    %v3081 = vld [vmem:[%s3080] sm:$0xff]
    %v3082 = vld [vmem:[%s3080 + $0x8] sm:$0xff]
    %v3083 = vld [vmem:[%s3080 + $0x10] sm:$0xff]
    %v3084 = vld [vmem:[%s3080 + $0x18] sm:$0xff]
    %s3085 = scalar_lea.vmem %s13, 2
    %v3086 = vld [vmem:[%s3085] sm:$0x1]
    %v3088 = vlaneseq
    %v3089 = vshrl.u32 %v3088, 7
    %v3090 = vsub.s32 0, %v3089
    %v3091 = vrot.slane %v3086, %v3090
    %3093 = vmatprep.subr.mxu0 0.0
    %3094 = vmatpush1.msra.mxu0 %v3081
    %3095 = vmatprep.subr.mxu0 0.0
    %3096 = vmatpush1.msra.mxu0 %v3082
    %3097 = vmatprep.subr.mxu0 0.0
    %3098 = vmatpush1.msra.mxu0 %v3083
    %3099 = vmatprep.subr.mxu0 0.0
    %3100 = vmatpush1.msra.mxu0 %v3084
    %3101 = vmatprep.subr.mxu0 0.0
    %3102 = vmatpush1.msra.mxu0 0.0
    %3103 = vmatprep.subr.mxu0 0.0
    %3104 = vmatpush1.msra.mxu0 0.0
    %3105 = vmatprep.subr.mxu0 0.0
    %3106 = vmatpush1.msra.mxu0 0.0
    %3107 = vmatprep.subr.mxu0 0.0
    %3108 = vmatpush1.msra.mxu0 0.0
    %3109 = vmatprep.subr.mxu0 0.0
    %3110 = vmatpush1.msra.mxu0 0.0
    %3111 = vmatprep.subr.mxu0 0.0
    %3112 = vmatpush1.msra.mxu0 0.0
    %3113 = vmatprep.subr.mxu0 0.0
    %3114 = vmatpush1.msra.mxu0 0.0
    %3115 = vmatprep.subr.mxu0 0.0
    %3116 = vmatpush1.msra.mxu0 0.0
    %3117 = vmatprep.subr.mxu0 0.0
    %3118 = vmatpush1.msra.mxu0 0.0
    %3119 = vmatprep.subr.mxu0 0.0
    %3120 = vmatpush1.msra.mxu0 0.0
    %3121 = vmatprep.subr.mxu0 0.0
    %3122 = vmatpush1.msra.mxu0 0.0
    %3123 = vmatprep.subr.mxu0 0.0
    %3124 = vmatpush1.msra.mxu0 0.0
    %3125 = vmatprep.subr.mxu0 0.0
    %3126 = vmatpush1.msra.mxu0 0.0
    %3127 = vmatprep.subr.mxu0 0.0
    %3128 = vmatpush1.msra.mxu0 0.0
    %3129 = vmatprep.subr.mxu0 0.0
    %3130 = vmatpush1.msra.mxu0 0.0
    %3131 = vmatprep.subr.mxu0 0.0
    %3132 = vmatpush1.msra.mxu0 0.0
    %3133 = vmatprep.subr.mxu0 0.0
    %3134 = vmatpush1.msra.mxu0 0.0
    %3135 = vmatprep.subr.mxu0 0.0
    %3136 = vmatpush1.msra.mxu0 0.0
    %3137 = vmatprep.subr.mxu0 0.0
    %3138 = vmatpush1.msra.mxu0 0.0
    %3139 = vmatprep.subr.mxu0 0.0
    %3140 = vmatpush1.msra.mxu0 0.0
    %3141 = vmatprep.subr.mxu0 0.0
    %3142 = vmatpush1.msra.mxu0 0.0
    %3143 = vmatprep.subr.mxu0 0.0
    %3144 = vmatpush1.msra.mxu0 0.0
    %3145 = vmatprep.subr.mxu0 0.0
    %3146 = vmatpush1.msra.mxu0 0.0
    %3147 = vmatprep.subr.mxu0 0.0
    %3148 = vmatpush1.msra.mxu0 0.0
    %3149 = vmatprep.subr.mxu0 0.0
    %3150 = vmatpush1.msra.mxu0 0.0
    %3151 = vmatprep.subr.mxu0 0.0
    %3152 = vmatpush1.msra.mxu0 0.0
    %3153 = vmatprep.subr.mxu0 0.0
    %3154 = vmatpush1.msra.mxu0 0.0
    %3155 = vmatprep.subr.mxu0 0.0
    %3156 = vmatpush1.msra.mxu0 0.0
    %3157 = vmatprep.mubr.f32.mxu0 0.0
    %3158 = vmatmul.mubr.f32.gmra.mrb[0].mxu0 %v2121
    %v3159 = vpop.f32.mrb[0].mxu0
    %v3160 = vadd.f32 %v3091, %v3159
    %v3161 = vpop.f32.mrb[0].mxu0
    %3162 = vdwg.mxu0
    %s3163 = scalar_lea.vmem %s14, 64
    %v3164 = vld [vmem:[%s3163] sm:$0xff]
    %v3165 = vld [vmem:[%s3163 + $0x8] sm:$0xff]
    %v3166 = vld [vmem:[%s3163 + $0x10] sm:$0xff]
    %v3167 = vld [vmem:[%s3163 + $0x18] sm:$0xff]
    %s3168 = scalar_lea.vmem %s15, 2
    %v3169 = vld [vmem:[%s3168] sm:$0x1]
    %v3171 = vlaneseq
    %v3172 = vshrl.u32 %v3171, 7
    %v3173 = vsub.s32 0, %v3172
    %v3174 = vrot.slane %v3169, %v3173
    %3176 = vmatprep.subr.mxu0 0.0
    %3177 = vmatpush1.msra.mxu0 %v3164
    %3178 = vmatprep.subr.mxu0 0.0
    %3179 = vmatpush1.msra.mxu0 %v3165
    %3180 = vmatprep.subr.mxu0 0.0
    %3181 = vmatpush1.msra.mxu0 %v3166
    %3182 = vmatprep.subr.mxu0 0.0
    %3183 = vmatpush1.msra.mxu0 %v3167
    %3184 = vmatprep.subr.mxu0 0.0
    %3185 = vmatpush1.msra.mxu0 0.0
    %3186 = vmatprep.subr.mxu0 0.0
    %3187 = vmatpush1.msra.mxu0 0.0
    %3188 = vmatprep.subr.mxu0 0.0
    %3189 = vmatpush1.msra.mxu0 0.0
    %3190 = vmatprep.subr.mxu0 0.0
    %3191 = vmatpush1.msra.mxu0 0.0
    %3192 = vmatprep.subr.mxu0 0.0
    %3193 = vmatpush1.msra.mxu0 0.0
    %3194 = vmatprep.subr.mxu0 0.0
    %3195 = vmatpush1.msra.mxu0 0.0
    %3196 = vmatprep.subr.mxu0 0.0
    %3197 = vmatpush1.msra.mxu0 0.0
    %3198 = vmatprep.subr.mxu0 0.0
    %3199 = vmatpush1.msra.mxu0 0.0
    %3200 = vmatprep.subr.mxu0 0.0
    %3201 = vmatpush1.msra.mxu0 0.0
    %3202 = vmatprep.subr.mxu0 0.0
    %3203 = vmatpush1.msra.mxu0 0.0
    %3204 = vmatprep.subr.mxu0 0.0
    %3205 = vmatpush1.msra.mxu0 0.0
    %3206 = vmatprep.subr.mxu0 0.0
    %3207 = vmatpush1.msra.mxu0 0.0
    %3208 = vmatprep.subr.mxu0 0.0
    %3209 = vmatpush1.msra.mxu0 0.0
    %3210 = vmatprep.subr.mxu0 0.0
    %3211 = vmatpush1.msra.mxu0 0.0
    %3212 = vmatprep.subr.mxu0 0.0
    %3213 = vmatpush1.msra.mxu0 0.0
    %3214 = vmatprep.subr.mxu0 0.0
    %3215 = vmatpush1.msra.mxu0 0.0
    %3216 = vmatprep.subr.mxu0 0.0
    %3217 = vmatpush1.msra.mxu0 0.0
    %3218 = vmatprep.subr.mxu0 0.0
    %3219 = vmatpush1.msra.mxu0 0.0
    %3220 = vmatprep.subr.mxu0 0.0
    %3221 = vmatpush1.msra.mxu0 0.0
    %3222 = vmatprep.subr.mxu0 0.0
    %3223 = vmatpush1.msra.mxu0 0.0
    %3224 = vmatprep.subr.mxu0 0.0
    %3225 = vmatpush1.msra.mxu0 0.0
    %3226 = vmatprep.subr.mxu0 0.0
    %3227 = vmatpush1.msra.mxu0 0.0
    %3228 = vmatprep.subr.mxu0 0.0
    %3229 = vmatpush1.msra.mxu0 0.0
    %3230 = vmatprep.subr.mxu0 0.0
    %3231 = vmatpush1.msra.mxu0 0.0
    %3232 = vmatprep.subr.mxu0 0.0
    %3233 = vmatpush1.msra.mxu0 0.0
    %3234 = vmatprep.subr.mxu0 0.0
    %3235 = vmatpush1.msra.mxu0 0.0
    %3236 = vmatprep.subr.mxu0 0.0
    %3237 = vmatpush1.msra.mxu0 0.0
    %3238 = vmatprep.subr.mxu0 0.0
    %3239 = vmatpush1.msra.mxu0 0.0
    %3240 = vmatprep.mubr.f32.mxu0 0.0
    %3241 = vmatmul.mubr.f32.gmra.mrb[0].mxu0 %v2205
    %v3242 = vpop.f32.mrb[0].mxu0
    %v3243 = vadd.f32 %v3174, %v3242
    %v3244 = vpop.f32.mrb[0].mxu0
    %3245 = vdwg.mxu0
    %s3246 = scalar_lea.vmem %s16, 64
    %v3247 = vld [vmem:[%s3246] sm:$0xff]
    %v3248 = vld [vmem:[%s3246 + $0x8] sm:$0xff]
    %v3249 = vld [vmem:[%s3246 + $0x10] sm:$0xff]
    %v3250 = vld [vmem:[%s3246 + $0x18] sm:$0xff]
    %s3251 = scalar_lea.vmem %s17, 2
    %v3252 = vld [vmem:[%s3251] sm:$0x1]
    %v3254 = vlaneseq
    %v3255 = vshrl.u32 %v3254, 7
    %v3256 = vsub.s32 0, %v3255
    %v3257 = vrot.slane %v3252, %v3256
    %3259 = vmatprep.subr.mxu0 0.0
    %3260 = vmatpush1.msra.mxu0 %v3247
    %3261 = vmatprep.subr.mxu0 0.0
    %3262 = vmatpush1.msra.mxu0 %v3248
    %3263 = vmatprep.subr.mxu0 0.0
    %3264 = vmatpush1.msra.mxu0 %v3249
    %3265 = vmatprep.subr.mxu0 0.0
    %3266 = vmatpush1.msra.mxu0 %v3250
    %3267 = vmatprep.subr.mxu0 0.0
    %3268 = vmatpush1.msra.mxu0 0.0
    %3269 = vmatprep.subr.mxu0 0.0
    %3270 = vmatpush1.msra.mxu0 0.0
    %3271 = vmatprep.subr.mxu0 0.0
    %3272 = vmatpush1.msra.mxu0 0.0
    %3273 = vmatprep.subr.mxu0 0.0
    %3274 = vmatpush1.msra.mxu0 0.0
    %3275 = vmatprep.subr.mxu0 0.0
    %3276 = vmatpush1.msra.mxu0 0.0
    %3277 = vmatprep.subr.mxu0 0.0
    %3278 = vmatpush1.msra.mxu0 0.0
    %3279 = vmatprep.subr.mxu0 0.0
    %3280 = vmatpush1.msra.mxu0 0.0
    %3281 = vmatprep.subr.mxu0 0.0
    %3282 = vmatpush1.msra.mxu0 0.0
    %3283 = vmatprep.subr.mxu0 0.0
    %3284 = vmatpush1.msra.mxu0 0.0
    %3285 = vmatprep.subr.mxu0 0.0
    %3286 = vmatpush1.msra.mxu0 0.0
    %3287 = vmatprep.subr.mxu0 0.0
    %3288 = vmatpush1.msra.mxu0 0.0
    %3289 = vmatprep.subr.mxu0 0.0
    %3290 = vmatpush1.msra.mxu0 0.0
    %3291 = vmatprep.subr.mxu0 0.0
    %3292 = vmatpush1.msra.mxu0 0.0
    %3293 = vmatprep.subr.mxu0 0.0
    %3294 = vmatpush1.msra.mxu0 0.0
    %3295 = vmatprep.subr.mxu0 0.0
    %3296 = vmatpush1.msra.mxu0 0.0
    %3297 = vmatprep.subr.mxu0 0.0
    %3298 = vmatpush1.msra.mxu0 0.0
    %3299 = vmatprep.subr.mxu0 0.0
    %3300 = vmatpush1.msra.mxu0 0.0
    %3301 = vmatprep.subr.mxu0 0.0
    %3302 = vmatpush1.msra.mxu0 0.0
    %3303 = vmatprep.subr.mxu0 0.0
    %3304 = vmatpush1.msra.mxu0 0.0
    %3305 = vmatprep.subr.mxu0 0.0
    %3306 = vmatpush1.msra.mxu0 0.0
    %3307 = vmatprep.subr.mxu0 0.0
    %3308 = vmatpush1.msra.mxu0 0.0
    %3309 = vmatprep.subr.mxu0 0.0
    %3310 = vmatpush1.msra.mxu0 0.0
    %3311 = vmatprep.subr.mxu0 0.0
    %3312 = vmatpush1.msra.mxu0 0.0
    %3313 = vmatprep.subr.mxu0 0.0
    %3314 = vmatpush1.msra.mxu0 0.0
    %3315 = vmatprep.subr.mxu0 0.0
    %3316 = vmatpush1.msra.mxu0 0.0
    %3317 = vmatprep.subr.mxu0 0.0
    %3318 = vmatpush1.msra.mxu0 0.0
    %3319 = vmatprep.subr.mxu0 0.0
    %3320 = vmatpush1.msra.mxu0 0.0
    %3321 = vmatprep.subr.mxu0 0.0
    %3322 = vmatpush1.msra.mxu0 0.0
    %3323 = vmatprep.mubr.f32.mxu0 0.0
    %3324 = vmatmul.mubr.f32.gmra.mrb[0].mxu0 %v2205
    %v3325 = vpop.f32.mrb[0].mxu0
    %v3326 = vadd.f32 %v3257, %v3325
    %v3327 = vpop.f32.mrb[0].mxu0
    %3328 = vdwg.mxu0
    %v3330 = vsel %vm381, %v3160, 0
    %v3333 = vsel %vm381, %v3243, 0
    %3335 = vmatprep.subr.mxu0 0.0
    %3336 = vmatpush1.xpose.msra.mxu0 %v3333
    %3337 = vmatprep.subr.mxu0 0.0
    %3338 = vmatpush1.xpose.msra.mxu0 0.0
    %3339 = vmatprep.subr.mxu0 0.0
    %3340 = vmatpush1.xpose.msra.mxu0 0.0
    %3341 = vmatprep.subr.mxu0 0.0
    %3342 = vmatpush1.xpose.msra.mxu0 0.0
    %3343 = vmatprep.subr.mxu0 0.0
    %3344 = vmatpush1.xpose.msra.mxu0 0.0
    %3345 = vmatprep.subr.mxu0 0.0
    %3346 = vmatpush1.xpose.msra.mxu0 0.0
    %3347 = vmatprep.subr.mxu0 0.0
    %3348 = vmatpush1.xpose.msra.mxu0 0.0
    %3349 = vmatprep.subr.mxu0 0.0
    %3350 = vmatpush1.xpose.msra.mxu0 0.0
    %3351 = vmatprep.subr.mxu0 0.0
    %3352 = vmatpush1.xpose.msra.mxu0 0.0
    %3353 = vmatprep.subr.mxu0 0.0
    %3354 = vmatpush1.xpose.msra.mxu0 0.0
    %3355 = vmatprep.subr.mxu0 0.0
    %3356 = vmatpush1.xpose.msra.mxu0 0.0
    %3357 = vmatprep.subr.mxu0 0.0
    %3358 = vmatpush1.xpose.msra.mxu0 0.0
    %3359 = vmatprep.subr.mxu0 0.0
    %3360 = vmatpush1.xpose.msra.mxu0 0.0
    %3361 = vmatprep.subr.mxu0 0.0
    %3362 = vmatpush1.xpose.msra.mxu0 0.0
    %3363 = vmatprep.subr.mxu0 0.0
    %3364 = vmatpush1.xpose.msra.mxu0 0.0
    %3365 = vmatprep.subr.mxu0 0.0
    %3366 = vmatpush1.xpose.msra.mxu0 0.0
    %3367 = vmatprep.subr.mxu0 0.0
    %3368 = vmatpush1.xpose.msra.mxu0 0.0
    %3369 = vmatprep.subr.mxu0 0.0
    %3370 = vmatpush1.xpose.msra.mxu0 0.0
    %3371 = vmatprep.subr.mxu0 0.0
    %3372 = vmatpush1.xpose.msra.mxu0 0.0
    %3373 = vmatprep.subr.mxu0 0.0
    %3374 = vmatpush1.xpose.msra.mxu0 0.0
    %3375 = vmatprep.subr.mxu0 0.0
    %3376 = vmatpush1.xpose.msra.mxu0 0.0
    %3377 = vmatprep.subr.mxu0 0.0
    %3378 = vmatpush1.xpose.msra.mxu0 0.0
    %3379 = vmatprep.subr.mxu0 0.0
    %3380 = vmatpush1.xpose.msra.mxu0 0.0
    %3381 = vmatprep.subr.mxu0 0.0
    %3382 = vmatpush1.xpose.msra.mxu0 0.0
    %3383 = vmatprep.subr.mxu0 0.0
    %3384 = vmatpush1.xpose.msra.mxu0 0.0
    %3385 = vmatprep.subr.mxu0 0.0
    %3386 = vmatpush1.xpose.msra.mxu0 0.0
    %3387 = vmatprep.subr.mxu0 0.0
    %3388 = vmatpush1.xpose.msra.mxu0 0.0
    %3389 = vmatprep.subr.mxu0 0.0
    %3390 = vmatpush1.xpose.msra.mxu0 0.0
    %3391 = vmatprep.subr.mxu0 0.0
    %3392 = vmatpush1.xpose.msra.mxu0 0.0
    %3393 = vmatprep.subr.mxu0 0.0
    %3394 = vmatpush1.xpose.msra.mxu0 0.0
    %3395 = vmatprep.subr.mxu0 0.0
    %3396 = vmatpush1.xpose.msra.mxu0 0.0
    %3397 = vmatprep.subr.mxu0 0.0
    %3398 = vmatpush1.xpose.msra.mxu0 0.0
    %3399 = vmatprep.mubr.f32.mxu0 0.0
    %3400 = vmatmul.mubr.f32.gmra.mrb[0].mxu0 %v3330
    %v3401 = vpop.f32.mrb[0].mxu0
    %v3402 = vadd.f32 0.0, %v3401
    %v3403 = vpop.f32.mrb[0].mxu0
    %3404 = vdwg.mxu0
    %v3405 = vmul.f32 %v3402, 0.35355338
    %v3406 = vadd.f32 %v3405, %v105
    %v3407 = vsel %vm381, %v3406, -inf
    %3408 = vmax.xlane.f32.xlu0 %v3407
    %v3409 = vpop.xlane.xlu0 %3408
    %v3410 = vsub.f32 %v3406, %v3409
    %v3411 = vmul.f32 %v3410, 1.442695
    %v3412 = vpow.pop %v3411
    %v3413 = vsel %vm381, %v3412, 0.0
    %3414 = vadd.xlane.f32.xlu0 %v3413
    %v3415 = vpop.xlane.xlu0 %3414
    %v3416 = vrcp.pop %v3415
    %v3417 = vmul.f32 %v3412, %v3416
    %v3419 = vsel %vm381, %v3417, 0
    %3421 = vmatprep.subr.mxu0 0.0
    %3422 = vmatpush1.msra.mxu0 %v3326
    %3423 = vmatprep.subr.mxu0 0.0
    %3424 = vmatpush1.msra.mxu0 0.0
    %3425 = vmatprep.subr.mxu0 0.0
    %3426 = vmatpush1.msra.mxu0 0.0
    %3427 = vmatprep.subr.mxu0 0.0
    %3428 = vmatpush1.msra.mxu0 0.0
    %3429 = vmatprep.subr.mxu0 0.0
    %3430 = vmatpush1.msra.mxu0 0.0
    %3431 = vmatprep.subr.mxu0 0.0
    %3432 = vmatpush1.msra.mxu0 0.0
    %3433 = vmatprep.subr.mxu0 0.0
    %3434 = vmatpush1.msra.mxu0 0.0
    %3435 = vmatprep.subr.mxu0 0.0
    %3436 = vmatpush1.msra.mxu0 0.0
    %3437 = vmatprep.subr.mxu0 0.0
    %3438 = vmatpush1.msra.mxu0 0.0
    %3439 = vmatprep.subr.mxu0 0.0
    %3440 = vmatpush1.msra.mxu0 0.0
    %3441 = vmatprep.subr.mxu0 0.0
    %3442 = vmatpush1.msra.mxu0 0.0
    %3443 = vmatprep.subr.mxu0 0.0
    %3444 = vmatpush1.msra.mxu0 0.0
    %3445 = vmatprep.subr.mxu0 0.0
    %3446 = vmatpush1.msra.mxu0 0.0
    %3447 = vmatprep.subr.mxu0 0.0
    %3448 = vmatpush1.msra.mxu0 0.0
    %3449 = vmatprep.subr.mxu0 0.0
    %3450 = vmatpush1.msra.mxu0 0.0
    %3451 = vmatprep.subr.mxu0 0.0
    %3452 = vmatpush1.msra.mxu0 0.0
    %3453 = vmatprep.subr.mxu0 0.0
    %3454 = vmatpush1.msra.mxu0 0.0
    %3455 = vmatprep.subr.mxu0 0.0
    %3456 = vmatpush1.msra.mxu0 0.0
    %3457 = vmatprep.subr.mxu0 0.0
    %3458 = vmatpush1.msra.mxu0 0.0
    %3459 = vmatprep.subr.mxu0 0.0
    %3460 = vmatpush1.msra.mxu0 0.0
    %3461 = vmatprep.subr.mxu0 0.0
    %3462 = vmatpush1.msra.mxu0 0.0
    %3463 = vmatprep.subr.mxu0 0.0
    %3464 = vmatpush1.msra.mxu0 0.0
    %3465 = vmatprep.subr.mxu0 0.0
    %3466 = vmatpush1.msra.mxu0 0.0
    %3467 = vmatprep.subr.mxu0 0.0
    %3468 = vmatpush1.msra.mxu0 0.0
    %3469 = vmatprep.subr.mxu0 0.0
    %3470 = vmatpush1.msra.mxu0 0.0
    %3471 = vmatprep.subr.mxu0 0.0
    %3472 = vmatpush1.msra.mxu0 0.0
    %3473 = vmatprep.subr.mxu0 0.0
    %3474 = vmatpush1.msra.mxu0 0.0
    %3475 = vmatprep.subr.mxu0 0.0
    %3476 = vmatpush1.msra.mxu0 0.0
    %3477 = vmatprep.subr.mxu0 0.0
    %3478 = vmatpush1.msra.mxu0 0.0
    %3479 = vmatprep.subr.mxu0 0.0
    %3480 = vmatpush1.msra.mxu0 0.0
    %3481 = vmatprep.subr.mxu0 0.0
    %3482 = vmatpush1.msra.mxu0 0.0
    %3483 = vmatprep.subr.mxu0 0.0
    %3484 = vmatpush1.msra.mxu0 0.0
    %3485 = vmatprep.mubr.f32.mxu0 0.0
    %3486 = vmatmul.mubr.f32.gmra.mrb[0].mxu0 %v3419
    %v3487 = vpop.f32.mrb[0].mxu0
    %v3488 = vadd.f32 0.0, %v3487
    %v3489 = vpop.f32.mrb[0].mxu0
    %3490 = vdwg.mxu0
    %s3491 = scalar_lea.vmem %s18, 16
    %v3492 = vld [vmem:[%s3491] sm:$0xff]
    %v3494 = vsel %vm381, %v3488, 0
    %3496 = vmatprep.subr.mxu0 0.0
    %3497 = vmatpush1.msra.mxu0 %v3492
    %3498 = vmatprep.subr.mxu0 0.0
    %3499 = vmatpush1.msra.mxu0 0.0
    %3500 = vmatprep.subr.mxu0 0.0
    %3501 = vmatpush1.msra.mxu0 0.0
    %3502 = vmatprep.subr.mxu0 0.0
    %3503 = vmatpush1.msra.mxu0 0.0
    %3504 = vmatprep.subr.mxu0 0.0
    %3505 = vmatpush1.msra.mxu0 0.0
    %3506 = vmatprep.subr.mxu0 0.0
    %3507 = vmatpush1.msra.mxu0 0.0
    %3508 = vmatprep.subr.mxu0 0.0
    %3509 = vmatpush1.msra.mxu0 0.0
    %3510 = vmatprep.subr.mxu0 0.0
    %3511 = vmatpush1.msra.mxu0 0.0
    %3512 = vmatprep.subr.mxu0 0.0
    %3513 = vmatpush1.msra.mxu0 0.0
    %3514 = vmatprep.subr.mxu0 0.0
    %3515 = vmatpush1.msra.mxu0 0.0
    %3516 = vmatprep.subr.mxu0 0.0
    %3517 = vmatpush1.msra.mxu0 0.0
    %3518 = vmatprep.subr.mxu0 0.0
    %3519 = vmatpush1.msra.mxu0 0.0
    %3520 = vmatprep.subr.mxu0 0.0
    %3521 = vmatpush1.msra.mxu0 0.0
    %3522 = vmatprep.subr.mxu0 0.0
    %3523 = vmatpush1.msra.mxu0 0.0
    %3524 = vmatprep.subr.mxu0 0.0
    %3525 = vmatpush1.msra.mxu0 0.0
    %3526 = vmatprep.subr.mxu0 0.0
    %3527 = vmatpush1.msra.mxu0 0.0
    %3528 = vmatprep.subr.mxu0 0.0
    %3529 = vmatpush1.msra.mxu0 0.0
    %3530 = vmatprep.subr.mxu0 0.0
    %3531 = vmatpush1.msra.mxu0 0.0
    %3532 = vmatprep.subr.mxu0 0.0
    %3533 = vmatpush1.msra.mxu0 0.0
    %3534 = vmatprep.subr.mxu0 0.0
    %3535 = vmatpush1.msra.mxu0 0.0
    %3536 = vmatprep.subr.mxu0 0.0
    %3537 = vmatpush1.msra.mxu0 0.0
    %3538 = vmatprep.subr.mxu0 0.0
    %3539 = vmatpush1.msra.mxu0 0.0
    %3540 = vmatprep.subr.mxu0 0.0
    %3541 = vmatpush1.msra.mxu0 0.0
    %3542 = vmatprep.subr.mxu0 0.0
    %3543 = vmatpush1.msra.mxu0 0.0
    %3544 = vmatprep.subr.mxu0 0.0
    %3545 = vmatpush1.msra.mxu0 0.0
    %3546 = vmatprep.subr.mxu0 0.0
    %3547 = vmatpush1.msra.mxu0 0.0
    %3548 = vmatprep.subr.mxu0 0.0
    %3549 = vmatpush1.msra.mxu0 0.0
    %3550 = vmatprep.subr.mxu0 0.0
    %3551 = vmatpush1.msra.mxu0 0.0
    %3552 = vmatprep.subr.mxu0 0.0
    %3553 = vmatpush1.msra.mxu0 0.0
    %3554 = vmatprep.subr.mxu0 0.0
    %3555 = vmatpush1.msra.mxu0 0.0
    %3556 = vmatprep.subr.mxu0 0.0
    %3557 = vmatpush1.msra.mxu0 0.0
    %3558 = vmatprep.subr.mxu0 0.0
    %3559 = vmatpush1.msra.mxu0 0.0
    %3560 = vmatprep.mubr.f32.mxu0 0.0
    %3561 = vmatmul.mubr.f32.gmra.mrb[0].mxu0 %v3494
    %v3562 = vpop.f32.mrb[0].mxu0
    %v3563 = vadd.f32 0.0, %v3562
    %v3564 = vpop.f32.mrb[0].mxu0
    %3565 = vdwg.mxu0
    %v3566 = vadd.f32 %v3077, %v3563
    %s3567 = scalar_lea.vmem %s12, 96
    %v3568 = vld [vmem:[%s3567] sm:$0xff]
    %v3569 = vld [vmem:[%s3567 + $0x8] sm:$0xff]
    %v3570 = vld [vmem:[%s3567 + $0x10] sm:$0xff]
    %v3571 = vld [vmem:[%s3567 + $0x18] sm:$0xff]
    %s3572 = scalar_lea.vmem %s13, 3
    %v3573 = vld [vmem:[%s3572] sm:$0x1]
    %v3575 = vlaneseq
    %v3576 = vshrl.u32 %v3575, 7
    %v3577 = vsub.s32 0, %v3576
    %v3578 = vrot.slane %v3573, %v3577
    %3580 = vmatprep.subr.mxu0 0.0
    %3581 = vmatpush1.msra.mxu0 %v3568
    %3582 = vmatprep.subr.mxu0 0.0
    %3583 = vmatpush1.msra.mxu0 %v3569
    %3584 = vmatprep.subr.mxu0 0.0
    %3585 = vmatpush1.msra.mxu0 %v3570
    %3586 = vmatprep.subr.mxu0 0.0
    %3587 = vmatpush1.msra.mxu0 %v3571
    %3588 = vmatprep.subr.mxu0 0.0
    %3589 = vmatpush1.msra.mxu0 0.0
    %3590 = vmatprep.subr.mxu0 0.0
    %3591 = vmatpush1.msra.mxu0 0.0
    %3592 = vmatprep.subr.mxu0 0.0
    %3593 = vmatpush1.msra.mxu0 0.0
    %3594 = vmatprep.subr.mxu0 0.0
    %3595 = vmatpush1.msra.mxu0 0.0
    %3596 = vmatprep.subr.mxu0 0.0
    %3597 = vmatpush1.msra.mxu0 0.0
    %3598 = vmatprep.subr.mxu0 0.0
    %3599 = vmatpush1.msra.mxu0 0.0
    %3600 = vmatprep.subr.mxu0 0.0
    %3601 = vmatpush1.msra.mxu0 0.0
    %3602 = vmatprep.subr.mxu0 0.0
    %3603 = vmatpush1.msra.mxu0 0.0
    %3604 = vmatprep.subr.mxu0 0.0
    %3605 = vmatpush1.msra.mxu0 0.0
    %3606 = vmatprep.subr.mxu0 0.0
    %3607 = vmatpush1.msra.mxu0 0.0
    %3608 = vmatprep.subr.mxu0 0.0
    %3609 = vmatpush1.msra.mxu0 0.0
    %3610 = vmatprep.subr.mxu0 0.0
    %3611 = vmatpush1.msra.mxu0 0.0
    %3612 = vmatprep.subr.mxu0 0.0
    %3613 = vmatpush1.msra.mxu0 0.0
    %3614 = vmatprep.subr.mxu0 0.0
    %3615 = vmatpush1.msra.mxu0 0.0
    %3616 = vmatprep.subr.mxu0 0.0
    %3617 = vmatpush1.msra.mxu0 0.0
    %3618 = vmatprep.subr.mxu0 0.0
    %3619 = vmatpush1.msra.mxu0 0.0
    %3620 = vmatprep.subr.mxu0 0.0
    %3621 = vmatpush1.msra.mxu0 0.0
    %3622 = vmatprep.subr.mxu0 0.0
    %3623 = vmatpush1.msra.mxu0 0.0
    %3624 = vmatprep.subr.mxu0 0.0
    %3625 = vmatpush1.msra.mxu0 0.0
    %3626 = vmatprep.subr.mxu0 0.0
    %3627 = vmatpush1.msra.mxu0 0.0
    %3628 = vmatprep.subr.mxu0 0.0
    %3629 = vmatpush1.msra.mxu0 0.0
    %3630 = vmatprep.subr.mxu0 0.0
    %3631 = vmatpush1.msra.mxu0 0.0
    %3632 = vmatprep.subr.mxu0 0.0
    %3633 = vmatpush1.msra.mxu0 0.0
    %3634 = vmatprep.subr.mxu0 0.0
    %3635 = vmatpush1.msra.mxu0 0.0
    %3636 = vmatprep.subr.mxu0 0.0
    %3637 = vmatpush1.msra.mxu0 0.0
    %3638 = vmatprep.subr.mxu0 0.0
    %3639 = vmatpush1.msra.mxu0 0.0
    %3640 = vmatprep.subr.mxu0 0.0
    %3641 = vmatpush1.msra.mxu0 0.0
    %3642 = vmatprep.subr.mxu0 0.0
    %3643 = vmatpush1.msra.mxu0 0.0
    %3644 = vmatprep.mubr.f32.mxu0 0.0
    %3645 = vmatmul.mubr.f32.gmra.mrb[0].mxu0 %v2121
    %v3646 = vpop.f32.mrb[0].mxu0
    %v3647 = vadd.f32 %v3578, %v3646
    %v3648 = vpop.f32.mrb[0].mxu0
    %3649 = vdwg.mxu0
    %s3650 = scalar_lea.vmem %s14, 96
    %v3651 = vld [vmem:[%s3650] sm:$0xff]
    %v3652 = vld [vmem:[%s3650 + $0x8] sm:$0xff]
    %v3653 = vld [vmem:[%s3650 + $0x10] sm:$0xff]
    %v3654 = vld [vmem:[%s3650 + $0x18] sm:$0xff]
    %s3655 = scalar_lea.vmem %s15, 3
    %v3656 = vld [vmem:[%s3655] sm:$0x1]
    %v3658 = vlaneseq
    %v3659 = vshrl.u32 %v3658, 7
    %v3660 = vsub.s32 0, %v3659
    %v3661 = vrot.slane %v3656, %v3660
    %3663 = vmatprep.subr.mxu0 0.0
    %3664 = vmatpush1.msra.mxu0 %v3651
    %3665 = vmatprep.subr.mxu0 0.0
    %3666 = vmatpush1.msra.mxu0 %v3652
    %3667 = vmatprep.subr.mxu0 0.0
    %3668 = vmatpush1.msra.mxu0 %v3653
    %3669 = vmatprep.subr.mxu0 0.0
    %3670 = vmatpush1.msra.mxu0 %v3654
    %3671 = vmatprep.subr.mxu0 0.0
    %3672 = vmatpush1.msra.mxu0 0.0
    %3673 = vmatprep.subr.mxu0 0.0
    %3674 = vmatpush1.msra.mxu0 0.0
    %3675 = vmatprep.subr.mxu0 0.0
    %3676 = vmatpush1.msra.mxu0 0.0
    %3677 = vmatprep.subr.mxu0 0.0
    %3678 = vmatpush1.msra.mxu0 0.0
    %3679 = vmatprep.subr.mxu0 0.0
    %3680 = vmatpush1.msra.mxu0 0.0
    %3681 = vmatprep.subr.mxu0 0.0
    %3682 = vmatpush1.msra.mxu0 0.0
    %3683 = vmatprep.subr.mxu0 0.0
    %3684 = vmatpush1.msra.mxu0 0.0
    %3685 = vmatprep.subr.mxu0 0.0
    %3686 = vmatpush1.msra.mxu0 0.0
    %3687 = vmatprep.subr.mxu0 0.0
    %3688 = vmatpush1.msra.mxu0 0.0
    %3689 = vmatprep.subr.mxu0 0.0
    %3690 = vmatpush1.msra.mxu0 0.0
    %3691 = vmatprep.subr.mxu0 0.0
    %3692 = vmatpush1.msra.mxu0 0.0
    %3693 = vmatprep.subr.mxu0 0.0
    %3694 = vmatpush1.msra.mxu0 0.0
    %3695 = vmatprep.subr.mxu0 0.0
    %3696 = vmatpush1.msra.mxu0 0.0
    %3697 = vmatprep.subr.mxu0 0.0
    %3698 = vmatpush1.msra.mxu0 0.0
    %3699 = vmatprep.subr.mxu0 0.0
    %3700 = vmatpush1.msra.mxu0 0.0
    %3701 = vmatprep.subr.mxu0 0.0
    %3702 = vmatpush1.msra.mxu0 0.0
    %3703 = vmatprep.subr.mxu0 0.0
    %3704 = vmatpush1.msra.mxu0 0.0
    %3705 = vmatprep.subr.mxu0 0.0
    %3706 = vmatpush1.msra.mxu0 0.0
    %3707 = vmatprep.subr.mxu0 0.0
    %3708 = vmatpush1.msra.mxu0 0.0
    %3709 = vmatprep.subr.mxu0 0.0
    %3710 = vmatpush1.msra.mxu0 0.0
    %3711 = vmatprep.subr.mxu0 0.0
    %3712 = vmatpush1.msra.mxu0 0.0
    %3713 = vmatprep.subr.mxu0 0.0
    %3714 = vmatpush1.msra.mxu0 0.0
    %3715 = vmatprep.subr.mxu0 0.0
    %3716 = vmatpush1.msra.mxu0 0.0
    %3717 = vmatprep.subr.mxu0 0.0
    %3718 = vmatpush1.msra.mxu0 0.0
    %3719 = vmatprep.subr.mxu0 0.0
    %3720 = vmatpush1.msra.mxu0 0.0
    %3721 = vmatprep.subr.mxu0 0.0
    %3722 = vmatpush1.msra.mxu0 0.0
    %3723 = vmatprep.subr.mxu0 0.0
    %3724 = vmatpush1.msra.mxu0 0.0
    %3725 = vmatprep.subr.mxu0 0.0
    %3726 = vmatpush1.msra.mxu0 0.0
    %3727 = vmatprep.mubr.f32.mxu0 0.0
    %3728 = vmatmul.mubr.f32.gmra.mrb[0].mxu0 %v2205
    %v3729 = vpop.f32.mrb[0].mxu0
    %v3730 = vadd.f32 %v3661, %v3729
    %v3731 = vpop.f32.mrb[0].mxu0
    %3732 = vdwg.mxu0
    %s3733 = scalar_lea.vmem %s16, 96
    %v3734 = vld [vmem:[%s3733] sm:$0xff]
    %v3735 = vld [vmem:[%s3733 + $0x8] sm:$0xff]
    %v3736 = vld [vmem:[%s3733 + $0x10] sm:$0xff]
    %v3737 = vld [vmem:[%s3733 + $0x18] sm:$0xff]
    %s3738 = scalar_lea.vmem %s17, 3
    %v3739 = vld [vmem:[%s3738] sm:$0x1]
    %v3741 = vlaneseq
    %v3742 = vshrl.u32 %v3741, 7
    %v3743 = vsub.s32 0, %v3742
    %v3744 = vrot.slane %v3739, %v3743
    %3746 = vmatprep.subr.mxu0 0.0
    %3747 = vmatpush1.msra.mxu0 %v3734
    %3748 = vmatprep.subr.mxu0 0.0
    %3749 = vmatpush1.msra.mxu0 %v3735
    %3750 = vmatprep.subr.mxu0 0.0
    %3751 = vmatpush1.msra.mxu0 %v3736
    %3752 = vmatprep.subr.mxu0 0.0
    %3753 = vmatpush1.msra.mxu0 %v3737
    %3754 = vmatprep.subr.mxu0 0.0
    %3755 = vmatpush1.msra.mxu0 0.0
    %3756 = vmatprep.subr.mxu0 0.0
    %3757 = vmatpush1.msra.mxu0 0.0
    %3758 = vmatprep.subr.mxu0 0.0
    %3759 = vmatpush1.msra.mxu0 0.0
    %3760 = vmatprep.subr.mxu0 0.0
    %3761 = vmatpush1.msra.mxu0 0.0
    %3762 = vmatprep.subr.mxu0 0.0
    %3763 = vmatpush1.msra.mxu0 0.0
    %3764 = vmatprep.subr.mxu0 0.0
    %3765 = vmatpush1.msra.mxu0 0.0
    %3766 = vmatprep.subr.mxu0 0.0
    %3767 = vmatpush1.msra.mxu0 0.0
    %3768 = vmatprep.subr.mxu0 0.0
    %3769 = vmatpush1.msra.mxu0 0.0
    %3770 = vmatprep.subr.mxu0 0.0
    %3771 = vmatpush1.msra.mxu0 0.0
    %3772 = vmatprep.subr.mxu0 0.0
    %3773 = vmatpush1.msra.mxu0 0.0
    %3774 = vmatprep.subr.mxu0 0.0
    %3775 = vmatpush1.msra.mxu0 0.0
    %3776 = vmatprep.subr.mxu0 0.0
    %3777 = vmatpush1.msra.mxu0 0.0
    %3778 = vmatprep.subr.mxu0 0.0
    %3779 = vmatpush1.msra.mxu0 0.0
    %3780 = vmatprep.subr.mxu0 0.0
    %3781 = vmatpush1.msra.mxu0 0.0
    %3782 = vmatprep.subr.mxu0 0.0
    %3783 = vmatpush1.msra.mxu0 0.0
    %3784 = vmatprep.subr.mxu0 0.0
    %3785 = vmatpush1.msra.mxu0 0.0
    %3786 = vmatprep.subr.mxu0 0.0
    %3787 = vmatpush1.msra.mxu0 0.0
    %3788 = vmatprep.subr.mxu0 0.0
    %3789 = vmatpush1.msra.mxu0 0.0
    %3790 = vmatprep.subr.mxu0 0.0
    %3791 = vmatpush1.msra.mxu0 0.0
    %3792 = vmatprep.subr.mxu0 0.0
    %3793 = vmatpush1.msra.mxu0 0.0
    %3794 = vmatprep.subr.mxu0 0.0
    %3795 = vmatpush1.msra.mxu0 0.0
    %3796 = vmatprep.subr.mxu0 0.0
    %3797 = vmatpush1.msra.mxu0 0.0
    %3798 = vmatprep.subr.mxu0 0.0
    %3799 = vmatpush1.msra.mxu0 0.0
    %3800 = vmatprep.subr.mxu0 0.0
    %3801 = vmatpush1.msra.mxu0 0.0
    %3802 = vmatprep.subr.mxu0 0.0
    %3803 = vmatpush1.msra.mxu0 0.0
    %3804 = vmatprep.subr.mxu0 0.0
    %3805 = vmatpush1.msra.mxu0 0.0
    %3806 = vmatprep.subr.mxu0 0.0
    %3807 = vmatpush1.msra.mxu0 0.0
    %3808 = vmatprep.subr.mxu0 0.0
    %3809 = vmatpush1.msra.mxu0 0.0
    %3810 = vmatprep.mubr.f32.mxu0 0.0
    %3811 = vmatmul.mubr.f32.gmra.mrb[0].mxu0 %v2205
    %v3812 = vpop.f32.mrb[0].mxu0
    %v3813 = vadd.f32 %v3744, %v3812
    %v3814 = vpop.f32.mrb[0].mxu0
    %3815 = vdwg.mxu0
    %v3817 = vsel %vm381, %v3647, 0
    %v3820 = vsel %vm381, %v3730, 0
    %3822 = vmatprep.subr.mxu0 0.0
    %3823 = vmatpush1.xpose.msra.mxu0 %v3820
    %3824 = vmatprep.subr.mxu0 0.0
    %3825 = vmatpush1.xpose.msra.mxu0 0.0
    %3826 = vmatprep.subr.mxu0 0.0
    %3827 = vmatpush1.xpose.msra.mxu0 0.0
    %3828 = vmatprep.subr.mxu0 0.0
    %3829 = vmatpush1.xpose.msra.mxu0 0.0
    %3830 = vmatprep.subr.mxu0 0.0
    %3831 = vmatpush1.xpose.msra.mxu0 0.0
    %3832 = vmatprep.subr.mxu0 0.0
    %3833 = vmatpush1.xpose.msra.mxu0 0.0
    %3834 = vmatprep.subr.mxu0 0.0
    %3835 = vmatpush1.xpose.msra.mxu0 0.0
    %3836 = vmatprep.subr.mxu0 0.0
    %3837 = vmatpush1.xpose.msra.mxu0 0.0
    %3838 = vmatprep.subr.mxu0 0.0
    %3839 = vmatpush1.xpose.msra.mxu0 0.0
    %3840 = vmatprep.subr.mxu0 0.0
    %3841 = vmatpush1.xpose.msra.mxu0 0.0
    %3842 = vmatprep.subr.mxu0 0.0
    %3843 = vmatpush1.xpose.msra.mxu0 0.0
    %3844 = vmatprep.subr.mxu0 0.0
    %3845 = vmatpush1.xpose.msra.mxu0 0.0
    %3846 = vmatprep.subr.mxu0 0.0
    %3847 = vmatpush1.xpose.msra.mxu0 0.0
    %3848 = vmatprep.subr.mxu0 0.0
    %3849 = vmatpush1.xpose.msra.mxu0 0.0
    %3850 = vmatprep.subr.mxu0 0.0
    %3851 = vmatpush1.xpose.msra.mxu0 0.0
    %3852 = vmatprep.subr.mxu0 0.0
    %3853 = vmatpush1.xpose.msra.mxu0 0.0
    %3854 = vmatprep.subr.mxu0 0.0
    %3855 = vmatpush1.xpose.msra.mxu0 0.0
    %3856 = vmatprep.subr.mxu0 0.0
    %3857 = vmatpush1.xpose.msra.mxu0 0.0
    %3858 = vmatprep.subr.mxu0 0.0
    %3859 = vmatpush1.xpose.msra.mxu0 0.0
    %3860 = vmatprep.subr.mxu0 0.0
    %3861 = vmatpush1.xpose.msra.mxu0 0.0
    %3862 = vmatprep.subr.mxu0 0.0
    %3863 = vmatpush1.xpose.msra.mxu0 0.0
    %3864 = vmatprep.subr.mxu0 0.0
    %3865 = vmatpush1.xpose.msra.mxu0 0.0
    %3866 = vmatprep.subr.mxu0 0.0
    %3867 = vmatpush1.xpose.msra.mxu0 0.0
    %3868 = vmatprep.subr.mxu0 0.0
    %3869 = vmatpush1.xpose.msra.mxu0 0.0
    %3870 = vmatprep.subr.mxu0 0.0
    %3871 = vmatpush1.xpose.msra.mxu0 0.0
    %3872 = vmatprep.subr.mxu0 0.0
    %3873 = vmatpush1.xpose.msra.mxu0 0.0
    %3874 = vmatprep.subr.mxu0 0.0
    %3875 = vmatpush1.xpose.msra.mxu0 0.0
    %3876 = vmatprep.subr.mxu0 0.0
    %3877 = vmatpush1.xpose.msra.mxu0 0.0
    %3878 = vmatprep.subr.mxu0 0.0
    %3879 = vmatpush1.xpose.msra.mxu0 0.0
    %3880 = vmatprep.subr.mxu0 0.0
    %3881 = vmatpush1.xpose.msra.mxu0 0.0
    %3882 = vmatprep.subr.mxu0 0.0
    %3883 = vmatpush1.xpose.msra.mxu0 0.0
    %3884 = vmatprep.subr.mxu0 0.0
    %3885 = vmatpush1.xpose.msra.mxu0 0.0
    %3886 = vmatprep.mubr.f32.mxu0 0.0
    %3887 = vmatmul.mubr.f32.gmra.mrb[0].mxu0 %v3817
    %v3888 = vpop.f32.mrb[0].mxu0
    %v3889 = vadd.f32 0.0, %v3888
    %v3890 = vpop.f32.mrb[0].mxu0
    %3891 = vdwg.mxu0
    %v3892 = vmul.f32 %v3889, 0.35355338
    %v3893 = vadd.f32 %v3892, %v105
    %v3894 = vsel %vm381, %v3893, -inf
    %3895 = vmax.xlane.f32.xlu0 %v3894
    %v3896 = vpop.xlane.xlu0 %3895
    %v3897 = vsub.f32 %v3893, %v3896
    %v3898 = vmul.f32 %v3897, 1.442695
    %v3899 = vpow.pop %v3898
    %v3900 = vsel %vm381, %v3899, 0.0
    %3901 = vadd.xlane.f32.xlu0 %v3900
    %v3902 = vpop.xlane.xlu0 %3901
    %v3903 = vrcp.pop %v3902
    %v3904 = vmul.f32 %v3899, %v3903
    %v3906 = vsel %vm381, %v3904, 0
    %3908 = vmatprep.subr.mxu0 0.0
    %3909 = vmatpush1.msra.mxu0 %v3813
    %3910 = vmatprep.subr.mxu0 0.0
    %3911 = vmatpush1.msra.mxu0 0.0
    %3912 = vmatprep.subr.mxu0 0.0
    %3913 = vmatpush1.msra.mxu0 0.0
    %3914 = vmatprep.subr.mxu0 0.0
    %3915 = vmatpush1.msra.mxu0 0.0
    %3916 = vmatprep.subr.mxu0 0.0
    %3917 = vmatpush1.msra.mxu0 0.0
    %3918 = vmatprep.subr.mxu0 0.0
    %3919 = vmatpush1.msra.mxu0 0.0
    %3920 = vmatprep.subr.mxu0 0.0
    %3921 = vmatpush1.msra.mxu0 0.0
    %3922 = vmatprep.subr.mxu0 0.0
    %3923 = vmatpush1.msra.mxu0 0.0
    %3924 = vmatprep.subr.mxu0 0.0
    %3925 = vmatpush1.msra.mxu0 0.0
    %3926 = vmatprep.subr.mxu0 0.0
    %3927 = vmatpush1.msra.mxu0 0.0
    %3928 = vmatprep.subr.mxu0 0.0
    %3929 = vmatpush1.msra.mxu0 0.0
    %3930 = vmatprep.subr.mxu0 0.0
    %3931 = vmatpush1.msra.mxu0 0.0
    %3932 = vmatprep.subr.mxu0 0.0
    %3933 = vmatpush1.msra.mxu0 0.0
    %3934 = vmatprep.subr.mxu0 0.0
    %3935 = vmatpush1.msra.mxu0 0.0
    %3936 = vmatprep.subr.mxu0 0.0
    %3937 = vmatpush1.msra.mxu0 0.0
    %3938 = vmatprep.subr.mxu0 0.0
    %3939 = vmatpush1.msra.mxu0 0.0
    %3940 = vmatprep.subr.mxu0 0.0
    %3941 = vmatpush1.msra.mxu0 0.0
    %3942 = vmatprep.subr.mxu0 0.0
    %3943 = vmatpush1.msra.mxu0 0.0
    %3944 = vmatprep.subr.mxu0 0.0
    %3945 = vmatpush1.msra.mxu0 0.0
    %3946 = vmatprep.subr.mxu0 0.0
    %3947 = vmatpush1.msra.mxu0 0.0
    %3948 = vmatprep.subr.mxu0 0.0
    %3949 = vmatpush1.msra.mxu0 0.0
    %3950 = vmatprep.subr.mxu0 0.0
    %3951 = vmatpush1.msra.mxu0 0.0
    %3952 = vmatprep.subr.mxu0 0.0
    %3953 = vmatpush1.msra.mxu0 0.0
    %3954 = vmatprep.subr.mxu0 0.0
    %3955 = vmatpush1.msra.mxu0 0.0
    %3956 = vmatprep.subr.mxu0 0.0
    %3957 = vmatpush1.msra.mxu0 0.0
    %3958 = vmatprep.subr.mxu0 0.0
    %3959 = vmatpush1.msra.mxu0 0.0
    %3960 = vmatprep.subr.mxu0 0.0
    %3961 = vmatpush1.msra.mxu0 0.0
    %3962 = vmatprep.subr.mxu0 0.0
    %3963 = vmatpush1.msra.mxu0 0.0
    %3964 = vmatprep.subr.mxu0 0.0
    %3965 = vmatpush1.msra.mxu0 0.0
    %3966 = vmatprep.subr.mxu0 0.0
    %3967 = vmatpush1.msra.mxu0 0.0
    %3968 = vmatprep.subr.mxu0 0.0
    %3969 = vmatpush1.msra.mxu0 0.0
    %3970 = vmatprep.subr.mxu0 0.0
    %3971 = vmatpush1.msra.mxu0 0.0
    %3972 = vmatprep.mubr.f32.mxu0 0.0
    %3973 = vmatmul.mubr.f32.gmra.mrb[0].mxu0 %v3906
    %v3974 = vpop.f32.mrb[0].mxu0
    %v3975 = vadd.f32 0.0, %v3974
    %v3976 = vpop.f32.mrb[0].mxu0
    %3977 = vdwg.mxu0
    %s3978 = scalar_lea.vmem %s18, 24
    %v3979 = vld [vmem:[%s3978] sm:$0xff]
    %v3981 = vsel %vm381, %v3975, 0
    %3983 = vmatprep.subr.mxu0 0.0
    %3984 = vmatpush1.msra.mxu0 %v3979
    %3985 = vmatprep.subr.mxu0 0.0
    %3986 = vmatpush1.msra.mxu0 0.0
    %3987 = vmatprep.subr.mxu0 0.0
    %3988 = vmatpush1.msra.mxu0 0.0
    %3989 = vmatprep.subr.mxu0 0.0
    %3990 = vmatpush1.msra.mxu0 0.0
    %3991 = vmatprep.subr.mxu0 0.0
    %3992 = vmatpush1.msra.mxu0 0.0
    %3993 = vmatprep.subr.mxu0 0.0
    %3994 = vmatpush1.msra.mxu0 0.0
    %3995 = vmatprep.subr.mxu0 0.0
    %3996 = vmatpush1.msra.mxu0 0.0
    %3997 = vmatprep.subr.mxu0 0.0
    %3998 = vmatpush1.msra.mxu0 0.0
    %3999 = vmatprep.subr.mxu0 0.0
    %4000 = vmatpush1.msra.mxu0 0.0
    %4001 = vmatprep.subr.mxu0 0.0
    %4002 = vmatpush1.msra.mxu0 0.0
    %4003 = vmatprep.subr.mxu0 0.0
    %4004 = vmatpush1.msra.mxu0 0.0
    %4005 = vmatprep.subr.mxu0 0.0
    %4006 = vmatpush1.msra.mxu0 0.0
    %4007 = vmatprep.subr.mxu0 0.0
    %4008 = vmatpush1.msra.mxu0 0.0
    %4009 = vmatprep.subr.mxu0 0.0
    %4010 = vmatpush1.msra.mxu0 0.0
    %4011 = vmatprep.subr.mxu0 0.0
    %4012 = vmatpush1.msra.mxu0 0.0
    %4013 = vmatprep.subr.mxu0 0.0
    %4014 = vmatpush1.msra.mxu0 0.0
    %4015 = vmatprep.subr.mxu0 0.0
    %4016 = vmatpush1.msra.mxu0 0.0
    %4017 = vmatprep.subr.mxu0 0.0
    %4018 = vmatpush1.msra.mxu0 0.0
    %4019 = vmatprep.subr.mxu0 0.0
    %4020 = vmatpush1.msra.mxu0 0.0
    %4021 = vmatprep.subr.mxu0 0.0
    %4022 = vmatpush1.msra.mxu0 0.0
    %4023 = vmatprep.subr.mxu0 0.0
    %4024 = vmatpush1.msra.mxu0 0.0
    %4025 = vmatprep.subr.mxu0 0.0
    %4026 = vmatpush1.msra.mxu0 0.0
    %4027 = vmatprep.subr.mxu0 0.0
    %4028 = vmatpush1.msra.mxu0 0.0
    %4029 = vmatprep.subr.mxu0 0.0
    %4030 = vmatpush1.msra.mxu0 0.0
    %4031 = vmatprep.subr.mxu0 0.0
    %4032 = vmatpush1.msra.mxu0 0.0
    %4033 = vmatprep.subr.mxu0 0.0
    %4034 = vmatpush1.msra.mxu0 0.0
    %4035 = vmatprep.subr.mxu0 0.0
    %4036 = vmatpush1.msra.mxu0 0.0
    %4037 = vmatprep.subr.mxu0 0.0
    %4038 = vmatpush1.msra.mxu0 0.0
    %4039 = vmatprep.subr.mxu0 0.0
    %4040 = vmatpush1.msra.mxu0 0.0
    %4041 = vmatprep.subr.mxu0 0.0
    %4042 = vmatpush1.msra.mxu0 0.0
    %4043 = vmatprep.subr.mxu0 0.0
    %4044 = vmatpush1.msra.mxu0 0.0
    %4045 = vmatprep.subr.mxu0 0.0
    %4046 = vmatpush1.msra.mxu0 0.0
    %4047 = vmatprep.mubr.f32.mxu0 0.0
    %4048 = vmatmul.mubr.f32.gmra.mrb[0].mxu0 %v3981
    %v4049 = vpop.f32.mrb[0].mxu0
    %v4050 = vadd.f32 0.0, %v4049
    %v4051 = vpop.f32.mrb[0].mxu0
    %4052 = vdwg.mxu0
    %v4053 = vadd.f32 %v3566, %v4050
    %v4054 = vld [vmem:[%s19] sm:$0x1]
    %v4056 = vlaneseq
    %v4057 = vshrl.u32 %v4056, 7
    %v4058 = vsub.s32 0, %v4057
    %v4059 = vrot.slane %v4054, %v4058
    %v4061 = vadd.f32 %v4053, %v4059
    %v4062 = vadd.f32 %v2082, %v4061
    %s4063 = sld [smem:[#allocation2 + $0x100]]
    %s4064 = sld [smem:[#allocation2 + $0x101]]
    %v4065 = vsel %vm108, %v4062, 0.0
    %4066 = vadd.xlane.f32.xlu0 %v4065
    %v4067 = vpop.xlane.xlu0 %4066
    %v4068 = vmul.f32 %v4067, %v112
    %v4069 = vsub.f32 %v4062, %v4068
    %v4070 = vmul.f32 %v4069, %v4069
    %v4071 = vsel %vm108, %v4070, 0.0
    %4072 = vadd.xlane.f32.xlu0 %v4071
    %v4073 = vpop.xlane.xlu0 %4072
    %v4074 = vmul.f32 %v4073, %v119
    %v4075 = vrsqrt.pop %v4074
    %v4076 = vmul.f32 %v4074, %v4075
    %vm4077 = vcmp.eq.f32.partialorder %v4074, inf
    %v4078 = vsel %vm4077, %v4074, %v4076
    %vm4079 = vcmp.eq.f32.partialorder %v4074, 0.0
    %v4080 = vand.u32 %v4074, 2147483648
    %v4081 = vsel %vm4079, %v4080, %v4078
    %v4082 = vstv %s4063
    %v4083 = vmul.f32 %v4082, %v4069
    %v4084 = vadd.f32 %v4081, 1e-06
    %v4085 = vrcp.pop %v4084
    %v4086 = vmul.f32 %v4083, %v4085
    %v4087 = vstv %s4064
    %v4088 = vadd.f32 %v4086, %v4087
    %v4089 = vld [vmem:[%s20] sm:$0xff]
    %v4090 = vld [vmem:[%s20 + $0x8] sm:$0xff]
    %v4091 = vld [vmem:[%s20 + $0x10] sm:$0xff]
    %v4092 = vld [vmem:[%s20 + $0x18] sm:$0xff]
    %v4093 = vld [vmem:[%s21] sm:$0x1]
    %v4095 = vlaneseq
    %v4096 = vshrl.u32 %v4095, 7
    %v4097 = vsub.s32 0, %v4096
    %v4098 = vrot.slane %v4093, %v4097
    %v4101 = vsel %vm108, %v4088, 0
    %4103 = vmatprep.subr.mxu0 0.0
    %4104 = vmatpush1.msra.mxu0 %v4089
    %4105 = vmatprep.subr.mxu0 0.0
    %4106 = vmatpush1.msra.mxu0 %v4090
    %4107 = vmatprep.subr.mxu0 0.0
    %4108 = vmatpush1.msra.mxu0 %v4091
    %4109 = vmatprep.subr.mxu0 0.0
    %4110 = vmatpush1.msra.mxu0 %v4092
    %4111 = vmatprep.subr.mxu0 0.0
    %4112 = vmatpush1.msra.mxu0 0.0
    %4113 = vmatprep.subr.mxu0 0.0
    %4114 = vmatpush1.msra.mxu0 0.0
    %4115 = vmatprep.subr.mxu0 0.0
    %4116 = vmatpush1.msra.mxu0 0.0
    %4117 = vmatprep.subr.mxu0 0.0
    %4118 = vmatpush1.msra.mxu0 0.0
    %4119 = vmatprep.subr.mxu0 0.0
    %4120 = vmatpush1.msra.mxu0 0.0
    %4121 = vmatprep.subr.mxu0 0.0
    %4122 = vmatpush1.msra.mxu0 0.0
    %4123 = vmatprep.subr.mxu0 0.0
    %4124 = vmatpush1.msra.mxu0 0.0
    %4125 = vmatprep.subr.mxu0 0.0
    %4126 = vmatpush1.msra.mxu0 0.0
    %4127 = vmatprep.subr.mxu0 0.0
    %4128 = vmatpush1.msra.mxu0 0.0
    %4129 = vmatprep.subr.mxu0 0.0
    %4130 = vmatpush1.msra.mxu0 0.0
    %4131 = vmatprep.subr.mxu0 0.0
    %4132 = vmatpush1.msra.mxu0 0.0
    %4133 = vmatprep.subr.mxu0 0.0
    %4134 = vmatpush1.msra.mxu0 0.0
    %4135 = vmatprep.subr.mxu0 0.0
    %4136 = vmatpush1.msra.mxu0 0.0
    %4137 = vmatprep.subr.mxu0 0.0
    %4138 = vmatpush1.msra.mxu0 0.0
    %4139 = vmatprep.subr.mxu0 0.0
    %4140 = vmatpush1.msra.mxu0 0.0
    %4141 = vmatprep.subr.mxu0 0.0
    %4142 = vmatpush1.msra.mxu0 0.0
    %4143 = vmatprep.subr.mxu0 0.0
    %4144 = vmatpush1.msra.mxu0 0.0
    %4145 = vmatprep.subr.mxu0 0.0
    %4146 = vmatpush1.msra.mxu0 0.0
    %4147 = vmatprep.subr.mxu0 0.0
    %4148 = vmatpush1.msra.mxu0 0.0
    %4149 = vmatprep.subr.mxu0 0.0
    %4150 = vmatpush1.msra.mxu0 0.0
    %4151 = vmatprep.subr.mxu0 0.0
    %4152 = vmatpush1.msra.mxu0 0.0
    %4153 = vmatprep.subr.mxu0 0.0
    %4154 = vmatpush1.msra.mxu0 0.0
    %4155 = vmatprep.subr.mxu0 0.0
    %4156 = vmatpush1.msra.mxu0 0.0
    %4157 = vmatprep.subr.mxu0 0.0
    %4158 = vmatpush1.msra.mxu0 0.0
    %4159 = vmatprep.subr.mxu0 0.0
    %4160 = vmatpush1.msra.mxu0 0.0
    %4161 = vmatprep.subr.mxu0 0.0
    %4162 = vmatpush1.msra.mxu0 0.0
    %4163 = vmatprep.subr.mxu0 0.0
    %4164 = vmatpush1.msra.mxu0 0.0
    %4165 = vmatprep.subr.mxu0 0.0
    %4166 = vmatpush1.msra.mxu0 0.0
    %4167 = vmatprep.mubr.f32.mxu0 0.0
    %4168 = vmatmul.mubr.f32.gmra.mrb[0].mxu0 %v4101
    %v4169 = vpop.f32.mrb[0].mxu0
    %v4170 = vadd.f32 %v4098, %v4169
    %v4171 = vpop.f32.mrb[0].mxu0
    %4172 = vdwg.mxu0
    %v4173 = vmax.f32 %v4170, 0.0
    %v4174 = vld [vmem:[%s22] sm:$0xff]
    %v4175 = vld [vmem:[%s22 + $0x8] sm:$0xff]
    %v4176 = vld [vmem:[%s22 + $0x10] sm:$0xff]
    %v4177 = vld [vmem:[%s22 + $0x18] sm:$0xff]
    %v4178 = vld [vmem:[%s22 + $0x20] sm:$0xff]
    %v4179 = vld [vmem:[%s22 + $0x28] sm:$0xff]
    %v4180 = vld [vmem:[%s22 + $0x30] sm:$0xff]
    %v4181 = vld [vmem:[%s22 + $0x38] sm:$0xff]
    %v4182 = vld [vmem:[%s23] sm:$0x1]
    %v4184 = vlaneseq
    %v4185 = vshrl.u32 %v4184, 7
    %v4186 = vsub.s32 0, %v4185
    %v4187 = vrot.slane %v4182, %v4186
    %vm4189 = vcmask 523264
    %v4191 = vsel %vm4189, %v4173, 0
    %4193 = vmatprep.subr.mxu0 0.0
    %4194 = vmatpush1.msra.mxu0 %v4174
    %4195 = vmatprep.subr.mxu0 0.0
    %4196 = vmatpush1.msra.mxu0 %v4175
    %4197 = vmatprep.subr.mxu0 0.0
    %4198 = vmatpush1.msra.mxu0 %v4176
    %4199 = vmatprep.subr.mxu0 0.0
    %4200 = vmatpush1.msra.mxu0 %v4177
    %4201 = vmatprep.subr.mxu0 0.0
    %4202 = vmatpush1.msra.mxu0 %v4178
    %4203 = vmatprep.subr.mxu0 0.0
    %4204 = vmatpush1.msra.mxu0 %v4179
    %4205 = vmatprep.subr.mxu0 0.0
    %4206 = vmatpush1.msra.mxu0 %v4180
    %4207 = vmatprep.subr.mxu0 0.0
    %4208 = vmatpush1.msra.mxu0 %v4181
    %4209 = vmatprep.subr.mxu0 0.0
    %4210 = vmatpush1.msra.mxu0 0.0
    %4211 = vmatprep.subr.mxu0 0.0
    %4212 = vmatpush1.msra.mxu0 0.0
    %4213 = vmatprep.subr.mxu0 0.0
    %4214 = vmatpush1.msra.mxu0 0.0
    %4215 = vmatprep.subr.mxu0 0.0
    %4216 = vmatpush1.msra.mxu0 0.0
    %4217 = vmatprep.subr.mxu0 0.0
    %4218 = vmatpush1.msra.mxu0 0.0
    %4219 = vmatprep.subr.mxu0 0.0
    %4220 = vmatpush1.msra.mxu0 0.0
    %4221 = vmatprep.subr.mxu0 0.0
    %4222 = vmatpush1.msra.mxu0 0.0
    %4223 = vmatprep.subr.mxu0 0.0
    %4224 = vmatpush1.msra.mxu0 0.0
    %4225 = vmatprep.subr.mxu0 0.0
    %4226 = vmatpush1.msra.mxu0 0.0
    %4227 = vmatprep.subr.mxu0 0.0
    %4228 = vmatpush1.msra.mxu0 0.0
    %4229 = vmatprep.subr.mxu0 0.0
    %4230 = vmatpush1.msra.mxu0 0.0
    %4231 = vmatprep.subr.mxu0 0.0
    %4232 = vmatpush1.msra.mxu0 0.0
    %4233 = vmatprep.subr.mxu0 0.0
    %4234 = vmatpush1.msra.mxu0 0.0
    %4235 = vmatprep.subr.mxu0 0.0
    %4236 = vmatpush1.msra.mxu0 0.0
    %4237 = vmatprep.subr.mxu0 0.0
    %4238 = vmatpush1.msra.mxu0 0.0
    %4239 = vmatprep.subr.mxu0 0.0
    %4240 = vmatpush1.msra.mxu0 0.0
    %4241 = vmatprep.subr.mxu0 0.0
    %4242 = vmatpush1.msra.mxu0 0.0
    %4243 = vmatprep.subr.mxu0 0.0
    %4244 = vmatpush1.msra.mxu0 0.0
    %4245 = vmatprep.subr.mxu0 0.0
    %4246 = vmatpush1.msra.mxu0 0.0
    %4247 = vmatprep.subr.mxu0 0.0
    %4248 = vmatpush1.msra.mxu0 0.0
    %4249 = vmatprep.subr.mxu0 0.0
    %4250 = vmatpush1.msra.mxu0 0.0
    %4251 = vmatprep.subr.mxu0 0.0
    %4252 = vmatpush1.msra.mxu0 0.0
    %4253 = vmatprep.subr.mxu0 0.0
    %4254 = vmatpush1.msra.mxu0 0.0
    %4255 = vmatprep.subr.mxu0 0.0
    %4256 = vmatpush1.msra.mxu0 0.0
    %4257 = vmatprep.mubr.f32.mxu0 0.0
    %4258 = vmatmul.mubr.f32.gmra.mrb[0].mxu0 %v4191
    %v4259 = vpop.f32.mrb[0].mxu0
    %v4260 = vadd.f32 %v4187, %v4259
    %v4261 = vpop.f32.mrb[0].mxu0
    %4262 = vdwg.mxu0
    %v4263 = vadd.f32 %v4062, %v4260
    %4264 = vst.msk [vmem:[#allocation7] sm:$0xff] %vm108, %v4263
    // Predicated region
    $region106: #{tpu_custom_call.1} parent=1 // pred_check
      _
    $region107: #{tpu_custom_call.1} parent=1 // pred_check_branch
      %4266 = sbr.rel (0) target = $region109
    $region108: #{tpu_custom_call.1} parent=1 // pred_region
      %s4268 = ssub.s32 128, 128
      %4269 = vsyncadd [#allocation4], %s4268
      %s4271 = sshll.u32 [#allocation7], 4
      %s4272 = int_to_ptr.vmem [resolvable:$true] %s4271
      %4274 = dma.vmem_to_hbm [thread:$0]  %s4272, 128, %s24, [#allocation4]
    $region109: #{tpu_custom_call.1} parent=1 // pred_fallthru
      _
    // Predicated region
    $region110: #{tpu_custom_call.1} parent=1 // pred_check
      _
    $region111: #{tpu_custom_call.1} parent=1 // pred_check_branch
      %4276 = sbr.rel (0) target = $region113
    $region112: #{tpu_custom_call.1} parent=1 // pred_region
      %4277 = dma.done [#allocation4], 128
    $region113: #{tpu_custom_call.1} parent=1 // pred_fallthru
      _
    %4278 = vsyncpa [#allocation3], 1
    %4279 = vsyncpa [#allocation4], 1
    %4280 = vsyncpa [#allocation5], 1

</llo_original>
